<compile_context>
chip_gen: v7x
topology: tpu7x:2x2x1
jax: 0.10.0
libtpu: 0.0.40
codegen_flags: <defaults>
</compile_context>

<pallas_src>
import functools

import numpy as np
import jax
import jax.numpy as jnp
from jax.experimental import pallas as pl
from jax.experimental.pallas import tpu as pltpu


# ----------------------------- Pallas kernel ------------------------------- #
def _fused_window_attn_kernel(x_ref, wq_ref, wk_ref, wv_ref, bq_ref, bv_ref,
                              scale_ref, relb_ref, wproj_ref, bproj_ref, o_ref,
                              *, num_heads, win_len, head_dim):
    """Grid = (stream, window_tile).  One step: `window_tile` windows of one
    stream (m or p), all heads, with zero in-kernel layout shuffles."""
    H, N, dh = num_heads, win_len, head_dim
    s_idx = pl.program_id(0)                       # 0 = m stream, 1 = p stream

    x = x_ref[0]                                   # (rows, C) bf16
    rows = x.shape[0]
    n_win = rows // N
    CP = o_ref.shape[-1]                           # lane-dense padded out width

    def inv_l2(t):  # F.normalize(t, dim=-1): 1/max(||t||2, 1e-12) via rsqrt (EUP)
        return jax.lax.rsqrt(
            jnp.maximum(jnp.sum(t * t, axis=-1, keepdims=True), 1e-24))

    acc = jnp.zeros((rows, CP), jnp.float32)

    # Static (unrolled) head loop; every ref index below is a leading-dim index,
    # so no cross-lane shifts / masked repacks are generated.
    for h in range(H):
        # per-head QKV projections (bf16 MXU, f32 accumulate); lane-0 aligned
        q = jnp.dot(x, wq_ref[0, h], preferred_element_type=jnp.float32) + bq_ref[0, h]
        k = jnp.dot(x, wk_ref[0, h], preferred_element_type=jnp.float32)
        v = jnp.dot(x, wv_ref[0, h], preferred_element_type=jnp.float32) + bv_ref[0, h]

        # cosine attention: f32 L2-normalize; per-(stream, head) logit scale is a
        # scalar read from SMEM, folded into q before the bf16 cast.
        scale_h = scale_ref[s_idx, h]
        qn = q * (inv_l2(q) * scale_h)
        kn = k * inv_l2(k)

        # rows -> (windows, N, dh): pure leading-dim split (free).
        q3 = qn.reshape(n_win, N, dh).astype(jnp.bfloat16)
        k3 = kn.reshape(n_win, N, dh).astype(jnp.bfloat16)
        v3 = v.reshape(n_win, N, dh).astype(jnp.bfloat16)

        s = jnp.einsum("bnd,bmd->bnm", q3, k3,
                       preferred_element_type=jnp.float32)       # (n_win, N, N)
        s = s + relb_ref[h][None]                                # rel. pos. bias

        # softmax over keys in f32; normalization deferred past attn @ V.
        s = s - jnp.max(s, axis=-1, keepdims=True)
        e = jnp.exp(s)
        den = jnp.sum(e, axis=-1, keepdims=True)

        o3 = jnp.einsum("bnm,bmd->bnd", e.astype(jnp.bfloat16), v3,
                        preferred_element_type=jnp.float32)      # (n_win, N, dh)
        o3 = o3 * pl.reciprocal(den, approx=True)

        # head-h contribution to the (lane-dense, 128-padded) output projection.
        acc = acc + jnp.dot(o3.reshape(rows, dh).astype(jnp.bfloat16),
                            wproj_ref[0, h], preferred_element_type=jnp.float32)

    o_ref[0] = (acc + bproj_ref[0]).astype(o_ref.dtype)


# ------------------------------- wrapper ------------------------------------ #
def window_attn_fused(m, p,
                      w_m_qkv, m_qkv_bias, w_p_qkv, p_qkv_bias,
                      m_scale_eff, p_scale_eff, rel_bias,
                      w_m_proj, b_m_proj, w_p_proj, b_p_proj,
                      num_heads, window_tile=None):
    """m, p: (B_, N, C) float32. Weights in PyTorch (out, in) layout."""
    B_, N, C = m.shape
    H = num_heads
    dh = C // H
    R = B_ * N
    CP = ((C + 127) // 128) * 128      # lane-dense padded proj output width

    # ---- window tiling (second grid axis): bound per-step VMEM and let
    #      BlockSpec double-buffer the x/out DMAs at large B_.  At tiny B_ this
    #      picks the whole stream (biggest tile amortizes per-step overhead). ----
    if window_tile is None:
        budget = 24 * 1024 * 1024
        def per_step_bytes(tw):
            rows = tw * N
            return (2 * rows * C * 2 + 2 * rows * CP * 4 + rows * 3 * C * 4
                    + tw * N * N * 16 + 3 * H * C * dh * 2 + H * dh * CP * 2
                    + H * N * N * 4 + 2 * CP * 4)
        window_tile = 1
        for tw in range(B_, 0, -1):
            if B_ % tw == 0 and per_step_bytes(tw) <= budget:
                window_tile = tw
                break
    assert B_ % window_tile == 0
    nwt = B_ // window_tile
    rows_blk = window_tile * N

    # ------------- wrapper-side layout plumbing (cheap XLA ops) -------------- #
    x = jnp.stack([m, p], axis=0).reshape(2, R, C).astype(jnp.bfloat16)

    def split_qkv(w):                    # (3C, C) torch (out,in) -> 3x (H, C, dh)
        wt = w.T                         # (C, 3C)
        def per_head(cols):              # (C, C) -> (H, C, dh)
            return jnp.transpose(cols.reshape(C, H, dh), (1, 0, 2))
        return (per_head(wt[:, 0:C]), per_head(wt[:, C:2 * C]),
                per_head(wt[:, 2 * C:3 * C]))

    mq, mk, mv = split_qkv(w_m_qkv)
    pq, pk, pv = split_qkv(w_p_qkv)
    wq = jnp.stack([mq, pq], 0).astype(jnp.bfloat16)          # (2, H, C, dh)
    wk = jnp.stack([mk, pk], 0).astype(jnp.bfloat16)
    wv = jnp.stack([mv, pv], 0).astype(jnp.bfloat16)

    def split_bias(b):                   # (3C,) -> per-head q / v bias (H, 1, dh)
        b3 = b.reshape(3, C)
        return b3[0].reshape(H, 1, dh), b3[2].reshape(H, 1, dh)

    mbq, mbv = split_bias(m_qkv_bias)
    pbq, pbv = split_bias(p_qkv_bias)
    bq = jnp.stack([mbq, pbq], 0).astype(jnp.float32)         # (2, H, 1, dh)
    bv = jnp.stack([mbv, pbv], 0).astype(jnp.float32)

    # per-(stream, head) effective logit scales -> SMEM scalars
    scale = jnp.stack([m_scale_eff, p_scale_eff], 0).astype(jnp.float32)   # (2, H)

    relb = rel_bias.astype(jnp.float32)                       # (H, N, N), shared

    def split_proj(w):                   # (C, C) torch (out,in) -> (H, dh, CP) of W^T
        wt = jnp.pad(w.T, ((0, 0), (0, CP - C)))
        return wt.reshape(H, dh, CP)

    wproj = jnp.stack([split_proj(w_m_proj), split_proj(w_p_proj)],
                      0).astype(jnp.bfloat16)                  # (2, H, dh, CP)
    bproj = jnp.pad(jnp.stack([b_m_proj, b_p_proj], 0),
                    ((0, 0), (0, CP - C))).reshape(2, 1, CP).astype(jnp.float32)

    # ---- advisory cost estimate so XLA schedules surrounding ops around us ----
    flops = 2 * (2 * R * C * 3 * C + 4 * B_ * H * N * N * dh + 2 * R * C * CP)
    transcendentals = 2 * (B_ * H * N * N + 2 * R * H + B_ * H * N)
    def _nbytes(a):
        return int(np.prod(a.shape)) * a.dtype.itemsize
    bytes_accessed = (sum(_nbytes(a) for a in
                          (x, wq, wk, wv, bq, bv, scale, relb, wproj, bproj))
                      + 2 * R * CP * 4)

    kernel = functools.partial(_fused_window_attn_kernel, num_heads=H,
                               win_len=N, head_dim=dh)

    out = pl.pallas_call(
        kernel,
        out_shape=jax.ShapeDtypeStruct((2, R, CP), jnp.float32),
        grid=(2, nwt),                      # (stream, window tile), both parallel
        in_specs=[
            pl.BlockSpec((1, rows_blk, C), lambda s, w: (s, w, 0)),       # x tile
            pl.BlockSpec((1, H, C, dh), lambda s, w: (s, 0, 0, 0)),       # Wq per head
            pl.BlockSpec((1, H, C, dh), lambda s, w: (s, 0, 0, 0)),       # Wk per head
            pl.BlockSpec((1, H, C, dh), lambda s, w: (s, 0, 0, 0)),       # Wv per head
            pl.BlockSpec((1, H, 1, dh), lambda s, w: (s, 0, 0, 0)),       # q bias
            pl.BlockSpec((1, H, 1, dh), lambda s, w: (s, 0, 0, 0)),       # v bias
            pl.BlockSpec(memory_space=pltpu.MemorySpace.SMEM),            # logit scales
            pl.BlockSpec((H, N, N), lambda s, w: (0, 0, 0)),              # rel-pos bias (shared)
            pl.BlockSpec((1, H, dh, CP), lambda s, w: (s, 0, 0, 0)),      # Wproj^T per head (padded)
            pl.BlockSpec((1, 1, CP), lambda s, w: (s, 0, 0)),             # proj bias (padded)
        ],
        out_specs=pl.BlockSpec((1, rows_blk, CP), lambda s, w: (s, w, 0)),
        compiler_params=pltpu.CompilerParams(
            dimension_semantics=("parallel", "parallel"),   # v7x: stream per TC
            vmem_limit_bytes=32 * 1024 * 1024),
        cost_estimate=pl.CostEstimate(flops=flops,
                                      transcendentals=transcendentals,
                                      bytes_accessed=bytes_accessed),
    )(x, wq, wk, wv, bq, bv, scale, relb, wproj, bproj)

    out = out[:, :, :C].reshape(2, B_, N, C)   # drop the lane-dense store padding
    return out[0], out[1]


# --------------------------- plain-JAX glue -------------------------------- #
def make_relative_tables(window_size):
    """Reproduce relative_coords_table and relative_position_index buffers."""
    Wh, Ww = window_size
    ch = np.arange(-(Wh - 1), Wh, dtype=np.float32)
    cw = np.arange(-(Ww - 1), Ww, dtype=np.float32)
    table = np.stack(np.meshgrid(ch, cw, indexing="ij"), axis=0)   # (2, 2Wh-1, 2Ww-1)
    table = table.transpose(1, 2, 0)[None].copy()                  # (1, 2Wh-1, 2Ww-1, 2)
    table[..., 0] /= (Wh - 1)
    table[..., 1] /= (Ww - 1)
    table *= 8.0
    table = np.sign(table) * np.log2(np.abs(table) + 1.0) / np.log2(8.0)

    coords = np.stack(np.meshgrid(np.arange(Wh), np.arange(Ww), indexing="ij"))
    cf = coords.reshape(2, -1)
    rel = cf[:, :, None] - cf[:, None, :]
    rel = rel.transpose(1, 2, 0).astype(np.int64).copy()
    rel[..., 0] += Wh - 1
    rel[..., 1] += Ww - 1
    rel[..., 0] *= 2 * Ww - 1
    index = rel.sum(-1)                                            # (Wh*Ww, Wh*Ww)
    return jnp.asarray(table, jnp.float32), jnp.asarray(index, jnp.int32)


def relative_position_bias(table, index, w1, b1, w2, N, num_heads):
    """cpb_mlp (Linear 2->512, ReLU, Linear 512->H) then 16*sigmoid gather."""
    t = table.reshape(-1, 2)
    h = jax.nn.relu(t @ w1.T + b1)
    rpbt = h @ w2.T                                                # (L, H)
    rpb = rpbt[index.reshape(-1)].reshape(N, N, num_heads)
    rpb = jnp.transpose(rpb, (2, 0, 1))                            # (H, N, N)
    return 16.0 * jax.nn.sigmoid(rpb)


# ------------------------- pure-JAX reference ------------------------------ #
def reference_stream(x, w_qkv, qkv_bias, scale_eff, rel_bias, w_proj, b_proj,
                     num_heads):
    """Reference with the same forward semantics (coefs=None, mask=None) and the
    same bf16-matmul / f32-softmax precision choices as the Pallas kernel."""
    B, N, C = x.shape
    H = num_heads
    dh = C // H
    bf, f32 = jnp.bfloat16, jnp.float32

    qkv = jnp.einsum("bnc,cd->bnd", x.astype(bf), w_qkv.T.astype(bf),
                     preferred_element_type=f32) + qkv_bias
    qkv = qkv.reshape(B, N, 3, H, dh).transpose(2, 0, 3, 1, 4)
    q, k, v = qkv[0], qkv[1], qkv[2]

    def l2n(t):
        return t * jax.lax.rsqrt(
            jnp.maximum(jnp.sum(t * t, -1, keepdims=True), 1e-24))

    qn = l2n(q) * scale_eff[None, :, None, None]
    kn = l2n(k)
    attn = jnp.einsum("bhnd,bhmd->bhnm", qn.astype(bf), kn.astype(bf),
                      preferred_element_type=f32)
    attn = attn + rel_bias[None]
    attn = attn - jnp.max(attn, -1, keepdims=True)
    e = jnp.exp(attn)
    s = jnp.sum(e, -1, keepdims=True)
    o = jnp.einsum("bhnm,bhmd->bhnd", e.astype(bf), v.astype(bf),
                   preferred_element_type=f32) / s
    o = o.transpose(0, 2, 1, 3).reshape(B, N, C)
    return jnp.einsum("bnc,cd->bnd", o.astype(bf), w_proj.T.astype(bf),
                      preferred_element_type=f32) + b_proj


# --------------------------------- main ------------------------------------ #
if __name__ == "__main__":
    B_, num_heads, C = 2, 4, 32
    window_size = (4, 4)
    N = window_size[0] * window_size[1]

    key = jax.random.PRNGKey(0)
    ks = jax.random.split(key, 16)
    sc = 1.0 / np.sqrt(C)

    # Parameters (deterministic synthetic init; shapes match nn.Module __init__)
    w_m_qkv = jax.random.normal(ks[0], (3 * C, C), jnp.float32) * sc
    w_p_qkv = jax.random.normal(ks[1], (3 * C, C), jnp.float32) * sc
    m_q_bias = jax.random.normal(ks[2], (C,), jnp.float32) * 0.05
    m_v_bias = jax.random.normal(ks[3], (C,), jnp.float32) * 0.05
    p_q_bias = jax.random.normal(ks[4], (C,), jnp.float32) * 0.05
    p_v_bias = jax.random.normal(ks[5], (C,), jnp.float32) * 0.05
    w_m_proj = jax.random.normal(ks[6], (C, C), jnp.float32) * sc
    b_m_proj = jax.random.normal(ks[7], (C,), jnp.float32) * 0.05
    w_p_proj = jax.random.normal(ks[8], (C, C), jnp.float32) * sc
    b_p_proj = jax.random.normal(ks[9], (C,), jnp.float32) * 0.05
    cpb_w1 = jax.random.normal(ks[10], (512, 2), jnp.float32) * (1.0 / np.sqrt(2.0))
    cpb_b1 = jax.random.normal(ks[11], (512,), jnp.float32) * 0.05
    cpb_w2 = jax.random.normal(ks[12], (num_heads, 512), jnp.float32) * (1.0 / np.sqrt(512.0))

    # Inputs
    m = jax.random.normal(ks[13], (B_, N, C), jnp.float32)
    p = jax.random.normal(ks[14], (B_, N, C), jnp.float32)

    # qkv bias = cat(q_bias, zeros_like(v_bias), v_bias)
    m_qkv_bias = jnp.concatenate([m_q_bias, jnp.zeros_like(m_v_bias), m_v_bias])
    p_qkv_bias = jnp.concatenate([p_q_bias, jnp.zeros_like(p_v_bias), p_v_bias])

    # logit scales: log(10) params, clamp at log(1/0.01), exp.
    clamp_max = float(np.log(1.0 / 0.01))
    m_logit = jnp.full((num_heads,), float(np.log(10.0)), jnp.float32)
    p_logit = jnp.full((num_heads,), float(np.log(10.0)), jnp.float32)
    m_scale = jnp.exp(jnp.minimum(m_logit, clamp_max))
    p_scale = jnp.exp(jnp.minimum(p_logit, clamp_max))
    m_scale_eff = m_scale * m_scale   # m_attn is scaled twice in this branch
    p_scale_eff = p_scale             # p_attn is scaled once

    # relative position bias (shared cpb_mlp for both streams)
    table, index = make_relative_tables(window_size)
    rel_bias = relative_position_bias(table, index, cpb_w1, cpb_b1, cpb_w2,
                                      N, num_heads)

    # Fused Pallas kernel: both streams, all windows, in one call.
    m_out, p_out = window_attn_fused(
        m, p, w_m_qkv, m_qkv_bias, w_p_qkv, p_qkv_bias,
        m_scale_eff, p_scale_eff, rel_bias,
        w_m_proj, b_m_proj, w_p_proj, b_p_proj, num_heads)
    jax.block_until_ready((m_out, p_out))

    # Correctness check against a precision-matched pure-JAX reference.
    m_ref = reference_stream(m, w_m_qkv, m_qkv_bias, m_scale_eff, rel_bias,
                             w_m_proj, b_m_proj, num_heads)
    p_ref = reference_stream(p, w_p_qkv, p_qkv_bias, p_scale_eff, rel_bias,
                             w_p_proj, b_p_proj, num_heads)

    m_err = float(jnp.max(jnp.abs(m_out - m_ref)))
    p_err = float(jnp.max(jnp.abs(p_out - p_ref)))
    assert np.isfinite(m_err) and np.isfinite(p_err), "non-finite output"
    # Tolerance covers bf16 MXU-input rounding-order differences and the
    # approx reciprocal used for the deferred softmax normalization.
    assert m_err < 5e-2, f"m stream mismatch: {m_err}"
    assert p_err < 5e-2, f"p stream mismatch: {p_err}"

    print("KERNEL_OK")
</pallas_src>

<mosaic_0001>
module attributes {stable_mosaic.version = 11 : i64} {
  func.func @_fused_window_attn_kernel(%arg0: i32, %arg1: i32, %arg2: memref<1x32x32xbf16, #tpu.memory_space<vmem>>, %arg3: memref<1x4x32x8xbf16, #tpu.memory_space<vmem>>, %arg4: memref<1x4x32x8xbf16, #tpu.memory_space<vmem>>, %arg5: memref<1x4x32x8xbf16, #tpu.memory_space<vmem>>, %arg6: memref<1x4x1x8xf32, #tpu.memory_space<vmem>>, %arg7: memref<1x4x1x8xf32, #tpu.memory_space<vmem>>, %arg8: memref<2x4xf32, #tpu.memory_space<smem>>, %arg9: memref<4x16x16xf32, #tpu.memory_space<vmem>>, %arg10: memref<1x4x8x128xbf16, #tpu.memory_space<vmem>>, %arg11: memref<1x1x128xf32, #tpu.memory_space<vmem>>, %arg12: memref<1x32x128xf32, #tpu.memory_space<vmem>>) attributes {dimension_semantics = [#tpu.dimension_semantics<parallel>, #tpu.dimension_semantics<parallel>], iteration_bounds = array<i64: 2, 1>, scalar_prefetch = 0 : i64, scratch_operands = 0 : i64, tpu.core_type = #tpu.core_type<tc>, window_params = [{transform_indices = @transform_0, window_bounds = array<i64: 1, 32, 32>}, {transform_indices = @transform_1, window_bounds = array<i64: 1, 4, 32, 8>}, {transform_indices = @transform_2, window_bounds = array<i64: 1, 4, 32, 8>}, {transform_indices = @transform_3, window_bounds = array<i64: 1, 4, 32, 8>}, {transform_indices = @transform_4, window_bounds = array<i64: 1, 4, 1, 8>}, {transform_indices = @transform_5, window_bounds = array<i64: 1, 4, 1, 8>}, {transform_indices = @transform_6, window_bounds = array<i64: 2, 4>}, {pipeline_mode = #tpu.pipeline_mode<synchronous>, transform_indices = @transform_7, window_bounds = array<i64: 4, 16, 16>}, {transform_indices = @transform_8, window_bounds = array<i64: 1, 4, 8, 128>}, {transform_indices = @transform_9, window_bounds = array<i64: 1, 1, 128>}, {transform_indices = @transform_10, window_bounds = array<i64: 1, 32, 128>}]} {
    %c0 = arith.constant 0 : index
    %c0_0 = arith.constant 0 : index
    %c0_1 = arith.constant 0 : index
    %0 = vector.load %arg2[%c0, %c0_0, %c0_1] : memref<1x32x32xbf16, #tpu.memory_space<vmem>>, vector<1x32x32xbf16>
    %1 = vector.shape_cast %0 : vector<1x32x32xbf16> to vector<32x32xbf16>
    %cst = arith.constant 0.000000e+00 : f32
    %2 = vector.broadcast %cst : f32 to vector<32x128xf32>
    %c0_2 = arith.constant 0 : index
    %c0_3 = arith.constant 0 : index
    %c0_4 = arith.constant 0 : index
    %c0_5 = arith.constant 0 : index
    %3 = vector.load %arg3[%c0_2, %c0_3, %c0_4, %c0_5] : memref<1x4x32x8xbf16, #tpu.memory_space<vmem>>, vector<1x1x32x8xbf16>
    %4 = vector.shape_cast %3 : vector<1x1x32x8xbf16> to vector<32x8xbf16>
    %cst_6 = arith.constant dense<0.000000e+00> : vector<32x8xf32>
    %5 = tpu.matmul %1, %4, %cst_6 {dimension_numbers = #tpu.dot_dimension_numbers<[1], [0], [0], [1], [0, 0, 1, 1], [], []>} : vector<32x32xbf16>, vector<32x8xbf16>, vector<32x8xf32> -> vector<32x8xf32>
    %c0_7 = arith.constant 0 : index
    %c0_8 = arith.constant 0 : index
    %c0_9 = arith.constant 0 : index
    %c0_10 = arith.constant 0 : index
    %6 = vector.load %arg6[%c0_7, %c0_8, %c0_9, %c0_10] : memref<1x4x1x8xf32, #tpu.memory_space<vmem>>, vector<1x1x1x8xf32>
    %7 = vector.shape_cast %6 : vector<1x1x1x8xf32> to vector<1x8xf32>
    %8 = vector.broadcast %7 : vector<1x8xf32> to vector<32x8xf32>
    %9 = arith.addf %5, %8 : vector<32x8xf32>
    %c0_11 = arith.constant 0 : index
    %c0_12 = arith.constant 0 : index
    %c0_13 = arith.constant 0 : index
    %c0_14 = arith.constant 0 : index
    %10 = vector.load %arg4[%c0_11, %c0_12, %c0_13, %c0_14] : memref<1x4x32x8xbf16, #tpu.memory_space<vmem>>, vector<1x1x32x8xbf16>
    %11 = vector.shape_cast %10 : vector<1x1x32x8xbf16> to vector<32x8xbf16>
    %cst_15 = arith.constant dense<0.000000e+00> : vector<32x8xf32>
    %12 = tpu.matmul %1, %11, %cst_15 {dimension_numbers = #tpu.dot_dimension_numbers<[1], [0], [0], [1], [0, 0, 1, 1], [], []>} : vector<32x32xbf16>, vector<32x8xbf16>, vector<32x8xf32> -> vector<32x8xf32>
    %c0_16 = arith.constant 0 : index
    %c0_17 = arith.constant 0 : index
    %c0_18 = arith.constant 0 : index
    %c0_19 = arith.constant 0 : index
    %13 = vector.load %arg5[%c0_16, %c0_17, %c0_18, %c0_19] : memref<1x4x32x8xbf16, #tpu.memory_space<vmem>>, vector<1x1x32x8xbf16>
    %14 = vector.shape_cast %13 : vector<1x1x32x8xbf16> to vector<32x8xbf16>
    %cst_20 = arith.constant dense<0.000000e+00> : vector<32x8xf32>
    %15 = tpu.matmul %1, %14, %cst_20 {dimension_numbers = #tpu.dot_dimension_numbers<[1], [0], [0], [1], [0, 0, 1, 1], [], []>} : vector<32x32xbf16>, vector<32x8xbf16>, vector<32x8xf32> -> vector<32x8xf32>
    %c0_21 = arith.constant 0 : index
    %c0_22 = arith.constant 0 : index
    %c0_23 = arith.constant 0 : index
    %c0_24 = arith.constant 0 : index
    %16 = vector.load %arg7[%c0_21, %c0_22, %c0_23, %c0_24] : memref<1x4x1x8xf32, #tpu.memory_space<vmem>>, vector<1x1x1x8xf32>
    %17 = vector.shape_cast %16 : vector<1x1x1x8xf32> to vector<1x8xf32>
    %18 = vector.broadcast %17 : vector<1x8xf32> to vector<32x8xf32>
    %19 = arith.addf %15, %18 : vector<32x8xf32>
    %20 = arith.index_cast %arg0 : i32 to index
    %c0_25 = arith.constant 0 : index
    %21 = memref.load %arg8[%20, %c0_25] : memref<2x4xf32, #tpu.memory_space<smem>>
    %22 = arith.mulf %9, %9 : vector<32x8xf32>
    %cst_26 = arith.constant dense<0.000000e+00> : vector<32xf32>
    %23 = vector.multi_reduction <add>, %22, %cst_26 [1] : vector<32x8xf32> to vector<32xf32>
    %24 = vector.shape_cast %23 : vector<32xf32> to vector<32x1xf32>
    %cst_27 = arith.constant 1.000000e-24 : f32
    %25 = vector.broadcast %cst_27 : f32 to vector<32x1xf32>
    %26 = arith.maximumf %24, %25 : vector<32x1xf32>
    %27 = math.rsqrt %26 : vector<32x1xf32>
    %28 = vector.broadcast %21 : f32 to vector<32x1xf32>
    %29 = arith.mulf %27, %28 : vector<32x1xf32>
    %30 = vector.broadcast %29 : vector<32x1xf32> to vector<32x8xf32>
    %31 = arith.mulf %9, %30 : vector<32x8xf32>
    %32 = arith.mulf %12, %12 : vector<32x8xf32>
    %cst_28 = arith.constant dense<0.000000e+00> : vector<32xf32>
    %33 = vector.multi_reduction <add>, %32, %cst_28 [1] : vector<32x8xf32> to vector<32xf32>
    %34 = vector.shape_cast %33 : vector<32xf32> to vector<32x1xf32>
    %cst_29 = arith.constant 1.000000e-24 : f32
    %35 = vector.broadcast %cst_29 : f32 to vector<32x1xf32>
    %36 = arith.maximumf %34, %35 : vector<32x1xf32>
    %37 = math.rsqrt %36 : vector<32x1xf32>
    %38 = vector.broadcast %37 : vector<32x1xf32> to vector<32x8xf32>
    %39 = arith.mulf %12, %38 : vector<32x8xf32>
    %40 = vector.shape_cast %31 : vector<32x8xf32> to vector<2x16x8xf32>
    %41 = arith.truncf %40 : vector<2x16x8xf32> to vector<2x16x8xbf16>
    %42 = vector.shape_cast %39 : vector<32x8xf32> to vector<2x16x8xf32>
    %43 = arith.truncf %42 : vector<2x16x8xf32> to vector<2x16x8xbf16>
    %44 = vector.shape_cast %19 : vector<32x8xf32> to vector<2x16x8xf32>
    %45 = arith.truncf %44 : vector<2x16x8xf32> to vector<2x16x8xbf16>
    "tpu.trace_start"() <{level = 10 : i32, message = "bnd,bmd->bnm"}> : () -> ()
    %cst_30 = arith.constant dense<0.000000e+00> : vector<2x16x16xf32>
    %46 = tpu.matmul %41, %43, %cst_30 {dimension_numbers = #tpu.dot_dimension_numbers<[2], [2], [1], [1], [0, 0, 0, 1, 1, 1], [0], [0]>} : vector<2x16x8xbf16>, vector<2x16x8xbf16>, vector<2x16x16xf32> -> vector<2x16x16xf32>
    "tpu.trace_stop"() : () -> ()
    %c0_31 = arith.constant 0 : index
    %c0_32 = arith.constant 0 : index
    %c0_33 = arith.constant 0 : index
    %47 = vector.load %arg9[%c0_31, %c0_32, %c0_33] : memref<4x16x16xf32, #tpu.memory_space<vmem>>, vector<1x16x16xf32>
    %48 = vector.shape_cast %47 : vector<1x16x16xf32> to vector<16x16xf32>
    %49 = vector.shape_cast %48 : vector<16x16xf32> to vector<1x16x16xf32>
    %50 = vector.broadcast %49 : vector<1x16x16xf32> to vector<2x16x16xf32>
    %51 = arith.addf %46, %50 : vector<2x16x16xf32>
    %cst_34 = arith.constant dense<0xFF800000> : vector<2x16xf32>
    %52 = vector.multi_reduction <maximumf>, %51, %cst_34 [2] : vector<2x16x16xf32> to vector<2x16xf32>
    %53 = vector.shape_cast %52 : vector<2x16xf32> to vector<2x16x1xf32>
    %54 = vector.broadcast %53 : vector<2x16x1xf32> to vector<2x16x16xf32>
    %55 = arith.subf %51, %54 : vector<2x16x16xf32>
    %56 = math.exp %55 : vector<2x16x16xf32>
    %cst_35 = arith.constant dense<0.000000e+00> : vector<2x16xf32>
    %57 = vector.multi_reduction <add>, %56, %cst_35 [2] : vector<2x16x16xf32> to vector<2x16xf32>
    %58 = vector.shape_cast %57 : vector<2x16xf32> to vector<2x16x1xf32>
    %59 = arith.truncf %56 : vector<2x16x16xf32> to vector<2x16x16xbf16>
    "tpu.trace_start"() <{level = 10 : i32, message = "bnm,bmd->bnd"}> : () -> ()
    %cst_36 = arith.constant dense<0.000000e+00> : vector<2x16x8xf32>
    %60 = tpu.matmul %59, %45, %cst_36 {dimension_numbers = #tpu.dot_dimension_numbers<[2], [1], [1], [2], [0, 0, 0, 1, 1, 2], [0], [0]>} : vector<2x16x16xbf16>, vector<2x16x8xbf16>, vector<2x16x8xf32> -> vector<2x16x8xf32>
    "tpu.trace_stop"() : () -> ()
    %61 = tpu.reciprocal %58 {approx = true} : vector<2x16x1xf32> -> vector<2x16x1xf32>
    %62 = vector.broadcast %61 : vector<2x16x1xf32> to vector<2x16x8xf32>
    %63 = arith.mulf %60, %62 : vector<2x16x8xf32>
    %64 = vector.shape_cast %63 : vector<2x16x8xf32> to vector<32x8xf32>
    %65 = arith.truncf %64 : vector<32x8xf32> to vector<32x8xbf16>
    %c0_37 = arith.constant 0 : index
    %c0_38 = arith.constant 0 : index
    %c0_39 = arith.constant 0 : index
    %c0_40 = arith.constant 0 : index
    %66 = vector.load %arg10[%c0_37, %c0_38, %c0_39, %c0_40] : memref<1x4x8x128xbf16, #tpu.memory_space<vmem>>, vector<1x1x8x128xbf16>
    %67 = vector.shape_cast %66 : vector<1x1x8x128xbf16> to vector<8x128xbf16>
    %cst_41 = arith.constant dense<0.000000e+00> : vector<32x128xf32>
    %68 = tpu.matmul %65, %67, %cst_41 {dimension_numbers = #tpu.dot_dimension_numbers<[1], [0], [0], [1], [0, 0, 1, 1], [], []>} : vector<32x8xbf16>, vector<8x128xbf16>, vector<32x128xf32> -> vector<32x128xf32>
    %69 = arith.addf %2, %68 : vector<32x128xf32>
    %c0_42 = arith.constant 0 : index
    %c1 = arith.constant 1 : index
    %c0_43 = arith.constant 0 : index
    %c0_44 = arith.constant 0 : index
    %70 = vector.load %arg3[%c0_42, %c1, %c0_43, %c0_44] : memref<1x4x32x8xbf16, #tpu.memory_space<vmem>>, vector<1x1x32x8xbf16>
    %71 = vector.shape_cast %70 : vector<1x1x32x8xbf16> to vector<32x8xbf16>
    %cst_45 = arith.constant dense<0.000000e+00> : vector<32x8xf32>
    %72 = tpu.matmul %1, %71, %cst_45 {dimension_numbers = #tpu.dot_dimension_numbers<[1], [0], [0], [1], [0, 0, 1, 1], [], []>} : vector<32x32xbf16>, vector<32x8xbf16>, vector<32x8xf32> -> vector<32x8xf32>
    %c0_46 = arith.constant 0 : index
    %c1_47 = arith.constant 1 : index
    %c0_48 = arith.constant 0 : index
    %c0_49 = arith.constant 0 : index
    %73 = vector.load %arg6[%c0_46, %c1_47, %c0_48, %c0_49] : memref<1x4x1x8xf32, #tpu.memory_space<vmem>>, vector<1x1x1x8xf32>
    %74 = vector.shape_cast %73 : vector<1x1x1x8xf32> to vector<1x8xf32>
    %75 = vector.broadcast %74 : vector<1x8xf32> to vector<32x8xf32>
    %76 = arith.addf %72, %75 : vector<32x8xf32>
    %c0_50 = arith.constant 0 : index
    %c1_51 = arith.constant 1 : index
    %c0_52 = arith.constant 0 : index
    %c0_53 = arith.constant 0 : index
    %77 = vector.load %arg4[%c0_50, %c1_51, %c0_52, %c0_53] : memref<1x4x32x8xbf16, #tpu.memory_space<vmem>>, vector<1x1x32x8xbf16>
    %78 = vector.shape_cast %77 : vector<1x1x32x8xbf16> to vector<32x8xbf16>
    %cst_54 = arith.constant dense<0.000000e+00> : vector<32x8xf32>
    %79 = tpu.matmul %1, %78, %cst_54 {dimension_numbers = #tpu.dot_dimension_numbers<[1], [0], [0], [1], [0, 0, 1, 1], [], []>} : vector<32x32xbf16>, vector<32x8xbf16>, vector<32x8xf32> -> vector<32x8xf32>
    %c0_55 = arith.constant 0 : index
    %c1_56 = arith.constant 1 : index
    %c0_57 = arith.constant 0 : index
    %c0_58 = arith.constant 0 : index
    %80 = vector.load %arg5[%c0_55, %c1_56, %c0_57, %c0_58] : memref<1x4x32x8xbf16, #tpu.memory_space<vmem>>, vector<1x1x32x8xbf16>
    %81 = vector.shape_cast %80 : vector<1x1x32x8xbf16> to vector<32x8xbf16>
    %cst_59 = arith.constant dense<0.000000e+00> : vector<32x8xf32>
    %82 = tpu.matmul %1, %81, %cst_59 {dimension_numbers = #tpu.dot_dimension_numbers<[1], [0], [0], [1], [0, 0, 1, 1], [], []>} : vector<32x32xbf16>, vector<32x8xbf16>, vector<32x8xf32> -> vector<32x8xf32>
    %c0_60 = arith.constant 0 : index
    %c1_61 = arith.constant 1 : index
    %c0_62 = arith.constant 0 : index
    %c0_63 = arith.constant 0 : index
    %83 = vector.load %arg7[%c0_60, %c1_61, %c0_62, %c0_63] : memref<1x4x1x8xf32, #tpu.memory_space<vmem>>, vector<1x1x1x8xf32>
    %84 = vector.shape_cast %83 : vector<1x1x1x8xf32> to vector<1x8xf32>
    %85 = vector.broadcast %84 : vector<1x8xf32> to vector<32x8xf32>
    %86 = arith.addf %82, %85 : vector<32x8xf32>
    %87 = arith.index_cast %arg0 : i32 to index
    %c1_64 = arith.constant 1 : index
    %88 = memref.load %arg8[%87, %c1_64] : memref<2x4xf32, #tpu.memory_space<smem>>
    %89 = arith.mulf %76, %76 : vector<32x8xf32>
    %cst_65 = arith.constant dense<0.000000e+00> : vector<32xf32>
    %90 = vector.multi_reduction <add>, %89, %cst_65 [1] : vector<32x8xf32> to vector<32xf32>
    %91 = vector.shape_cast %90 : vector<32xf32> to vector<32x1xf32>
    %cst_66 = arith.constant 1.000000e-24 : f32
    %92 = vector.broadcast %cst_66 : f32 to vector<32x1xf32>
    %93 = arith.maximumf %91, %92 : vector<32x1xf32>
    %94 = math.rsqrt %93 : vector<32x1xf32>
    %95 = vector.broadcast %88 : f32 to vector<32x1xf32>
    %96 = arith.mulf %94, %95 : vector<32x1xf32>
    %97 = vector.broadcast %96 : vector<32x1xf32> to vector<32x8xf32>
    %98 = arith.mulf %76, %97 : vector<32x8xf32>
    %99 = arith.mulf %79, %79 : vector<32x8xf32>
    %cst_67 = arith.constant dense<0.000000e+00> : vector<32xf32>
    %100 = vector.multi_reduction <add>, %99, %cst_67 [1] : vector<32x8xf32> to vector<32xf32>
    %101 = vector.shape_cast %100 : vector<32xf32> to vector<32x1xf32>
    %cst_68 = arith.constant 1.000000e-24 : f32
    %102 = vector.broadcast %cst_68 : f32 to vector<32x1xf32>
    %103 = arith.maximumf %101, %102 : vector<32x1xf32>
    %104 = math.rsqrt %103 : vector<32x1xf32>
    %105 = vector.broadcast %104 : vector<32x1xf32> to vector<32x8xf32>
    %106 = arith.mulf %79, %105 : vector<32x8xf32>
    %107 = vector.shape_cast %98 : vector<32x8xf32> to vector<2x16x8xf32>
    %108 = arith.truncf %107 : vector<2x16x8xf32> to vector<2x16x8xbf16>
    %109 = vector.shape_cast %106 : vector<32x8xf32> to vector<2x16x8xf32>
    %110 = arith.truncf %109 : vector<2x16x8xf32> to vector<2x16x8xbf16>
    %111 = vector.shape_cast %86 : vector<32x8xf32> to vector<2x16x8xf32>
    %112 = arith.truncf %111 : vector<2x16x8xf32> to vector<2x16x8xbf16>
    "tpu.trace_start"() <{level = 10 : i32, message = "bnd,bmd->bnm"}> : () -> ()
    %cst_69 = arith.constant dense<0.000000e+00> : vector<2x16x16xf32>
    %113 = tpu.matmul %108, %110, %cst_69 {dimension_numbers = #tpu.dot_dimension_numbers<[2], [2], [1], [1], [0, 0, 0, 1, 1, 1], [0], [0]>} : vector<2x16x8xbf16>, vector<2x16x8xbf16>, vector<2x16x16xf32> -> vector<2x16x16xf32>
    "tpu.trace_stop"() : () -> ()
    %c1_70 = arith.constant 1 : index
    %c0_71 = arith.constant 0 : index
    %c0_72 = arith.constant 0 : index
    %114 = vector.load %arg9[%c1_70, %c0_71, %c0_72] : memref<4x16x16xf32, #tpu.memory_space<vmem>>, vector<1x16x16xf32>
    %115 = vector.shape_cast %114 : vector<1x16x16xf32> to vector<16x16xf32>
    %116 = vector.shape_cast %115 : vector<16x16xf32> to vector<1x16x16xf32>
    %117 = vector.broadcast %116 : vector<1x16x16xf32> to vector<2x16x16xf32>
    %118 = arith.addf %113, %117 : vector<2x16x16xf32>
    %cst_73 = arith.constant dense<0xFF800000> : vector<2x16xf32>
    %119 = vector.multi_reduction <maximumf>, %118, %cst_73 [2] : vector<2x16x16xf32> to vector<2x16xf32>
    %120 = vector.shape_cast %119 : vector<2x16xf32> to vector<2x16x1xf32>
    %121 = vector.broadcast %120 : vector<2x16x1xf32> to vector<2x16x16xf32>
    %122 = arith.subf %118, %121 : vector<2x16x16xf32>
    %123 = math.exp %122 : vector<2x16x16xf32>
    %cst_74 = arith.constant dense<0.000000e+00> : vector<2x16xf32>
    %124 = vector.multi_reduction <add>, %123, %cst_74 [2] : vector<2x16x16xf32> to vector<2x16xf32>
    %125 = vector.shape_cast %124 : vector<2x16xf32> to vector<2x16x1xf32>
    %126 = arith.truncf %123 : vector<2x16x16xf32> to vector<2x16x16xbf16>
    "tpu.trace_start"() <{level = 10 : i32, message = "bnm,bmd->bnd"}> : () -> ()
    %cst_75 = arith.constant dense<0.000000e+00> : vector<2x16x8xf32>
    %127 = tpu.matmul %126, %112, %cst_75 {dimension_numbers = #tpu.dot_dimension_numbers<[2], [1], [1], [2], [0, 0, 0, 1, 1, 2], [0], [0]>} : vector<2x16x16xbf16>, vector<2x16x8xbf16>, vector<2x16x8xf32> -> vector<2x16x8xf32>
    "tpu.trace_stop"() : () -> ()
    %128 = tpu.reciprocal %125 {approx = true} : vector<2x16x1xf32> -> vector<2x16x1xf32>
    %129 = vector.broadcast %128 : vector<2x16x1xf32> to vector<2x16x8xf32>
    %130 = arith.mulf %127, %129 : vector<2x16x8xf32>
    %131 = vector.shape_cast %130 : vector<2x16x8xf32> to vector<32x8xf32>
    %132 = arith.truncf %131 : vector<32x8xf32> to vector<32x8xbf16>
    %c0_76 = arith.constant 0 : index
    %c1_77 = arith.constant 1 : index
    %c0_78 = arith.constant 0 : index
    %c0_79 = arith.constant 0 : index
    %133 = vector.load %arg10[%c0_76, %c1_77, %c0_78, %c0_79] : memref<1x4x8x128xbf16, #tpu.memory_space<vmem>>, vector<1x1x8x128xbf16>
    %134 = vector.shape_cast %133 : vector<1x1x8x128xbf16> to vector<8x128xbf16>
    %cst_80 = arith.constant dense<0.000000e+00> : vector<32x128xf32>
    %135 = tpu.matmul %132, %134, %cst_80 {dimension_numbers = #tpu.dot_dimension_numbers<[1], [0], [0], [1], [0, 0, 1, 1], [], []>} : vector<32x8xbf16>, vector<8x128xbf16>, vector<32x128xf32> -> vector<32x128xf32>
    %136 = arith.addf %69, %135 : vector<32x128xf32>
    %c0_81 = arith.constant 0 : index
    %c2 = arith.constant 2 : index
    %c0_82 = arith.constant 0 : index
    %c0_83 = arith.constant 0 : index
    %137 = vector.load %arg3[%c0_81, %c2, %c0_82, %c0_83] : memref<1x4x32x8xbf16, #tpu.memory_space<vmem>>, vector<1x1x32x8xbf16>
    %138 = vector.shape_cast %137 : vector<1x1x32x8xbf16> to vector<32x8xbf16>
    %cst_84 = arith.constant dense<0.000000e+00> : vector<32x8xf32>
    %139 = tpu.matmul %1, %138, %cst_84 {dimension_numbers = #tpu.dot_dimension_numbers<[1], [0], [0], [1], [0, 0, 1, 1], [], []>} : vector<32x32xbf16>, vector<32x8xbf16>, vector<32x8xf32> -> vector<32x8xf32>
    %c0_85 = arith.constant 0 : index
    %c2_86 = arith.constant 2 : index
    %c0_87 = arith.constant 0 : index
    %c0_88 = arith.constant 0 : index
    %140 = vector.load %arg6[%c0_85, %c2_86, %c0_87, %c0_88] : memref<1x4x1x8xf32, #tpu.memory_space<vmem>>, vector<1x1x1x8xf32>
    %141 = vector.shape_cast %140 : vector<1x1x1x8xf32> to vector<1x8xf32>
    %142 = vector.broadcast %141 : vector<1x8xf32> to vector<32x8xf32>
    %143 = arith.addf %139, %142 : vector<32x8xf32>
    %c0_89 = arith.constant 0 : index
    %c2_90 = arith.constant 2 : index
    %c0_91 = arith.constant 0 : index
    %c0_92 = arith.constant 0 : index
    %144 = vector.load %arg4[%c0_89, %c2_90, %c0_91, %c0_92] : memref<1x4x32x8xbf16, #tpu.memory_space<vmem>>, vector<1x1x32x8xbf16>
    %145 = vector.shape_cast %144 : vector<1x1x32x8xbf16> to vector<32x8xbf16>
    %cst_93 = arith.constant dense<0.000000e+00> : vector<32x8xf32>
    %146 = tpu.matmul %1, %145, %cst_93 {dimension_numbers = #tpu.dot_dimension_numbers<[1], [0], [0], [1], [0, 0, 1, 1], [], []>} : vector<32x32xbf16>, vector<32x8xbf16>, vector<32x8xf32> -> vector<32x8xf32>
    %c0_94 = arith.constant 0 : index
    %c2_95 = arith.constant 2 : index
    %c0_96 = arith.constant 0 : index
    %c0_97 = arith.constant 0 : index
    %147 = vector.load %arg5[%c0_94, %c2_95, %c0_96, %c0_97] : memref<1x4x32x8xbf16, #tpu.memory_space<vmem>>, vector<1x1x32x8xbf16>
    %148 = vector.shape_cast %147 : vector<1x1x32x8xbf16> to vector<32x8xbf16>
    %cst_98 = arith.constant dense<0.000000e+00> : vector<32x8xf32>
    %149 = tpu.matmul %1, %148, %cst_98 {dimension_numbers = #tpu.dot_dimension_numbers<[1], [0], [0], [1], [0, 0, 1, 1], [], []>} : vector<32x32xbf16>, vector<32x8xbf16>, vector<32x8xf32> -> vector<32x8xf32>
    %c0_99 = arith.constant 0 : index
    %c2_100 = arith.constant 2 : index
    %c0_101 = arith.constant 0 : index
    %c0_102 = arith.constant 0 : index
    %150 = vector.load %arg7[%c0_99, %c2_100, %c0_101, %c0_102] : memref<1x4x1x8xf32, #tpu.memory_space<vmem>>, vector<1x1x1x8xf32>
    %151 = vector.shape_cast %150 : vector<1x1x1x8xf32> to vector<1x8xf32>
    %152 = vector.broadcast %151 : vector<1x8xf32> to vector<32x8xf32>
    %153 = arith.addf %149, %152 : vector<32x8xf32>
    %154 = arith.index_cast %arg0 : i32 to index
    %c2_103 = arith.constant 2 : index
    %155 = memref.load %arg8[%154, %c2_103] : memref<2x4xf32, #tpu.memory_space<smem>>
    %156 = arith.mulf %143, %143 : vector<32x8xf32>
    %cst_104 = arith.constant dense<0.000000e+00> : vector<32xf32>
    %157 = vector.multi_reduction <add>, %156, %cst_104 [1] : vector<32x8xf32> to vector<32xf32>
    %158 = vector.shape_cast %157 : vector<32xf32> to vector<32x1xf32>
    %cst_105 = arith.constant 1.000000e-24 : f32
    %159 = vector.broadcast %cst_105 : f32 to vector<32x1xf32>
    %160 = arith.maximumf %158, %159 : vector<32x1xf32>
    %161 = math.rsqrt %160 : vector<32x1xf32>
    %162 = vector.broadcast %155 : f32 to vector<32x1xf32>
    %163 = arith.mulf %161, %162 : vector<32x1xf32>
    %164 = vector.broadcast %163 : vector<32x1xf32> to vector<32x8xf32>
    %165 = arith.mulf %143, %164 : vector<32x8xf32>
    %166 = arith.mulf %146, %146 : vector<32x8xf32>
    %cst_106 = arith.constant dense<0.000000e+00> : vector<32xf32>
    %167 = vector.multi_reduction <add>, %166, %cst_106 [1] : vector<32x8xf32> to vector<32xf32>
    %168 = vector.shape_cast %167 : vector<32xf32> to vector<32x1xf32>
    %cst_107 = arith.constant 1.000000e-24 : f32
    %169 = vector.broadcast %cst_107 : f32 to vector<32x1xf32>
    %170 = arith.maximumf %168, %169 : vector<32x1xf32>
    %171 = math.rsqrt %170 : vector<32x1xf32>
    %172 = vector.broadcast %171 : vector<32x1xf32> to vector<32x8xf32>
    %173 = arith.mulf %146, %172 : vector<32x8xf32>
    %174 = vector.shape_cast %165 : vector<32x8xf32> to vector<2x16x8xf32>
    %175 = arith.truncf %174 : vector<2x16x8xf32> to vector<2x16x8xbf16>
    %176 = vector.shape_cast %173 : vector<32x8xf32> to vector<2x16x8xf32>
    %177 = arith.truncf %176 : vector<2x16x8xf32> to vector<2x16x8xbf16>
    %178 = vector.shape_cast %153 : vector<32x8xf32> to vector<2x16x8xf32>
    %179 = arith.truncf %178 : vector<2x16x8xf32> to vector<2x16x8xbf16>
    "tpu.trace_start"() <{level = 10 : i32, message = "bnd,bmd->bnm"}> : () -> ()
    %cst_108 = arith.constant dense<0.000000e+00> : vector<2x16x16xf32>
    %180 = tpu.matmul %175, %177, %cst_108 {dimension_numbers = #tpu.dot_dimension_numbers<[2], [2], [1], [1], [0, 0, 0, 1, 1, 1], [0], [0]>} : vector<2x16x8xbf16>, vector<2x16x8xbf16>, vector<2x16x16xf32> -> vector<2x16x16xf32>
    "tpu.trace_stop"() : () -> ()
    %c2_109 = arith.constant 2 : index
    %c0_110 = arith.constant 0 : index
    %c0_111 = arith.constant 0 : index
    %181 = vector.load %arg9[%c2_109, %c0_110, %c0_111] : memref<4x16x16xf32, #tpu.memory_space<vmem>>, vector<1x16x16xf32>
    %182 = vector.shape_cast %181 : vector<1x16x16xf32> to vector<16x16xf32>
    %183 = vector.shape_cast %182 : vector<16x16xf32> to vector<1x16x16xf32>
    %184 = vector.broadcast %183 : vector<1x16x16xf32> to vector<2x16x16xf32>
    %185 = arith.addf %180, %184 : vector<2x16x16xf32>
    %cst_112 = arith.constant dense<0xFF800000> : vector<2x16xf32>
    %186 = vector.multi_reduction <maximumf>, %185, %cst_112 [2] : vector<2x16x16xf32> to vector<2x16xf32>
    %187 = vector.shape_cast %186 : vector<2x16xf32> to vector<2x16x1xf32>
    %188 = vector.broadcast %187 : vector<2x16x1xf32> to vector<2x16x16xf32>
    %189 = arith.subf %185, %188 : vector<2x16x16xf32>
    %190 = math.exp %189 : vector<2x16x16xf32>
    %cst_113 = arith.constant dense<0.000000e+00> : vector<2x16xf32>
    %191 = vector.multi_reduction <add>, %190, %cst_113 [2] : vector<2x16x16xf32> to vector<2x16xf32>
    %192 = vector.shape_cast %191 : vector<2x16xf32> to vector<2x16x1xf32>
    %193 = arith.truncf %190 : vector<2x16x16xf32> to vector<2x16x16xbf16>
    "tpu.trace_start"() <{level = 10 : i32, message = "bnm,bmd->bnd"}> : () -> ()
    %cst_114 = arith.constant dense<0.000000e+00> : vector<2x16x8xf32>
    %194 = tpu.matmul %193, %179, %cst_114 {dimension_numbers = #tpu.dot_dimension_numbers<[2], [1], [1], [2], [0, 0, 0, 1, 1, 2], [0], [0]>} : vector<2x16x16xbf16>, vector<2x16x8xbf16>, vector<2x16x8xf32> -> vector<2x16x8xf32>
    "tpu.trace_stop"() : () -> ()
    %195 = tpu.reciprocal %192 {approx = true} : vector<2x16x1xf32> -> vector<2x16x1xf32>
    %196 = vector.broadcast %195 : vector<2x16x1xf32> to vector<2x16x8xf32>
    %197 = arith.mulf %194, %196 : vector<2x16x8xf32>
    %198 = vector.shape_cast %197 : vector<2x16x8xf32> to vector<32x8xf32>
    %199 = arith.truncf %198 : vector<32x8xf32> to vector<32x8xbf16>
    %c0_115 = arith.constant 0 : index
    %c2_116 = arith.constant 2 : index
    %c0_117 = arith.constant 0 : index
    %c0_118 = arith.constant 0 : index
    %200 = vector.load %arg10[%c0_115, %c2_116, %c0_117, %c0_118] : memref<1x4x8x128xbf16, #tpu.memory_space<vmem>>, vector<1x1x8x128xbf16>
    %201 = vector.shape_cast %200 : vector<1x1x8x128xbf16> to vector<8x128xbf16>
    %cst_119 = arith.constant dense<0.000000e+00> : vector<32x128xf32>
    %202 = tpu.matmul %199, %201, %cst_119 {dimension_numbers = #tpu.dot_dimension_numbers<[1], [0], [0], [1], [0, 0, 1, 1], [], []>} : vector<32x8xbf16>, vector<8x128xbf16>, vector<32x128xf32> -> vector<32x128xf32>
    %203 = arith.addf %136, %202 : vector<32x128xf32>
    %c0_120 = arith.constant 0 : index
    %c3 = arith.constant 3 : index
    %c0_121 = arith.constant 0 : index
    %c0_122 = arith.constant 0 : index
    %204 = vector.load %arg3[%c0_120, %c3, %c0_121, %c0_122] : memref<1x4x32x8xbf16, #tpu.memory_space<vmem>>, vector<1x1x32x8xbf16>
    %205 = vector.shape_cast %204 : vector<1x1x32x8xbf16> to vector<32x8xbf16>
    %cst_123 = arith.constant dense<0.000000e+00> : vector<32x8xf32>
    %206 = tpu.matmul %1, %205, %cst_123 {dimension_numbers = #tpu.dot_dimension_numbers<[1], [0], [0], [1], [0, 0, 1, 1], [], []>} : vector<32x32xbf16>, vector<32x8xbf16>, vector<32x8xf32> -> vector<32x8xf32>
    %c0_124 = arith.constant 0 : index
    %c3_125 = arith.constant 3 : index
    %c0_126 = arith.constant 0 : index
    %c0_127 = arith.constant 0 : index
    %207 = vector.load %arg6[%c0_124, %c3_125, %c0_126, %c0_127] : memref<1x4x1x8xf32, #tpu.memory_space<vmem>>, vector<1x1x1x8xf32>
    %208 = vector.shape_cast %207 : vector<1x1x1x8xf32> to vector<1x8xf32>
    %209 = vector.broadcast %208 : vector<1x8xf32> to vector<32x8xf32>
    %210 = arith.addf %206, %209 : vector<32x8xf32>
    %c0_128 = arith.constant 0 : index
    %c3_129 = arith.constant 3 : index
    %c0_130 = arith.constant 0 : index
    %c0_131 = arith.constant 0 : index
    %211 = vector.load %arg4[%c0_128, %c3_129, %c0_130, %c0_131] : memref<1x4x32x8xbf16, #tpu.memory_space<vmem>>, vector<1x1x32x8xbf16>
    %212 = vector.shape_cast %211 : vector<1x1x32x8xbf16> to vector<32x8xbf16>
    %cst_132 = arith.constant dense<0.000000e+00> : vector<32x8xf32>
    %213 = tpu.matmul %1, %212, %cst_132 {dimension_numbers = #tpu.dot_dimension_numbers<[1], [0], [0], [1], [0, 0, 1, 1], [], []>} : vector<32x32xbf16>, vector<32x8xbf16>, vector<32x8xf32> -> vector<32x8xf32>
    %c0_133 = arith.constant 0 : index
    %c3_134 = arith.constant 3 : index
    %c0_135 = arith.constant 0 : index
    %c0_136 = arith.constant 0 : index
    %214 = vector.load %arg5[%c0_133, %c3_134, %c0_135, %c0_136] : memref<1x4x32x8xbf16, #tpu.memory_space<vmem>>, vector<1x1x32x8xbf16>
    %215 = vector.shape_cast %214 : vector<1x1x32x8xbf16> to vector<32x8xbf16>
    %cst_137 = arith.constant dense<0.000000e+00> : vector<32x8xf32>
    %216 = tpu.matmul %1, %215, %cst_137 {dimension_numbers = #tpu.dot_dimension_numbers<[1], [0], [0], [1], [0, 0, 1, 1], [], []>} : vector<32x32xbf16>, vector<32x8xbf16>, vector<32x8xf32> -> vector<32x8xf32>
    %c0_138 = arith.constant 0 : index
    %c3_139 = arith.constant 3 : index
    %c0_140 = arith.constant 0 : index
    %c0_141 = arith.constant 0 : index
    %217 = vector.load %arg7[%c0_138, %c3_139, %c0_140, %c0_141] : memref<1x4x1x8xf32, #tpu.memory_space<vmem>>, vector<1x1x1x8xf32>
    %218 = vector.shape_cast %217 : vector<1x1x1x8xf32> to vector<1x8xf32>
    %219 = vector.broadcast %218 : vector<1x8xf32> to vector<32x8xf32>
    %220 = arith.addf %216, %219 : vector<32x8xf32>
    %221 = arith.index_cast %arg0 : i32 to index
    %c3_142 = arith.constant 3 : index
    %222 = memref.load %arg8[%221, %c3_142] : memref<2x4xf32, #tpu.memory_space<smem>>
    %223 = arith.mulf %210, %210 : vector<32x8xf32>
    %cst_143 = arith.constant dense<0.000000e+00> : vector<32xf32>
    %224 = vector.multi_reduction <add>, %223, %cst_143 [1] : vector<32x8xf32> to vector<32xf32>
    %225 = vector.shape_cast %224 : vector<32xf32> to vector<32x1xf32>
    %cst_144 = arith.constant 1.000000e-24 : f32
    %226 = vector.broadcast %cst_144 : f32 to vector<32x1xf32>
    %227 = arith.maximumf %225, %226 : vector<32x1xf32>
    %228 = math.rsqrt %227 : vector<32x1xf32>
    %229 = vector.broadcast %222 : f32 to vector<32x1xf32>
    %230 = arith.mulf %228, %229 : vector<32x1xf32>
    %231 = vector.broadcast %230 : vector<32x1xf32> to vector<32x8xf32>
    %232 = arith.mulf %210, %231 : vector<32x8xf32>
    %233 = arith.mulf %213, %213 : vector<32x8xf32>
    %cst_145 = arith.constant dense<0.000000e+00> : vector<32xf32>
    %234 = vector.multi_reduction <add>, %233, %cst_145 [1] : vector<32x8xf32> to vector<32xf32>
    %235 = vector.shape_cast %234 : vector<32xf32> to vector<32x1xf32>
    %cst_146 = arith.constant 1.000000e-24 : f32
    %236 = vector.broadcast %cst_146 : f32 to vector<32x1xf32>
    %237 = arith.maximumf %235, %236 : vector<32x1xf32>
    %238 = math.rsqrt %237 : vector<32x1xf32>
    %239 = vector.broadcast %238 : vector<32x1xf32> to vector<32x8xf32>
    %240 = arith.mulf %213, %239 : vector<32x8xf32>
    %241 = vector.shape_cast %232 : vector<32x8xf32> to vector<2x16x8xf32>
    %242 = arith.truncf %241 : vector<2x16x8xf32> to vector<2x16x8xbf16>
    %243 = vector.shape_cast %240 : vector<32x8xf32> to vector<2x16x8xf32>
    %244 = arith.truncf %243 : vector<2x16x8xf32> to vector<2x16x8xbf16>
    %245 = vector.shape_cast %220 : vector<32x8xf32> to vector<2x16x8xf32>
    %246 = arith.truncf %245 : vector<2x16x8xf32> to vector<2x16x8xbf16>
    "tpu.trace_start"() <{level = 10 : i32, message = "bnd,bmd->bnm"}> : () -> ()
    %cst_147 = arith.constant dense<0.000000e+00> : vector<2x16x16xf32>
    %247 = tpu.matmul %242, %244, %cst_147 {dimension_numbers = #tpu.dot_dimension_numbers<[2], [2], [1], [1], [0, 0, 0, 1, 1, 1], [0], [0]>} : vector<2x16x8xbf16>, vector<2x16x8xbf16>, vector<2x16x16xf32> -> vector<2x16x16xf32>
    "tpu.trace_stop"() : () -> ()
    %c3_148 = arith.constant 3 : index
    %c0_149 = arith.constant 0 : index
    %c0_150 = arith.constant 0 : index
    %248 = vector.load %arg9[%c3_148, %c0_149, %c0_150] : memref<4x16x16xf32, #tpu.memory_space<vmem>>, vector<1x16x16xf32>
    %249 = vector.shape_cast %248 : vector<1x16x16xf32> to vector<16x16xf32>
    %250 = vector.shape_cast %249 : vector<16x16xf32> to vector<1x16x16xf32>
    %251 = vector.broadcast %250 : vector<1x16x16xf32> to vector<2x16x16xf32>
    %252 = arith.addf %247, %251 : vector<2x16x16xf32>
    %cst_151 = arith.constant dense<0xFF800000> : vector<2x16xf32>
    %253 = vector.multi_reduction <maximumf>, %252, %cst_151 [2] : vector<2x16x16xf32> to vector<2x16xf32>
    %254 = vector.shape_cast %253 : vector<2x16xf32> to vector<2x16x1xf32>
    %255 = vector.broadcast %254 : vector<2x16x1xf32> to vector<2x16x16xf32>
    %256 = arith.subf %252, %255 : vector<2x16x16xf32>
    %257 = math.exp %256 : vector<2x16x16xf32>
    %cst_152 = arith.constant dense<0.000000e+00> : vector<2x16xf32>
    %258 = vector.multi_reduction <add>, %257, %cst_152 [2] : vector<2x16x16xf32> to vector<2x16xf32>
    %259 = vector.shape_cast %258 : vector<2x16xf32> to vector<2x16x1xf32>
    %260 = arith.truncf %257 : vector<2x16x16xf32> to vector<2x16x16xbf16>
    "tpu.trace_start"() <{level = 10 : i32, message = "bnm,bmd->bnd"}> : () -> ()
    %cst_153 = arith.constant dense<0.000000e+00> : vector<2x16x8xf32>
    %261 = tpu.matmul %260, %246, %cst_153 {dimension_numbers = #tpu.dot_dimension_numbers<[2], [1], [1], [2], [0, 0, 0, 1, 1, 2], [0], [0]>} : vector<2x16x16xbf16>, vector<2x16x8xbf16>, vector<2x16x8xf32> -> vector<2x16x8xf32>
    "tpu.trace_stop"() : () -> ()
    %262 = tpu.reciprocal %259 {approx = true} : vector<2x16x1xf32> -> vector<2x16x1xf32>
    %263 = vector.broadcast %262 : vector<2x16x1xf32> to vector<2x16x8xf32>
    %264 = arith.mulf %261, %263 : vector<2x16x8xf32>
    %265 = vector.shape_cast %264 : vector<2x16x8xf32> to vector<32x8xf32>
    %266 = arith.truncf %265 : vector<32x8xf32> to vector<32x8xbf16>
    %c0_154 = arith.constant 0 : index
    %c3_155 = arith.constant 3 : index
    %c0_156 = arith.constant 0 : index
    %c0_157 = arith.constant 0 : index
    %267 = vector.load %arg10[%c0_154, %c3_155, %c0_156, %c0_157] : memref<1x4x8x128xbf16, #tpu.memory_space<vmem>>, vector<1x1x8x128xbf16>
    %268 = vector.shape_cast %267 : vector<1x1x8x128xbf16> to vector<8x128xbf16>
    %cst_158 = arith.constant dense<0.000000e+00> : vector<32x128xf32>
    %269 = tpu.matmul %266, %268, %cst_158 {dimension_numbers = #tpu.dot_dimension_numbers<[1], [0], [0], [1], [0, 0, 1, 1], [], []>} : vector<32x8xbf16>, vector<8x128xbf16>, vector<32x128xf32> -> vector<32x128xf32>
    %270 = arith.addf %203, %269 : vector<32x128xf32>
    %c0_159 = arith.constant 0 : index
    %c0_160 = arith.constant 0 : index
    %c0_161 = arith.constant 0 : index
    %271 = vector.load %arg11[%c0_159, %c0_160, %c0_161] : memref<1x1x128xf32, #tpu.memory_space<vmem>>, vector<1x1x128xf32>
    %272 = vector.shape_cast %271 : vector<1x1x128xf32> to vector<1x128xf32>
    %273 = vector.broadcast %272 : vector<1x128xf32> to vector<32x128xf32>
    %274 = arith.addf %270, %273 : vector<32x128xf32>
    %c0_162 = arith.constant 0 : index
    %c0_163 = arith.constant 0 : index
    %c0_164 = arith.constant 0 : index
    %275 = vector.load %arg12[%c0_162, %c0_163, %c0_164] : memref<1x32x128xf32, #tpu.memory_space<vmem>>, vector<1x32x128xf32>
    %276 = vector.shape_cast %275 : vector<1x32x128xf32> to vector<32x128xf32>
    %277 = vector.shape_cast %274 : vector<32x128xf32> to vector<1x32x128xf32>
    tpu.vector_store %arg12[%c0_162, %c0_163, %c0_164], %277 {strides = array<i32>} : memref<1x32x128xf32, #tpu.memory_space<vmem>>, vector<1x32x128xf32>,
    return
  }
  func.func @transform_0(%arg0: i32, %arg1: i32) -> (i32, i32, i32) {
    %c0_i32 = arith.constant 0 : i32
    %c0_i32_0 = arith.constant 0 : i32
    return %arg0, %arg1, %c0_i32 : i32, i32, i32
  }
  func.func @transform_1(%arg0: i32, %arg1: i32) -> (i32, i32, i32, i32) {
    %c0_i32 = arith.constant 0 : i32
    %c0_i32_0 = arith.constant 0 : i32
    %c0_i32_1 = arith.constant 0 : i32
    %c0_i32_2 = arith.constant 0 : i32
    return %arg0, %c0_i32, %c0_i32_0, %c0_i32_1 : i32, i32, i32, i32
  }
  func.func @transform_2(%arg0: i32, %arg1: i32) -> (i32, i32, i32, i32) {
    %c0_i32 = arith.constant 0 : i32
    %c0_i32_0 = arith.constant 0 : i32
    %c0_i32_1 = arith.constant 0 : i32
    %c0_i32_2 = arith.constant 0 : i32
    return %arg0, %c0_i32, %c0_i32_0, %c0_i32_1 : i32, i32, i32, i32
  }
  func.func @transform_3(%arg0: i32, %arg1: i32) -> (i32, i32, i32, i32) {
    %c0_i32 = arith.constant 0 : i32
    %c0_i32_0 = arith.constant 0 : i32
    %c0_i32_1 = arith.constant 0 : i32
    %c0_i32_2 = arith.constant 0 : i32
    return %arg0, %c0_i32, %c0_i32_0, %c0_i32_1 : i32, i32, i32, i32
  }
  func.func @transform_4(%arg0: i32, %arg1: i32) -> (i32, i32, i32, i32) {
    %c0_i32 = arith.constant 0 : i32
    %c0_i32_0 = arith.constant 0 : i32
    %c0_i32_1 = arith.constant 0 : i32
    %c0_i32_2 = arith.constant 0 : i32
    return %arg0, %c0_i32, %c0_i32_0, %c0_i32_1 : i32, i32, i32, i32
  }
  func.func @transform_5(%arg0: i32, %arg1: i32) -> (i32, i32, i32, i32) {
    %c0_i32 = arith.constant 0 : i32
    %c0_i32_0 = arith.constant 0 : i32
    %c0_i32_1 = arith.constant 0 : i32
    %c0_i32_2 = arith.constant 0 : i32
    return %arg0, %c0_i32, %c0_i32_0, %c0_i32_1 : i32, i32, i32, i32
  }
  func.func @transform_6(%arg0: i32, %arg1: i32) -> (i32, i32) {
    %c0_i32 = arith.constant 0 : i32
    %c0_i32_0 = arith.constant 0 : i32
    %c0_i32_1 = arith.constant 0 : i32
    return %c0_i32, %c0_i32_0 : i32, i32
  }
  func.func @transform_7(%arg0: i32, %arg1: i32) -> (i32, i32, i32) {
    %c0_i32 = arith.constant 0 : i32
    %c0_i32_0 = arith.constant 0 : i32
    %c0_i32_1 = arith.constant 0 : i32
    %c0_i32_2 = arith.constant 0 : i32
    return %c0_i32, %c0_i32_0, %c0_i32_1 : i32, i32, i32
  }
  func.func @transform_8(%arg0: i32, %arg1: i32) -> (i32, i32, i32, i32) {
    %c0_i32 = arith.constant 0 : i32
    %c0_i32_0 = arith.constant 0 : i32
    %c0_i32_1 = arith.constant 0 : i32
    %c0_i32_2 = arith.constant 0 : i32
    return %arg0, %c0_i32, %c0_i32_0, %c0_i32_1 : i32, i32, i32, i32
  }
  func.func @transform_9(%arg0: i32, %arg1: i32) -> (i32, i32, i32) {
    %c0_i32 = arith.constant 0 : i32
    %c0_i32_0 = arith.constant 0 : i32
    %c0_i32_1 = arith.constant 0 : i32
    return %arg0, %c0_i32, %c0_i32_0 : i32, i32, i32
  }
  func.func @transform_10(%arg0: i32, %arg1: i32) -> (i32, i32, i32) {
    %c0_i32 = arith.constant 0 : i32
    %c0_i32_0 = arith.constant 0 : i32
    return %arg0, %arg1, %c0_i32 : i32, i32, i32
  }
}

</mosaic_0001>

<llo_original>
// kernel: tpu_custom_call.1
$region0: #{tpu_custom_call.1}
  #allocation0 [shape = 'u32[]', space=smem, size = 0x4, offset = 0x4, fixed_abs, tag = 'smem constant byte address 0x4 - core index']
  #allocation1 [shape = 'u32[144,128]{1,0:T(1,128)}', space=vmem, size = 0x12000, scoped, tag = 'internal scratch']
  %s0 = inlined_call_operand.vmem [shape: bf16[2,32,32], index: 0, kind: input, shape index: {}]
  %s1 = inlined_call_operand.vmem [shape: bf16[2,4,32,8], index: 1, kind: input, shape index: {}]
  %s2 = inlined_call_operand.vmem [shape: bf16[2,4,32,8], index: 2, kind: input, shape index: {}]
  %s3 = inlined_call_operand.vmem [shape: bf16[2,4,32,8], index: 3, kind: input, shape index: {}]
  %s4 = inlined_call_operand.vmem [shape: f32[2,4,1,8], index: 4, kind: input, shape index: {}]
  %s5 = inlined_call_operand.vmem [shape: f32[2,4,1,8], index: 5, kind: input, shape index: {}]
  %s6 = inlined_call_operand.vmem [shape: f32[2,4], index: 6, kind: input, shape index: {}]
  %s7 = inlined_call_operand.vmem [shape: f32[4,16,16], index: 7, kind: input, shape index: {}]
  %s8 = inlined_call_operand.vmem [shape: bf16[2,4,8,128], index: 8, kind: input, shape index: {}]
  %s9 = inlined_call_operand.vmem [shape: f32[2,1,128], index: 9, kind: input, shape index: {}]
  %s10 = inlined_call_operand.hbm [shape: f32[2,32,128], index: 10, kind: output, shape index: {}]
  %s11 = sld [smem:[#allocation0]]
  $region77: #{tpu_custom_call.1} parent=0
    _
  %s13 = ssub.s32 1, %s11
  %s14 = scalar_select 0, %s13, %s11
  $region1: #{tpu_custom_call.1} parent=0
    #allocation2 [shape = 'u8[1024]{0}', space=smem, size = 0x400, scoped, tag = 'input window, operand 6, single buffered']
    #allocation3 [shape = 's32[2]{0}', space=sflag, size = 0x8, scoped, tag = 'scoped memory for tpu_custom_call.1']
    #allocation4 [shape = 's32[2]{0}', space=sflag, size = 0x8, scoped, tag = 'scoped memory for tpu_custom_call.1']
    #allocation5 [shape = 'u8[32768]{0}', space=vmem, size = 0x8000, scoped, tag = 'output window, operand 0']
    %15 = vsyncpa [#allocation4], 0
    %16 = vsyncpa [#allocation3], 0
    %s17 = scalar_lea.sflag [#allocation3], 1
    %18 = vsyncpa %s17, 0
    loop: start=0, step=1, limit=4
    $region2: #{tpu_custom_call.1} parent=1 // loop_pre_header
      _
    $region3: #{tpu_custom_call.1} parent=1 // loop_header
      %s20 = sphi 0, %s24
      %p21 = scmp.ge.s32.totalorder %s20, 4
      %s27 = sphi 0, %s39
      %s28 = sphi 0, %s35
      %s29 = sphi 0, %s27
      %s30 = sphi 0, %s28
      %s31 = sphi 0, %s29
      %s32 = sphi 0, %s30
      %s44 = sphi 0, %s46
      %s47 = sphi 0, %s44
      %s48 = sphi 0, %s47
      %s64 = sphi 0, %s48
      %s70 = sphi 0, %s72
      %s73 = sphi 0, %s70
      %s74 = sphi 0, %s73
      %s90 = sphi 0, %s74
      %s96 = sphi 0, %s98
      %s99 = sphi 0, %s96
      %s100 = sphi 0, %s99
      %s116 = sphi 0, %s100
      %s122 = sphi 0, %s124
      %s125 = sphi 0, %s122
      %s126 = sphi 0, %s125
      %s142 = sphi 0, %s126
      %s148 = sphi 0, %s150
      %s151 = sphi 0, %s148
      %s152 = sphi 0, %s151
      %s168 = sphi 0, %s152
      %s174 = sphi 0, %s176
      %s177 = sphi 0, %s174
      %s178 = sphi 0, %s177
      %s194 = sphi 0, %s178
      %s198 = sphi 0, %s198
      %s200 = sphi 0, %s198
      %s201 = sphi 0, %s200
      %s215 = sphi 0, %s201
      %s219 = sphi 0, %s219
      %s221 = sphi 0, %s219
      %s222 = sphi 0, %s221
      %s236 = sphi 0, %s222
      %s242 = sphi 0, %s244
      %s245 = sphi 0, %s242
      %s246 = sphi 0, %s245
      %s262 = sphi 0, %s246
      %s268 = sphi 0, %s270
      %s271 = sphi 0, %s268
      %s272 = sphi 0, %s271
      %s288 = sphi 0, %s272
      %s296 = sphi 0, %s298
      %s299 = sphi 0, %s296
      %s300 = sphi 0, %s299
      %s316 = sphi 0, %s300
    $region4: #{tpu_custom_call.1} parent=1 // loop_header_branch
      %23 = sbr.rel (%p21) target = $region8
    $region5: #{tpu_custom_call.1} parent=1 // loop_body
      %s25 = ssub.s32 %s20, 1
      %s26 = ssub.s32 %s20, 2
      %s33 = sadd.s32 1, %s28
      %p34 = scmp.ge.s32.totalorder %s33, 1
      %s35 = scalar_select %p34, 0, %s33
      %s36 = sadd.s32 1, %s27
      %s37 = scalar_select %p34, %s36, %s27
      %p38 = scmp.ge.s32.totalorder %s37, 2
      %s39 = scalar_select %p38, 0, %s37
      %s40 = ssub.s32 %s27, %s39
      %s41 = ssub.s32 %s28, %s35
      %s42 = sor.u32 %s40, %s41
      %p43 = scmp.eq.s32.totalorder %s42, 0
      %s45 = sadd.s32 %s44, 1
      %s46 = scalar_select %p43, %s44, %s45
      %p49 = pneg %p43
      %p50 = scmp.eq.s32.totalorder %s20, 1
      %p51 = por %p49, %p50
      %p52 = scmp.ne.s32.totalorder %s44, %s47
      %p53 = scmp.eq.s32.totalorder %s20, 0
      %p54 = por %p52, %p53
      %p55 = scmp.ne.s32.totalorder %s44, %s47
      %p56 = scmp.eq.s32.totalorder %s25, 1
      %p57 = por %p55, %p56
      %p58 = scmp.ne.s32.totalorder %s47, %s48
      %p59 = scmp.eq.s32.totalorder %s25, 0
      %p60 = por %p58, %p59
      %p61 = scmp.ne.s32.totalorder %s47, %s48
      %p62 = scmp.eq.s32.totalorder %s26, 1
      %p63 = por %p61, %p62
      %p65 = scmp.ne.s32.totalorder %s48, %s64
      %p66 = scmp.eq.s32.totalorder %s26, 0
      %p67 = por %p65, %p66
      %s68 = ssub.s32 %s27, %s39
      %p69 = scmp.eq.s32.totalorder %s68, 0
      %s71 = sadd.s32 %s70, 1
      %s72 = scalar_select %p69, %s70, %s71
      %p75 = pneg %p69
      %p76 = scmp.eq.s32.totalorder %s20, 1
      %p77 = por %p75, %p76
      %p78 = scmp.ne.s32.totalorder %s70, %s73
      %p79 = scmp.eq.s32.totalorder %s20, 0
      %p80 = por %p78, %p79
      %p81 = scmp.ne.s32.totalorder %s70, %s73
      %p82 = scmp.eq.s32.totalorder %s25, 1
      %p83 = por %p81, %p82
      %p84 = scmp.ne.s32.totalorder %s73, %s74
      %p85 = scmp.eq.s32.totalorder %s25, 0
      %p86 = por %p84, %p85
      %p87 = scmp.ne.s32.totalorder %s73, %s74
      %p88 = scmp.eq.s32.totalorder %s26, 1
      %p89 = por %p87, %p88
      %p91 = scmp.ne.s32.totalorder %s74, %s90
      %p92 = scmp.eq.s32.totalorder %s26, 0
      %p93 = por %p91, %p92
      %s94 = ssub.s32 %s27, %s39
      %p95 = scmp.eq.s32.totalorder %s94, 0
      %s97 = sadd.s32 %s96, 1
      %s98 = scalar_select %p95, %s96, %s97
      %p101 = pneg %p95
      %p102 = scmp.eq.s32.totalorder %s20, 1
      %p103 = por %p101, %p102
      %p104 = scmp.ne.s32.totalorder %s96, %s99
      %p105 = scmp.eq.s32.totalorder %s20, 0
      %p106 = por %p104, %p105
      %p107 = scmp.ne.s32.totalorder %s96, %s99
      %p108 = scmp.eq.s32.totalorder %s25, 1
      %p109 = por %p107, %p108
      %p110 = scmp.ne.s32.totalorder %s99, %s100
      %p111 = scmp.eq.s32.totalorder %s25, 0
      %p112 = por %p110, %p111
      %p113 = scmp.ne.s32.totalorder %s99, %s100
      %p114 = scmp.eq.s32.totalorder %s26, 1
      %p115 = por %p113, %p114
      %p117 = scmp.ne.s32.totalorder %s100, %s116
      %p118 = scmp.eq.s32.totalorder %s26, 0
      %p119 = por %p117, %p118
      %s120 = ssub.s32 %s27, %s39
      %p121 = scmp.eq.s32.totalorder %s120, 0
      %s123 = sadd.s32 %s122, 1
      %s124 = scalar_select %p121, %s122, %s123
      %p127 = pneg %p121
      %p128 = scmp.eq.s32.totalorder %s20, 1
      %p129 = por %p127, %p128
      %p130 = scmp.ne.s32.totalorder %s122, %s125
      %p131 = scmp.eq.s32.totalorder %s20, 0
      %p132 = por %p130, %p131
      %p133 = scmp.ne.s32.totalorder %s122, %s125
      %p134 = scmp.eq.s32.totalorder %s25, 1
      %p135 = por %p133, %p134
      %p136 = scmp.ne.s32.totalorder %s125, %s126
      %p137 = scmp.eq.s32.totalorder %s25, 0
      %p138 = por %p136, %p137
      %p139 = scmp.ne.s32.totalorder %s125, %s126
      %p140 = scmp.eq.s32.totalorder %s26, 1
      %p141 = por %p139, %p140
      %p143 = scmp.ne.s32.totalorder %s126, %s142
      %p144 = scmp.eq.s32.totalorder %s26, 0
      %p145 = por %p143, %p144
      %s146 = ssub.s32 %s27, %s39
      %p147 = scmp.eq.s32.totalorder %s146, 0
      %s149 = sadd.s32 %s148, 1
      %s150 = scalar_select %p147, %s148, %s149
      %p153 = pneg %p147
      %p154 = scmp.eq.s32.totalorder %s20, 1
      %p155 = por %p153, %p154
      %p156 = scmp.ne.s32.totalorder %s148, %s151
      %p157 = scmp.eq.s32.totalorder %s20, 0
      %p158 = por %p156, %p157
      %p159 = scmp.ne.s32.totalorder %s148, %s151
      %p160 = scmp.eq.s32.totalorder %s25, 1
      %p161 = por %p159, %p160
      %p162 = scmp.ne.s32.totalorder %s151, %s152
      %p163 = scmp.eq.s32.totalorder %s25, 0
      %p164 = por %p162, %p163
      %p165 = scmp.ne.s32.totalorder %s151, %s152
      %p166 = scmp.eq.s32.totalorder %s26, 1
      %p167 = por %p165, %p166
      %p169 = scmp.ne.s32.totalorder %s152, %s168
      %p170 = scmp.eq.s32.totalorder %s26, 0
      %p171 = por %p169, %p170
      %s172 = ssub.s32 %s27, %s39
      %p173 = scmp.eq.s32.totalorder %s172, 0
      %s175 = sadd.s32 %s174, 1
      %s176 = scalar_select %p173, %s174, %s175
      %p179 = pneg %p173
      %p180 = scmp.eq.s32.totalorder %s20, 1
      %p181 = por %p179, %p180
      %p182 = scmp.ne.s32.totalorder %s174, %s177
      %p183 = scmp.eq.s32.totalorder %s20, 0
      %p184 = por %p182, %p183
      %p185 = scmp.ne.s32.totalorder %s174, %s177
      %p186 = scmp.eq.s32.totalorder %s25, 1
      %p187 = por %p185, %p186
      %p188 = scmp.ne.s32.totalorder %s177, %s178
      %p189 = scmp.eq.s32.totalorder %s25, 0
      %p190 = por %p188, %p189
      %p191 = scmp.ne.s32.totalorder %s177, %s178
      %p192 = scmp.eq.s32.totalorder %s26, 1
      %p193 = por %p191, %p192
      %p195 = scmp.ne.s32.totalorder %s178, %s194
      %p196 = scmp.eq.s32.totalorder %s26, 0
      %p197 = por %p195, %p196
      %s199 = sadd.s32 %s198, 1
      %p202 = scmp.eq.s32.totalorder %s20, 1
      %p203 = scmp.ne.s32.totalorder %s198, %s200
      %p204 = scmp.eq.s32.totalorder %s20, 0
      %p205 = por %p203, %p204
      %p206 = scmp.ne.s32.totalorder %s198, %s200
      %p207 = scmp.eq.s32.totalorder %s25, 1
      %p208 = por %p206, %p207
      %p209 = scmp.ne.s32.totalorder %s200, %s201
      %p210 = scmp.eq.s32.totalorder %s25, 0
      %p211 = por %p209, %p210
      %p212 = scmp.ne.s32.totalorder %s200, %s201
      %p213 = scmp.eq.s32.totalorder %s26, 1
      %p214 = por %p212, %p213
      %p216 = scmp.ne.s32.totalorder %s201, %s215
      %p217 = scmp.eq.s32.totalorder %s26, 0
      %p218 = por %p216, %p217
      %s220 = sadd.s32 %s219, 1
      %p223 = scmp.eq.s32.totalorder %s20, 1
      %p224 = scmp.ne.s32.totalorder %s219, %s221
      %p225 = scmp.eq.s32.totalorder %s20, 0
      %p226 = por %p224, %p225
      %p227 = scmp.ne.s32.totalorder %s219, %s221
      %p228 = scmp.eq.s32.totalorder %s25, 1
      %p229 = por %p227, %p228
      %p230 = scmp.ne.s32.totalorder %s221, %s222
      %p231 = scmp.eq.s32.totalorder %s25, 0
      %p232 = por %p230, %p231
      %p233 = scmp.ne.s32.totalorder %s221, %s222
      %p234 = scmp.eq.s32.totalorder %s26, 1
      %p235 = por %p233, %p234
      %p237 = scmp.ne.s32.totalorder %s222, %s236
      %p238 = scmp.eq.s32.totalorder %s26, 0
      %p239 = por %p237, %p238
      %s240 = ssub.s32 %s27, %s39
      %p241 = scmp.eq.s32.totalorder %s240, 0
      %s243 = sadd.s32 %s242, 1
      %s244 = scalar_select %p241, %s242, %s243
      %p247 = pneg %p241
      %p248 = scmp.eq.s32.totalorder %s20, 1
      %p249 = por %p247, %p248
      %p250 = scmp.ne.s32.totalorder %s242, %s245
      %p251 = scmp.eq.s32.totalorder %s20, 0
      %p252 = por %p250, %p251
      %p253 = scmp.ne.s32.totalorder %s242, %s245
      %p254 = scmp.eq.s32.totalorder %s25, 1
      %p255 = por %p253, %p254
      %p256 = scmp.ne.s32.totalorder %s245, %s246
      %p257 = scmp.eq.s32.totalorder %s25, 0
      %p258 = por %p256, %p257
      %p259 = scmp.ne.s32.totalorder %s245, %s246
      %p260 = scmp.eq.s32.totalorder %s26, 1
      %p261 = por %p259, %p260
      %p263 = scmp.ne.s32.totalorder %s246, %s262
      %p264 = scmp.eq.s32.totalorder %s26, 0
      %p265 = por %p263, %p264
      %s266 = ssub.s32 %s27, %s39
      %p267 = scmp.eq.s32.totalorder %s266, 0
      %s269 = sadd.s32 %s268, 1
      %s270 = scalar_select %p267, %s268, %s269
      %p273 = pneg %p267
      %p274 = scmp.eq.s32.totalorder %s20, 1
      %p275 = por %p273, %p274
      %p276 = scmp.ne.s32.totalorder %s268, %s271
      %p277 = scmp.eq.s32.totalorder %s20, 0
      %p278 = por %p276, %p277
      %p279 = scmp.ne.s32.totalorder %s268, %s271
      %p280 = scmp.eq.s32.totalorder %s25, 1
      %p281 = por %p279, %p280
      %p282 = scmp.ne.s32.totalorder %s271, %s272
      %p283 = scmp.eq.s32.totalorder %s25, 0
      %p284 = por %p282, %p283
      %p285 = scmp.ne.s32.totalorder %s271, %s272
      %p286 = scmp.eq.s32.totalorder %s26, 1
      %p287 = por %p285, %p286
      %p289 = scmp.ne.s32.totalorder %s272, %s288
      %p290 = scmp.eq.s32.totalorder %s26, 0
      %p291 = por %p289, %p290
      %s292 = ssub.s32 %s27, %s39
      %s293 = ssub.s32 %s28, %s35
      %s294 = sor.u32 %s292, %s293
      %p295 = scmp.eq.s32.totalorder %s294, 0
      %s297 = sadd.s32 %s296, 1
      %s298 = scalar_select %p295, %s296, %s297
      %p301 = pneg %p295
      %p302 = scmp.eq.s32.totalorder %s20, 1
      %p303 = por %p301, %p302
      %p304 = scmp.ne.s32.totalorder %s296, %s299
      %p305 = scmp.eq.s32.totalorder %s20, 0
      %p306 = por %p304, %p305
      %p307 = scmp.ne.s32.totalorder %s296, %s299
      %p308 = scmp.eq.s32.totalorder %s25, 1
      %p309 = por %p307, %p308
      %p310 = scmp.ne.s32.totalorder %s299, %s300
      %p311 = scmp.eq.s32.totalorder %s25, 0
      %p312 = por %p310, %p311
      %p313 = scmp.ne.s32.totalorder %s299, %s300
      %p314 = scmp.eq.s32.totalorder %s26, 1
      %p315 = por %p313, %p314
      %p317 = scmp.ne.s32.totalorder %s300, %s316
      %p318 = scmp.eq.s32.totalorder %s26, 0
      %p319 = por %p317, %p318
      %p320 = scmp.le.s32.totalorder 1, %s20
      %p321 = scmp.lt.s32.totalorder %s20, 3
      %p322 = pnand %p320, %p321
      %p323 = pneg %p322
      // Predicated region
      $region9: #{tpu_custom_call.1} parent=5 // pred_check
        _
      $region10: #{tpu_custom_call.1} parent=5 // pred_check_branch
        %325 = sbr.rel (%p322) target = $region12
      $region11: #{tpu_custom_call.1} parent=5 // pred_region
        %s326 = ssub.s32 %s20, 1
        // Predicated region
        $region13: #{tpu_custom_call.1} parent=11 // pred_check
          %p327 = pneg %p211
        $region14: #{tpu_custom_call.1} parent=11 // pred_check_branch
          %329 = sbr.rel (%p327) target = $region16
        $region15: #{tpu_custom_call.1} parent=11 // pred_region
          %s331 = ssub.s32 32, 32
          %332 = vsyncadd [#allocation4], %s331
          %s334 = sshll.u32 %s6, 4
          %s335 = int_to_ptr.vmem [resolvable:$true] %s334
          %337 = dma.vmem_to_smem %s335, 32, [#allocation2], [#allocation4]
        $region16: #{tpu_custom_call.1} parent=11 // pred_fallthru
          _
        // Predicated region
        $region17: #{tpu_custom_call.1} parent=11 // pred_check
          %p338 = pneg %p232
        $region18: #{tpu_custom_call.1} parent=11 // pred_check_branch
          %340 = sbr.rel (%p338) target = $region20
        $region19: #{tpu_custom_call.1} parent=11 // pred_region
          _
        $region20: #{tpu_custom_call.1} parent=11 // pred_fallthru
          _
      $region12: #{tpu_custom_call.1} parent=5 // pred_fallthru
        _
      %p341 = scmp.lt.s32.totalorder %s20, 2
      // Predicated region
      $region21: #{tpu_custom_call.1} parent=5 // pred_check
        %p342 = pneg %p341
      $region22: #{tpu_custom_call.1} parent=5 // pred_check_branch
        %344 = sbr.rel (%p342) target = $region24
      $region23: #{tpu_custom_call.1} parent=5 // pred_region
        // Predicated region
        $region25: #{tpu_custom_call.1} parent=23 // pred_check
          %p345 = pneg %p54
        $region26: #{tpu_custom_call.1} parent=23 // pred_check_branch
          %347 = sbr.rel (%p345) target = $region28
        $region27: #{tpu_custom_call.1} parent=23 // pred_region
          %s348 = smul.u32 4, %s28
          %p349 = scmp.lt.s32.totalorder %s27, 1
          %s350 = scalar_select %p349, %s27, 1
          %p351 = scmp.lt.s32.totalorder %s348, 3
          %s352 = scalar_select %p351, %s348, 3
          %s353 = smul.addr %s350, 4
          %s354 = sadd.s32 %s352, %s353
          %s355 = smul.addr %s354, 4
          %s356 = scalar_lea.vmem %s0, %s355
          %s357 = smul.u32 4, %s28
        $region28: #{tpu_custom_call.1} parent=23 // pred_fallthru
          _
        // Predicated region
        $region29: #{tpu_custom_call.1} parent=23 // pred_check
          %p358 = pneg %p80
        $region30: #{tpu_custom_call.1} parent=23 // pred_check_branch
          %360 = sbr.rel (%p358) target = $region32
        $region31: #{tpu_custom_call.1} parent=23 // pred_region
          %p361 = scmp.lt.s32.totalorder %s27, 1
          %s362 = scalar_select %p361, %s27, 1
          %s363 = smul.addr %s362, 16
          %s364 = smul.addr %s363, 4
          %s365 = scalar_lea.vmem %s1, %s364
        $region32: #{tpu_custom_call.1} parent=23 // pred_fallthru
          _
        // Predicated region
        $region33: #{tpu_custom_call.1} parent=23 // pred_check
          %p366 = pneg %p106
        $region34: #{tpu_custom_call.1} parent=23 // pred_check_branch
          %368 = sbr.rel (%p366) target = $region36
        $region35: #{tpu_custom_call.1} parent=23 // pred_region
          %p369 = scmp.lt.s32.totalorder %s27, 1
          %s370 = scalar_select %p369, %s27, 1
          %s371 = smul.addr %s370, 16
          %s372 = smul.addr %s371, 4
          %s373 = scalar_lea.vmem %s2, %s372
        $region36: #{tpu_custom_call.1} parent=23 // pred_fallthru
          _
        // Predicated region
        $region37: #{tpu_custom_call.1} parent=23 // pred_check
          %p374 = pneg %p132
        $region38: #{tpu_custom_call.1} parent=23 // pred_check_branch
          %376 = sbr.rel (%p374) target = $region40
        $region39: #{tpu_custom_call.1} parent=23 // pred_region
          %p377 = scmp.lt.s32.totalorder %s27, 1
          %s378 = scalar_select %p377, %s27, 1
          %s379 = smul.addr %s378, 16
          %s380 = smul.addr %s379, 4
          %s381 = scalar_lea.vmem %s3, %s380
        $region40: #{tpu_custom_call.1} parent=23 // pred_fallthru
          _
        // Predicated region
        $region41: #{tpu_custom_call.1} parent=23 // pred_check
          %p382 = pneg %p158
        $region42: #{tpu_custom_call.1} parent=23 // pred_check_branch
          %384 = sbr.rel (%p382) target = $region44
        $region43: #{tpu_custom_call.1} parent=23 // pred_region
          %p385 = scmp.lt.s32.totalorder %s27, 1
          %s386 = scalar_select %p385, %s27, 1
          %s387 = smul.addr %s386, 4
          %s388 = scalar_lea.vmem %s4, %s387
        $region44: #{tpu_custom_call.1} parent=23 // pred_fallthru
          _
        // Predicated region
        $region45: #{tpu_custom_call.1} parent=23 // pred_check
          %p389 = pneg %p184
        $region46: #{tpu_custom_call.1} parent=23 // pred_check_branch
          %391 = sbr.rel (%p389) target = $region48
        $region47: #{tpu_custom_call.1} parent=23 // pred_region
          %p392 = scmp.lt.s32.totalorder %s27, 1
          %s393 = scalar_select %p392, %s27, 1
          %s394 = smul.addr %s393, 4
          %s395 = scalar_lea.vmem %s5, %s394
        $region48: #{tpu_custom_call.1} parent=23 // pred_fallthru
          _
        // Predicated region
        $region49: #{tpu_custom_call.1} parent=23 // pred_check
          %p396 = pneg %p252
        $region50: #{tpu_custom_call.1} parent=23 // pred_check_branch
          %398 = sbr.rel (%p396) target = $region52
        $region51: #{tpu_custom_call.1} parent=23 // pred_region
          %p399 = scmp.lt.s32.totalorder %s27, 1
          %s400 = scalar_select %p399, %s27, 1
          %s401 = smul.addr %s400, 4
          %s402 = smul.addr %s401, 4
          %s403 = scalar_lea.vmem %s8, %s402
        $region52: #{tpu_custom_call.1} parent=23 // pred_fallthru
          _
        // Predicated region
        $region53: #{tpu_custom_call.1} parent=23 // pred_check
          %p404 = pneg %p278
        $region54: #{tpu_custom_call.1} parent=23 // pred_check_branch
          %406 = sbr.rel (%p404) target = $region56
        $region55: #{tpu_custom_call.1} parent=23 // pred_region
          %p407 = scmp.lt.s32.totalorder %s27, 1
          %s408 = scalar_select %p407, %s27, 1
          %s409 = scalar_lea.vmem %s9, %s408
        $region56: #{tpu_custom_call.1} parent=23 // pred_fallthru
          _
      $region24: #{tpu_custom_call.1} parent=5 // pred_fallthru
        _
      %p410 = scmp.le.s32.totalorder 1, %s20
      %p411 = scmp.lt.s32.totalorder %s20, 3
      %p412 = pnand %p410, %p411
      %p413 = pneg %p412
      // Predicated region
      $region57: #{tpu_custom_call.1} parent=5 // pred_check
        _
      $region58: #{tpu_custom_call.1} parent=5 // pred_check_branch
        %415 = sbr.rel (%p412) target = $region60
      $region59: #{tpu_custom_call.1} parent=5 // pred_region
        %s416 = ssub.s32 %s20, 1
        // Predicated region
        $region61: #{tpu_custom_call.1} parent=59 // pred_check
          %p417 = pneg %p211
        $region62: #{tpu_custom_call.1} parent=59 // pred_check_branch
          %419 = sbr.rel (%p417) target = $region64
        $region63: #{tpu_custom_call.1} parent=59 // pred_region
          %420 = dma.done [#allocation4], 32
        $region64: #{tpu_custom_call.1} parent=59 // pred_fallthru
          _
        %421 = sfence
        %s422 = smul.u32 4, %s30
        %p423 = scmp.lt.s32.totalorder %s29, 1
        %s424 = scalar_select %p423, %s29, 1
        %p425 = scmp.lt.s32.totalorder %s422, 3
        %s426 = scalar_select %p425, %s422, 3
        %s427 = smul.addr %s424, 4
        %s428 = sadd.s32 %s426, %s427
        %s429 = smul.addr %s428, 4
        %s430 = scalar_lea.vmem %s0, %s429
        %p431 = pneg %p60
        %p432 = pneg %p57
        %p433 = scmp.lt.s32.totalorder %s29, 1
        %s434 = scalar_select %p433, %s29, 1
        %s435 = smul.addr %s434, 16
        %s436 = smul.addr %s435, 4
        %s437 = scalar_lea.vmem %s1, %s436
        %p438 = pneg %p86
        %p439 = pneg %p83
        %p440 = scmp.lt.s32.totalorder %s29, 1
        %s441 = scalar_select %p440, %s29, 1
        %s442 = smul.addr %s441, 16
        %s443 = smul.addr %s442, 4
        %s444 = scalar_lea.vmem %s2, %s443
        %p445 = pneg %p112
        %p446 = pneg %p109
        %p447 = scmp.lt.s32.totalorder %s29, 1
        %s448 = scalar_select %p447, %s29, 1
        %s449 = smul.addr %s448, 16
        %s450 = smul.addr %s449, 4
        %s451 = scalar_lea.vmem %s3, %s450
        %p452 = pneg %p138
        %p453 = pneg %p135
        %p454 = scmp.lt.s32.totalorder %s29, 1
        %s455 = scalar_select %p454, %s29, 1
        %s456 = smul.addr %s455, 4
        %s457 = scalar_lea.vmem %s4, %s456
        %p458 = pneg %p164
        %p459 = pneg %p161
        %p460 = scmp.lt.s32.totalorder %s29, 1
        %s461 = scalar_select %p460, %s29, 1
        %s462 = smul.addr %s461, 4
        %s463 = scalar_lea.vmem %s5, %s462
        %p464 = pneg %p190
        %p465 = pneg %p187
        %p466 = pneg %p211
        %p467 = pneg %p208
        %p468 = pneg %p232
        %p469 = pneg %p229
        %p470 = scmp.lt.s32.totalorder %s29, 1
        %s471 = scalar_select %p470, %s29, 1
        %s472 = smul.addr %s471, 4
        %s473 = smul.addr %s472, 4
        %s474 = scalar_lea.vmem %s8, %s473
        %p475 = pneg %p258
        %p476 = pneg %p255
        %p477 = scmp.lt.s32.totalorder %s29, 1
        %s478 = scalar_select %p477, %s29, 1
        %s479 = scalar_lea.vmem %s9, %s478
        %p480 = pneg %p284
        %p481 = pneg %p281
        %p482 = pneg %p312
        %p483 = pneg %p309
        %s484 = sand.u32 %s299, 1
        %s485 = scalar_lea.sflag [#allocation3], %s484
        %s486 = sand.u32 %s299, 1
        %s487 = smul.addr %s486, 32
        %s488 = scalar_lea.vmem [#allocation5], %s487
        %s489 = smul.u32 4, %s30
        %p490 = scmp.lt.s32.totalorder %s29, 1
        %s491 = scalar_select %p490, %s29, 1
        %p492 = scmp.lt.s32.totalorder %s489, 3
        %s493 = scalar_select %p492, %s489, 3
        %s494 = smul.addr %s491, 4
        %s495 = sadd.s32 %s493, %s494
        %s496 = smul.addr %s495, 4
        %s497 = scalar_lea.vmem %s0, %s496
        %s498 = smul.u32 4, %s30
        %p499 = scmp.lt.s32.totalorder %s29, 1
        %s500 = scalar_select %p499, %s29, 1
        %s501 = smul.addr %s500, 16
        %s502 = smul.addr %s501, 4
        %s503 = scalar_lea.vmem %s1, %s502
        %p504 = scmp.lt.s32.totalorder %s29, 1
        %s505 = scalar_select %p504, %s29, 1
        %s506 = smul.addr %s505, 16
        %s507 = smul.addr %s506, 4
        %s508 = scalar_lea.vmem %s2, %s507
        %p509 = scmp.lt.s32.totalorder %s29, 1
        %s510 = scalar_select %p509, %s29, 1
        %s511 = smul.addr %s510, 16
        %s512 = smul.addr %s511, 4
        %s513 = scalar_lea.vmem %s3, %s512
        %p514 = scmp.lt.s32.totalorder %s29, 1
        %s515 = scalar_select %p514, %s29, 1
        %s516 = smul.addr %s515, 4
        %s517 = scalar_lea.vmem %s4, %s516
        %p518 = scmp.lt.s32.totalorder %s29, 1
        %s519 = scalar_select %p518, %s29, 1
        %s520 = smul.addr %s519, 4
        %s521 = scalar_lea.vmem %s5, %s520
        %p522 = scmp.lt.s32.totalorder %s29, 1
        %s523 = scalar_select %p522, %s29, 1
        %s524 = smul.addr %s523, 4
        %s525 = smul.addr %s524, 4
        %s526 = scalar_lea.vmem %s8, %s525
        %p527 = scmp.lt.s32.totalorder %s29, 1
        %s528 = scalar_select %p527, %s29, 1
        %s529 = scalar_lea.vmem %s9, %s528
        %s530 = smul.u32 4, %s30
        %v532 = vld [vmem:[%s497] sm:$0xf]
        %v533 = vld [vmem:[%s497 + $0x4] sm:$0xf]
        %v534 = vld [vmem:[%s497 + $0x8] sm:$0xf]
        %v535 = vld [vmem:[%s497 + $0xc] sm:$0xf]
        %v536 = vld [vmem:[%s503] sm:$0xf]
        %v537 = vld [vmem:[%s503 + $0x4] sm:$0xf]
        %v538 = vld [vmem:[%s503 + $0x8] sm:$0xf]
        %v539 = vld [vmem:[%s503 + $0xc] sm:$0xf]
        %v540 = vld [vmem:[%s517] sm:$0x1]
        %v542 = vlaneseq
        %v543 = vshrl.u32 %v542, 7
        %v544 = vsub.s32 0, %v543
        %v545 = vrot.slane %v540, %v544
        %v551 = vunpack.c.l.b16 %v532
        %v552 = vunpack.c.l.b16 %v533
        %v553 = vunpack.c.l.b16 %v534
        %v554 = vunpack.c.l.b16 %v535
        %v555 = vpack.c.b16 %v552, %v551
        %v556 = vpack.c.b16 %v554, %v553
        %v561 = vunpack.c.l.b16 %v536
        %v562 = vunpack.c.l.b16 %v537
        %v563 = vunpack.c.l.b16 %v538
        %v564 = vunpack.c.l.b16 %v539
        %v565 = vpack.c.b16 %v562, %v561
        %v566 = vpack.c.b16 %v564, %v563
        %vm569 = vcmask 261120
        %v571 = vsel %vm569, %v555, 0
        %v574 = vsel %vm569, %v556, 0
        %576 = vmatprep.subr.bf16.mxu0 0
        %577 = vmatpush1.bf16.msra.mxu0 %v565
        %578 = vmatprep.subr.bf16.mxu0 0
        %579 = vmatpush1.bf16.msra.mxu0 %v566
        %580 = vmatprep.subr.bf16.mxu0 0
        %581 = vmatpush1.bf16.msra.mxu0 0
        %582 = vmatprep.subr.bf16.mxu0 0
        %583 = vmatpush1.bf16.msra.mxu0 0
        %584 = vmatprep.subr.bf16.mxu0 0
        %585 = vmatpush1.bf16.msra.mxu0 0
        %586 = vmatprep.subr.bf16.mxu0 0
        %587 = vmatpush1.bf16.msra.mxu0 0
        %588 = vmatprep.subr.bf16.mxu0 0
        %589 = vmatpush1.bf16.msra.mxu0 0
        %590 = vmatprep.subr.bf16.mxu0 0
        %591 = vmatpush1.bf16.msra.mxu0 0
        %592 = vmatprep.subr.bf16.mxu0 0
        %593 = vmatpush1.bf16.msra.mxu0 0
        %594 = vmatprep.subr.bf16.mxu0 0
        %595 = vmatpush1.bf16.msra.mxu0 0
        %596 = vmatprep.subr.bf16.mxu0 0
        %597 = vmatpush1.bf16.msra.mxu0 0
        %598 = vmatprep.subr.bf16.mxu0 0
        %599 = vmatpush1.bf16.msra.mxu0 0
        %600 = vmatprep.subr.bf16.mxu0 0
        %601 = vmatpush1.bf16.msra.mxu0 0
        %602 = vmatprep.subr.bf16.mxu0 0
        %603 = vmatpush1.bf16.msra.mxu0 0
        %604 = vmatprep.subr.bf16.mxu0 0
        %605 = vmatpush1.bf16.msra.mxu0 0
        %606 = vmatprep.subr.bf16.mxu0 0
        %607 = vmatpush1.bf16.msra.mxu0 0
        %608 = vmatprep.mubr.bf16.mxu0 0
        %609 = vmatmul.mubr.bf16.gmra.mrb[0].mxu0 %v571
        %v610 = vpop.f32.mrb[0].mxu0
        %v611 = vadd.f32 %v545, %v610
        %v612 = vpop.f32.mrb[0].mxu0
        %v613 = vpop.f32.mrb[0].mxu0
        %v614 = vadd.f32 %v545, %v613
        %v615 = vpop.f32.mrb[0].mxu0
        %616 = vmatprep.mubr.bf16.mxu0 0
        %617 = vmatmul.mubr.bf16.gmra.mrb[0].mxu0 %v574
        %v618 = vpop.f32.mrb[0].mxu0
        %v619 = vadd.f32 %v545, %v618
        %v620 = vpop.f32.mrb[0].mxu0
        %v621 = vpop.f32.mrb[0].mxu0
        %v622 = vadd.f32 %v545, %v621
        %v623 = vpop.f32.mrb[0].mxu0
        %624 = vdwg.mxu0
        %v625 = vld [vmem:[%s508] sm:$0xf]
        %v626 = vld [vmem:[%s508 + $0x4] sm:$0xf]
        %v627 = vld [vmem:[%s508 + $0x8] sm:$0xf]
        %v628 = vld [vmem:[%s508 + $0xc] sm:$0xf]
        %v633 = vunpack.c.l.b16 %v625
        %v634 = vunpack.c.l.b16 %v626
        %v635 = vunpack.c.l.b16 %v627
        %v636 = vunpack.c.l.b16 %v628
        %v637 = vpack.c.b16 %v634, %v633
        %v638 = vpack.c.b16 %v636, %v635
        %641 = vmatprep.subr.bf16.mxu0 0
        %642 = vmatpush1.bf16.msra.mxu0 %v637
        %643 = vmatprep.subr.bf16.mxu0 0
        %644 = vmatpush1.bf16.msra.mxu0 %v638
        %645 = vmatprep.subr.bf16.mxu0 0
        %646 = vmatpush1.bf16.msra.mxu0 0
        %647 = vmatprep.subr.bf16.mxu0 0
        %648 = vmatpush1.bf16.msra.mxu0 0
        %649 = vmatprep.subr.bf16.mxu0 0
        %650 = vmatpush1.bf16.msra.mxu0 0
        %651 = vmatprep.subr.bf16.mxu0 0
        %652 = vmatpush1.bf16.msra.mxu0 0
        %653 = vmatprep.subr.bf16.mxu0 0
        %654 = vmatpush1.bf16.msra.mxu0 0
        %655 = vmatprep.subr.bf16.mxu0 0
        %656 = vmatpush1.bf16.msra.mxu0 0
        %657 = vmatprep.subr.bf16.mxu0 0
        %658 = vmatpush1.bf16.msra.mxu0 0
        %659 = vmatprep.subr.bf16.mxu0 0
        %660 = vmatpush1.bf16.msra.mxu0 0
        %661 = vmatprep.subr.bf16.mxu0 0
        %662 = vmatpush1.bf16.msra.mxu0 0
        %663 = vmatprep.subr.bf16.mxu0 0
        %664 = vmatpush1.bf16.msra.mxu0 0
        %665 = vmatprep.subr.bf16.mxu0 0
        %666 = vmatpush1.bf16.msra.mxu0 0
        %667 = vmatprep.subr.bf16.mxu0 0
        %668 = vmatpush1.bf16.msra.mxu0 0
        %669 = vmatprep.subr.bf16.mxu0 0
        %670 = vmatpush1.bf16.msra.mxu0 0
        %671 = vmatprep.subr.bf16.mxu0 0
        %672 = vmatpush1.bf16.msra.mxu0 0
        %673 = vmatprep.mubr.bf16.mxu0 0
        %674 = vmatmul.mubr.bf16.gmra.mrb[0].mxu0 %v571
        %v675 = vpop.f32.mrb[0].mxu0
        %v676 = vadd.f32 0.0, %v675
        %v677 = vpop.f32.mrb[0].mxu0
        %v678 = vpop.f32.mrb[0].mxu0
        %v679 = vadd.f32 0.0, %v678
        %v680 = vpop.f32.mrb[0].mxu0
        %681 = vmatprep.mubr.bf16.mxu0 0
        %682 = vmatmul.mubr.bf16.gmra.mrb[0].mxu0 %v574
        %v683 = vpop.f32.mrb[0].mxu0
        %v684 = vadd.f32 0.0, %v683
        %v685 = vpop.f32.mrb[0].mxu0
        %v686 = vpop.f32.mrb[0].mxu0
        %v687 = vadd.f32 0.0, %v686
        %v688 = vpop.f32.mrb[0].mxu0
        %689 = vdwg.mxu0
        %v690 = vld [vmem:[%s513] sm:$0xf]
        %v691 = vld [vmem:[%s513 + $0x4] sm:$0xf]
        %v692 = vld [vmem:[%s513 + $0x8] sm:$0xf]
        %v693 = vld [vmem:[%s513 + $0xc] sm:$0xf]
        %v694 = vld [vmem:[%s521] sm:$0x1]
        %v696 = vlaneseq
        %v697 = vshrl.u32 %v696, 7
        %v698 = vsub.s32 0, %v697
        %v699 = vrot.slane %v694, %v698
        %v705 = vunpack.c.l.b16 %v690
        %v706 = vunpack.c.l.b16 %v691
        %v707 = vunpack.c.l.b16 %v692
        %v708 = vunpack.c.l.b16 %v693
        %v709 = vpack.c.b16 %v706, %v705
        %v710 = vpack.c.b16 %v708, %v707
        %713 = vmatprep.subr.bf16.mxu0 0
        %714 = vmatpush1.bf16.msra.mxu0 %v709
        %715 = vmatprep.subr.bf16.mxu0 0
        %716 = vmatpush1.bf16.msra.mxu0 %v710
        %717 = vmatprep.subr.bf16.mxu0 0
        %718 = vmatpush1.bf16.msra.mxu0 0
        %719 = vmatprep.subr.bf16.mxu0 0
        %720 = vmatpush1.bf16.msra.mxu0 0
        %721 = vmatprep.subr.bf16.mxu0 0
        %722 = vmatpush1.bf16.msra.mxu0 0
        %723 = vmatprep.subr.bf16.mxu0 0
        %724 = vmatpush1.bf16.msra.mxu0 0
        %725 = vmatprep.subr.bf16.mxu0 0
        %726 = vmatpush1.bf16.msra.mxu0 0
        %727 = vmatprep.subr.bf16.mxu0 0
        %728 = vmatpush1.bf16.msra.mxu0 0
        %729 = vmatprep.subr.bf16.mxu0 0
        %730 = vmatpush1.bf16.msra.mxu0 0
        %731 = vmatprep.subr.bf16.mxu0 0
        %732 = vmatpush1.bf16.msra.mxu0 0
        %733 = vmatprep.subr.bf16.mxu0 0
        %734 = vmatpush1.bf16.msra.mxu0 0
        %735 = vmatprep.subr.bf16.mxu0 0
        %736 = vmatpush1.bf16.msra.mxu0 0
        %737 = vmatprep.subr.bf16.mxu0 0
        %738 = vmatpush1.bf16.msra.mxu0 0
        %739 = vmatprep.subr.bf16.mxu0 0
        %740 = vmatpush1.bf16.msra.mxu0 0
        %741 = vmatprep.subr.bf16.mxu0 0
        %742 = vmatpush1.bf16.msra.mxu0 0
        %743 = vmatprep.subr.bf16.mxu0 0
        %744 = vmatpush1.bf16.msra.mxu0 0
        %745 = vmatprep.mubr.bf16.mxu0 0
        %746 = vmatmul.mubr.bf16.gmra.mrb[0].mxu0 %v571
        %v747 = vpop.f32.mrb[0].mxu0
        %v748 = vadd.f32 %v699, %v747
        %v749 = vpop.f32.mrb[0].mxu0
        %v750 = vpop.f32.mrb[0].mxu0
        %v751 = vadd.f32 %v699, %v750
        %v752 = vpop.f32.mrb[0].mxu0
        %753 = vmatprep.mubr.bf16.mxu0 0
        %754 = vmatmul.mubr.bf16.gmra.mrb[0].mxu0 %v574
        %v755 = vpop.f32.mrb[0].mxu0
        %v756 = vadd.f32 %v699, %v755
        %v757 = vpop.f32.mrb[0].mxu0
        %v758 = vpop.f32.mrb[0].mxu0
        %v759 = vadd.f32 %v699, %v758
        %v760 = vpop.f32.mrb[0].mxu0
        %761 = vdwg.mxu0
        %s762 = smul.u32 %s29, 128
        %s763 = sld [smem:[#allocation2 + %s762]]
        %v764 = vmul.f32 %v611, %v611
        %v765 = vmul.f32 %v614, %v614
        %v766 = vmul.f32 %v619, %v619
        %v767 = vmul.f32 %v622, %v622
        %vm768 = vcmask 64512
        %v769 = vsel %vm768, %v764, 0.0
        %770 = vadd.xlane.f32.xlu0 %v769
        %v771 = vpop.xlane.xlu0 %770
        %v772 = vsel %vm768, %v765, 0.0
        %773 = vadd.xlane.f32.xlu0 %v772
        %v774 = vpop.xlane.xlu0 %773
        %v775 = vsel %vm768, %v766, 0.0
        %776 = vadd.xlane.f32.xlu0 %v775
        %v777 = vpop.xlane.xlu0 %776
        %v778 = vsel %vm768, %v767, 0.0
        %779 = vadd.xlane.f32.xlu0 %v778
        %v780 = vpop.xlane.xlu0 %779
        %v781 = vmax.f32 %v771, 1e-24
        %v782 = vmax.f32 %v774, 1e-24
        %v783 = vmax.f32 %v777, 1e-24
        %v784 = vmax.f32 %v780, 1e-24
        %v785 = vrsqrt.pop %v781
        %v786 = vrsqrt.pop %v782
        %v787 = vrsqrt.pop %v783
        %v788 = vrsqrt.pop %v784
        %v789 = vstv %s763
        %v790 = vmul.f32 %v785, %v789
        %v791 = vmul.f32 %v786, %v789
        %v792 = vmul.f32 %v787, %v789
        %v793 = vmul.f32 %v788, %v789
        %v794 = vmul.f32 %v611, %v790
        %v795 = vmul.f32 %v614, %v791
        %v796 = vmul.f32 %v619, %v792
        %v797 = vmul.f32 %v622, %v793
        %v798 = vmul.f32 %v676, %v676
        %v799 = vmul.f32 %v679, %v679
        %v800 = vmul.f32 %v684, %v684
        %v801 = vmul.f32 %v687, %v687
        %v802 = vsel %vm768, %v798, 0.0
        %803 = vadd.xlane.f32.xlu0 %v802
        %v804 = vpop.xlane.xlu0 %803
        %v805 = vsel %vm768, %v799, 0.0
        %806 = vadd.xlane.f32.xlu0 %v805
        %v807 = vpop.xlane.xlu0 %806
        %v808 = vsel %vm768, %v800, 0.0
        %809 = vadd.xlane.f32.xlu0 %v808
        %v810 = vpop.xlane.xlu0 %809
        %v811 = vsel %vm768, %v801, 0.0
        %812 = vadd.xlane.f32.xlu0 %v811
        %v813 = vpop.xlane.xlu0 %812
        %v814 = vmax.f32 %v804, 1e-24
        %v815 = vmax.f32 %v807, 1e-24
        %v816 = vmax.f32 %v810, 1e-24
        %v817 = vmax.f32 %v813, 1e-24
        %v818 = vrsqrt.pop %v814
        %v819 = vrsqrt.pop %v815
        %v820 = vrsqrt.pop %v816
        %v821 = vrsqrt.pop %v817
        %v822 = vmul.f32 %v676, %v818
        %v823 = vmul.f32 %v679, %v819
        %v824 = vmul.f32 %v684, %v820
        %v825 = vmul.f32 %v687, %v821
        %v826 = vpack.c.bf16 %v795, %v794
        %v827 = vpack.c.bf16 %v797, %v796
        %v828 = vpack.c.bf16 %v823, %v822
        %v829 = vpack.c.bf16 %v825, %v824
        %v830 = vpack.c.bf16 %v751, %v748
        %v831 = vpack.c.bf16 %v759, %v756
        %v832 = vld [vmem:[%s7] sm:$0xff]
        %v833 = vld [vmem:[%s7 + $0x8] sm:$0xff]
        %v835 = vsel %vm768, %v826, 0
        %v838 = vsel %vm768, %v828, 0
        %840 = vmatprep.subr.bf16.mxu0 0
        %841 = vmatpush1.bf16.xpose.msra.mxu0 %v838
        %842 = vmatprep.subr.bf16.mxu0 0
        %843 = vmatpush1.bf16.xpose.msra.mxu0 0
        %844 = vmatprep.subr.bf16.mxu0 0
        %845 = vmatpush1.bf16.xpose.msra.mxu0 0
        %846 = vmatprep.subr.bf16.mxu0 0
        %847 = vmatpush1.bf16.xpose.msra.mxu0 0
        %848 = vmatprep.subr.bf16.mxu0 0
        %849 = vmatpush1.bf16.xpose.msra.mxu0 0
        %850 = vmatprep.subr.bf16.mxu0 0
        %851 = vmatpush1.bf16.xpose.msra.mxu0 0
        %852 = vmatprep.subr.bf16.mxu0 0
        %853 = vmatpush1.bf16.xpose.msra.mxu0 0
        %854 = vmatprep.subr.bf16.mxu0 0
        %855 = vmatpush1.bf16.xpose.msra.mxu0 0
        %856 = vmatprep.subr.bf16.mxu0 0
        %857 = vmatpush1.bf16.xpose.msra.mxu0 0
        %858 = vmatprep.subr.bf16.mxu0 0
        %859 = vmatpush1.bf16.xpose.msra.mxu0 0
        %860 = vmatprep.subr.bf16.mxu0 0
        %861 = vmatpush1.bf16.xpose.msra.mxu0 0
        %862 = vmatprep.subr.bf16.mxu0 0
        %863 = vmatpush1.bf16.xpose.msra.mxu0 0
        %864 = vmatprep.subr.bf16.mxu0 0
        %865 = vmatpush1.bf16.xpose.msra.mxu0 0
        %866 = vmatprep.subr.bf16.mxu0 0
        %867 = vmatpush1.bf16.xpose.msra.mxu0 0
        %868 = vmatprep.subr.bf16.mxu0 0
        %869 = vmatpush1.bf16.xpose.msra.mxu0 0
        %870 = vmatprep.subr.bf16.mxu0 0
        %871 = vmatpush1.bf16.xpose.msra.mxu0 0
        %872 = vmatprep.mubr.bf16.mxu0 0
        %873 = vmatmul.mubr.bf16.gmra.mrb[0].mxu0 %v835
        %v874 = vpop.f32.mrb[0].mxu0
        %v875 = vadd.f32 %v832, %v874
        %v876 = vpop.f32.mrb[0].mxu0
        %v877 = vpop.f32.mrb[0].mxu0
        %v878 = vadd.f32 %v833, %v877
        %v879 = vpop.f32.mrb[0].mxu0
        %880 = vdwg.mxu0
        %v882 = vsel %vm768, %v827, 0
        %v885 = vsel %vm768, %v829, 0
        %887 = vmatprep.subr.bf16.mxu0 0
        %888 = vmatpush1.bf16.xpose.msra.mxu0 %v885
        %889 = vmatprep.subr.bf16.mxu0 0
        %890 = vmatpush1.bf16.xpose.msra.mxu0 0
        %891 = vmatprep.subr.bf16.mxu0 0
        %892 = vmatpush1.bf16.xpose.msra.mxu0 0
        %893 = vmatprep.subr.bf16.mxu0 0
        %894 = vmatpush1.bf16.xpose.msra.mxu0 0
        %895 = vmatprep.subr.bf16.mxu0 0
        %896 = vmatpush1.bf16.xpose.msra.mxu0 0
        %897 = vmatprep.subr.bf16.mxu0 0
        %898 = vmatpush1.bf16.xpose.msra.mxu0 0
        %899 = vmatprep.subr.bf16.mxu0 0
        %900 = vmatpush1.bf16.xpose.msra.mxu0 0
        %901 = vmatprep.subr.bf16.mxu0 0
        %902 = vmatpush1.bf16.xpose.msra.mxu0 0
        %903 = vmatprep.subr.bf16.mxu0 0
        %904 = vmatpush1.bf16.xpose.msra.mxu0 0
        %905 = vmatprep.subr.bf16.mxu0 0
        %906 = vmatpush1.bf16.xpose.msra.mxu0 0
        %907 = vmatprep.subr.bf16.mxu0 0
        %908 = vmatpush1.bf16.xpose.msra.mxu0 0
        %909 = vmatprep.subr.bf16.mxu0 0
        %910 = vmatpush1.bf16.xpose.msra.mxu0 0
        %911 = vmatprep.subr.bf16.mxu0 0
        %912 = vmatpush1.bf16.xpose.msra.mxu0 0
        %913 = vmatprep.subr.bf16.mxu0 0
        %914 = vmatpush1.bf16.xpose.msra.mxu0 0
        %915 = vmatprep.subr.bf16.mxu0 0
        %916 = vmatpush1.bf16.xpose.msra.mxu0 0
        %917 = vmatprep.subr.bf16.mxu0 0
        %918 = vmatpush1.bf16.xpose.msra.mxu0 0
        %919 = vmatprep.mubr.bf16.mxu0 0
        %920 = vmatmul.mubr.bf16.gmra.mrb[0].mxu0 %v882
        %v921 = vpop.f32.mrb[0].mxu0
        %v922 = vadd.f32 %v832, %v921
        %v923 = vpop.f32.mrb[0].mxu0
        %v924 = vpop.f32.mrb[0].mxu0
        %v925 = vadd.f32 %v833, %v924
        %v926 = vpop.f32.mrb[0].mxu0
        %927 = vdwg.mxu0
        %vm928 = vcmask 130048
        %v929 = vsel %vm928, %v875, -inf
        %930 = vmax.xlane.f32.xlu0 %v929
        %v931 = vpop.xlane.xlu0 %930
        %v932 = vsel %vm928, %v878, -inf
        %933 = vmax.xlane.f32.xlu0 %v932
        %v934 = vpop.xlane.xlu0 %933
        %v935 = vsel %vm928, %v922, -inf
        %936 = vmax.xlane.f32.xlu0 %v935
        %v937 = vpop.xlane.xlu0 %936
        %v938 = vsel %vm928, %v925, -inf
        %939 = vmax.xlane.f32.xlu0 %v938
        %v940 = vpop.xlane.xlu0 %939
        %v941 = vsub.f32 %v875, %v931
        %v942 = vsub.f32 %v878, %v934
        %v943 = vsub.f32 %v922, %v937
        %v944 = vsub.f32 %v925, %v940
        %v945 = vmul.f32 %v941, 1.442695
        %v946 = vpow.pop %v945
        %v947 = vmul.f32 %v942, 1.442695
        %v948 = vpow.pop %v947
        %v949 = vmul.f32 %v943, 1.442695
        %v950 = vpow.pop %v949
        %v951 = vmul.f32 %v944, 1.442695
        %v952 = vpow.pop %v951
        %v953 = vsel %vm928, %v946, 0.0
        %954 = vadd.xlane.f32.xlu0 %v953
        %v955 = vpop.xlane.xlu0 %954
        %v956 = vsel %vm928, %v948, 0.0
        %957 = vadd.xlane.f32.xlu0 %v956
        %v958 = vpop.xlane.xlu0 %957
        %v959 = vsel %vm928, %v950, 0.0
        %960 = vadd.xlane.f32.xlu0 %v959
        %v961 = vpop.xlane.xlu0 %960
        %v962 = vsel %vm928, %v952, 0.0
        %963 = vadd.xlane.f32.xlu0 %v962
        %v964 = vpop.xlane.xlu0 %963
        %v965 = vpack.c.bf16 %v948, %v946
        %v966 = vpack.c.bf16 %v952, %v950
        %v968 = vsel %vm928, %v965, 0
        %970 = vmatprep.subr.bf16.mxu0 0
        %971 = vmatpush1.bf16.msra.mxu0 %v830
        %972 = vmatprep.subr.bf16.mxu0 0
        %973 = vmatpush1.bf16.msra.mxu0 0
        %974 = vmatprep.subr.bf16.mxu0 0
        %975 = vmatpush1.bf16.msra.mxu0 0
        %976 = vmatprep.subr.bf16.mxu0 0
        %977 = vmatpush1.bf16.msra.mxu0 0
        %978 = vmatprep.subr.bf16.mxu0 0
        %979 = vmatpush1.bf16.msra.mxu0 0
        %980 = vmatprep.subr.bf16.mxu0 0
        %981 = vmatpush1.bf16.msra.mxu0 0
        %982 = vmatprep.subr.bf16.mxu0 0
        %983 = vmatpush1.bf16.msra.mxu0 0
        %984 = vmatprep.subr.bf16.mxu0 0
        %985 = vmatpush1.bf16.msra.mxu0 0
        %986 = vmatprep.subr.bf16.mxu0 0
        %987 = vmatpush1.bf16.msra.mxu0 0
        %988 = vmatprep.subr.bf16.mxu0 0
        %989 = vmatpush1.bf16.msra.mxu0 0
        %990 = vmatprep.subr.bf16.mxu0 0
        %991 = vmatpush1.bf16.msra.mxu0 0
        %992 = vmatprep.subr.bf16.mxu0 0
        %993 = vmatpush1.bf16.msra.mxu0 0
        %994 = vmatprep.subr.bf16.mxu0 0
        %995 = vmatpush1.bf16.msra.mxu0 0
        %996 = vmatprep.subr.bf16.mxu0 0
        %997 = vmatpush1.bf16.msra.mxu0 0
        %998 = vmatprep.subr.bf16.mxu0 0
        %999 = vmatpush1.bf16.msra.mxu0 0
        %1000 = vmatprep.subr.bf16.mxu0 0
        %1001 = vmatpush1.bf16.msra.mxu0 0
        %1002 = vmatprep.mubr.bf16.mxu0 0
        %1003 = vmatmul.mubr.bf16.gmra.mrb[0].mxu0 %v968
        %v1004 = vpop.f32.mrb[0].mxu0
        %v1005 = vadd.f32 0.0, %v1004
        %v1006 = vpop.f32.mrb[0].mxu0
        %v1007 = vpop.f32.mrb[0].mxu0
        %v1008 = vadd.f32 0.0, %v1007
        %v1009 = vpop.f32.mrb[0].mxu0
        %1010 = vdwg.mxu0
        %v1012 = vsel %vm928, %v966, 0
        %1014 = vmatprep.subr.bf16.mxu0 0
        %1015 = vmatpush1.bf16.msra.mxu0 %v831
        %1016 = vmatprep.subr.bf16.mxu0 0
        %1017 = vmatpush1.bf16.msra.mxu0 0
        %1018 = vmatprep.subr.bf16.mxu0 0
        %1019 = vmatpush1.bf16.msra.mxu0 0
        %1020 = vmatprep.subr.bf16.mxu0 0
        %1021 = vmatpush1.bf16.msra.mxu0 0
        %1022 = vmatprep.subr.bf16.mxu0 0
        %1023 = vmatpush1.bf16.msra.mxu0 0
        %1024 = vmatprep.subr.bf16.mxu0 0
        %1025 = vmatpush1.bf16.msra.mxu0 0
        %1026 = vmatprep.subr.bf16.mxu0 0
        %1027 = vmatpush1.bf16.msra.mxu0 0
        %1028 = vmatprep.subr.bf16.mxu0 0
        %1029 = vmatpush1.bf16.msra.mxu0 0
        %1030 = vmatprep.subr.bf16.mxu0 0
        %1031 = vmatpush1.bf16.msra.mxu0 0
        %1032 = vmatprep.subr.bf16.mxu0 0
        %1033 = vmatpush1.bf16.msra.mxu0 0
        %1034 = vmatprep.subr.bf16.mxu0 0
        %1035 = vmatpush1.bf16.msra.mxu0 0
        %1036 = vmatprep.subr.bf16.mxu0 0
        %1037 = vmatpush1.bf16.msra.mxu0 0
        %1038 = vmatprep.subr.bf16.mxu0 0
        %1039 = vmatpush1.bf16.msra.mxu0 0
        %1040 = vmatprep.subr.bf16.mxu0 0
        %1041 = vmatpush1.bf16.msra.mxu0 0
        %1042 = vmatprep.subr.bf16.mxu0 0
        %1043 = vmatpush1.bf16.msra.mxu0 0
        %1044 = vmatprep.subr.bf16.mxu0 0
        %1045 = vmatpush1.bf16.msra.mxu0 0
        %1046 = vmatprep.mubr.bf16.mxu0 0
        %1047 = vmatmul.mubr.bf16.gmra.mrb[0].mxu0 %v1012
        %v1048 = vpop.f32.mrb[0].mxu0
        %v1049 = vadd.f32 0.0, %v1048
        %v1050 = vpop.f32.mrb[0].mxu0
        %v1051 = vpop.f32.mrb[0].mxu0
        %v1052 = vadd.f32 0.0, %v1051
        %v1053 = vpop.f32.mrb[0].mxu0
        %1054 = vdwg.mxu0
        %v1055 = vrcp.pop %v955
        %v1056 = vrcp.pop %v958
        %v1057 = vrcp.pop %v961
        %v1058 = vrcp.pop %v964
        %v1059 = vmul.f32 %v1005, %v1055
        %v1060 = vmul.f32 %v1008, %v1056
        %v1061 = vmul.f32 %v1049, %v1057
        %v1062 = vmul.f32 %v1052, %v1058
        %v1063 = vpack.c.bf16 %v1060, %v1059
        %v1064 = vpack.c.bf16 %v1062, %v1061
        %v1065 = vld [vmem:[%s526] sm:$0xf]
        %s1066 = scalar_lea.vmem %s503, 16
        %v1067 = vld [vmem:[%s1066] sm:$0xf]
        %v1068 = vld [vmem:[%s1066 + $0x4] sm:$0xf]
        %v1069 = vld [vmem:[%s1066 + $0x8] sm:$0xf]
        %v1070 = vld [vmem:[%s1066 + $0xc] sm:$0xf]
        %s1071 = scalar_lea.vmem %s517, 1
        %v1072 = vld [vmem:[%s1071] sm:$0x1]
        %v1074 = vlaneseq
        %v1075 = vshrl.u32 %v1074, 7
        %v1076 = vsub.s32 0, %v1075
        %v1077 = vrot.slane %v1072, %v1076
        %v1083 = vunpack.c.l.b16 %v1067
        %v1084 = vunpack.c.l.b16 %v1068
        %v1085 = vunpack.c.l.b16 %v1069
        %v1086 = vunpack.c.l.b16 %v1070
        %v1087 = vpack.c.b16 %v1084, %v1083
        %v1088 = vpack.c.b16 %v1086, %v1085
        %1091 = vmatprep.subr.bf16.mxu0 0
        %1092 = vmatpush1.bf16.msra.mxu0 %v1087
        %1093 = vmatprep.subr.bf16.mxu0 0
        %1094 = vmatpush1.bf16.msra.mxu0 %v1088
        %1095 = vmatprep.subr.bf16.mxu0 0
        %1096 = vmatpush1.bf16.msra.mxu0 0
        %1097 = vmatprep.subr.bf16.mxu0 0
        %1098 = vmatpush1.bf16.msra.mxu0 0
        %1099 = vmatprep.subr.bf16.mxu0 0
        %1100 = vmatpush1.bf16.msra.mxu0 0
        %1101 = vmatprep.subr.bf16.mxu0 0
        %1102 = vmatpush1.bf16.msra.mxu0 0
        %1103 = vmatprep.subr.bf16.mxu0 0
        %1104 = vmatpush1.bf16.msra.mxu0 0
        %1105 = vmatprep.subr.bf16.mxu0 0
        %1106 = vmatpush1.bf16.msra.mxu0 0
        %1107 = vmatprep.subr.bf16.mxu0 0
        %1108 = vmatpush1.bf16.msra.mxu0 0
        %1109 = vmatprep.subr.bf16.mxu0 0
        %1110 = vmatpush1.bf16.msra.mxu0 0
        %1111 = vmatprep.subr.bf16.mxu0 0
        %1112 = vmatpush1.bf16.msra.mxu0 0
        %1113 = vmatprep.subr.bf16.mxu0 0
        %1114 = vmatpush1.bf16.msra.mxu0 0
        %1115 = vmatprep.subr.bf16.mxu0 0
        %1116 = vmatpush1.bf16.msra.mxu0 0
        %1117 = vmatprep.subr.bf16.mxu0 0
        %1118 = vmatpush1.bf16.msra.mxu0 0
        %1119 = vmatprep.subr.bf16.mxu0 0
        %1120 = vmatpush1.bf16.msra.mxu0 0
        %1121 = vmatprep.subr.bf16.mxu0 0
        %1122 = vmatpush1.bf16.msra.mxu0 0
        %1123 = vmatprep.mubr.bf16.mxu0 0
        %1124 = vmatmul.mubr.bf16.gmra.mrb[0].mxu0 %v571
        %v1125 = vpop.f32.mrb[0].mxu0
        %v1126 = vadd.f32 %v1077, %v1125
        %v1127 = vpop.f32.mrb[0].mxu0
        %v1128 = vpop.f32.mrb[0].mxu0
        %v1129 = vadd.f32 %v1077, %v1128
        %v1130 = vpop.f32.mrb[0].mxu0
        %1131 = vmatprep.mubr.bf16.mxu0 0
        %1132 = vmatmul.mubr.bf16.gmra.mrb[0].mxu0 %v574
        %v1133 = vpop.f32.mrb[0].mxu0
        %v1134 = vadd.f32 %v1077, %v1133
        %v1135 = vpop.f32.mrb[0].mxu0
        %v1136 = vpop.f32.mrb[0].mxu0
        %v1137 = vadd.f32 %v1077, %v1136
        %v1138 = vpop.f32.mrb[0].mxu0
        %1139 = vdwg.mxu0
        %s1140 = scalar_lea.vmem %s508, 16
        %v1141 = vld [vmem:[%s1140] sm:$0xf]
        %v1142 = vld [vmem:[%s1140 + $0x4] sm:$0xf]
        %v1143 = vld [vmem:[%s1140 + $0x8] sm:$0xf]
        %v1144 = vld [vmem:[%s1140 + $0xc] sm:$0xf]
        %v1149 = vunpack.c.l.b16 %v1141
        %v1150 = vunpack.c.l.b16 %v1142
        %v1151 = vunpack.c.l.b16 %v1143
        %v1152 = vunpack.c.l.b16 %v1144
        %v1153 = vpack.c.b16 %v1150, %v1149
        %v1154 = vpack.c.b16 %v1152, %v1151
        %1157 = vmatprep.subr.bf16.mxu0 0
        %1158 = vmatpush1.bf16.msra.mxu0 %v1153
        %1159 = vmatprep.subr.bf16.mxu0 0
        %1160 = vmatpush1.bf16.msra.mxu0 %v1154
        %1161 = vmatprep.subr.bf16.mxu0 0
        %1162 = vmatpush1.bf16.msra.mxu0 0
        %1163 = vmatprep.subr.bf16.mxu0 0
        %1164 = vmatpush1.bf16.msra.mxu0 0
        %1165 = vmatprep.subr.bf16.mxu0 0
        %1166 = vmatpush1.bf16.msra.mxu0 0
        %1167 = vmatprep.subr.bf16.mxu0 0
        %1168 = vmatpush1.bf16.msra.mxu0 0
        %1169 = vmatprep.subr.bf16.mxu0 0
        %1170 = vmatpush1.bf16.msra.mxu0 0
        %1171 = vmatprep.subr.bf16.mxu0 0
        %1172 = vmatpush1.bf16.msra.mxu0 0
        %1173 = vmatprep.subr.bf16.mxu0 0
        %1174 = vmatpush1.bf16.msra.mxu0 0
        %1175 = vmatprep.subr.bf16.mxu0 0
        %1176 = vmatpush1.bf16.msra.mxu0 0
        %1177 = vmatprep.subr.bf16.mxu0 0
        %1178 = vmatpush1.bf16.msra.mxu0 0
        %1179 = vmatprep.subr.bf16.mxu0 0
        %1180 = vmatpush1.bf16.msra.mxu0 0
        %1181 = vmatprep.subr.bf16.mxu0 0
        %1182 = vmatpush1.bf16.msra.mxu0 0
        %1183 = vmatprep.subr.bf16.mxu0 0
        %1184 = vmatpush1.bf16.msra.mxu0 0
        %1185 = vmatprep.subr.bf16.mxu0 0
        %1186 = vmatpush1.bf16.msra.mxu0 0
        %1187 = vmatprep.subr.bf16.mxu0 0
        %1188 = vmatpush1.bf16.msra.mxu0 0
        %1189 = vmatprep.mubr.bf16.mxu0 0
        %1190 = vmatmul.mubr.bf16.gmra.mrb[0].mxu0 %v571
        %v1191 = vpop.f32.mrb[0].mxu0
        %v1192 = vadd.f32 0.0, %v1191
        %v1193 = vpop.f32.mrb[0].mxu0
        %v1194 = vpop.f32.mrb[0].mxu0
        %v1195 = vadd.f32 0.0, %v1194
        %v1196 = vpop.f32.mrb[0].mxu0
        %1197 = vmatprep.mubr.bf16.mxu0 0
        %1198 = vmatmul.mubr.bf16.gmra.mrb[0].mxu0 %v574
        %v1199 = vpop.f32.mrb[0].mxu0
        %v1200 = vadd.f32 0.0, %v1199
        %v1201 = vpop.f32.mrb[0].mxu0
        %v1202 = vpop.f32.mrb[0].mxu0
        %v1203 = vadd.f32 0.0, %v1202
        %v1204 = vpop.f32.mrb[0].mxu0
        %1205 = vdwg.mxu0
        %s1206 = scalar_lea.vmem %s513, 16
        %v1207 = vld [vmem:[%s1206] sm:$0xf]
        %v1208 = vld [vmem:[%s1206 + $0x4] sm:$0xf]
        %v1209 = vld [vmem:[%s1206 + $0x8] sm:$0xf]
        %v1210 = vld [vmem:[%s1206 + $0xc] sm:$0xf]
        %s1211 = scalar_lea.vmem %s521, 1
        %v1212 = vld [vmem:[%s1211] sm:$0x1]
        %v1214 = vlaneseq
        %v1215 = vshrl.u32 %v1214, 7
        %v1216 = vsub.s32 0, %v1215
        %v1217 = vrot.slane %v1212, %v1216
        %v1223 = vunpack.c.l.b16 %v1207
        %v1224 = vunpack.c.l.b16 %v1208
        %v1225 = vunpack.c.l.b16 %v1209
        %v1226 = vunpack.c.l.b16 %v1210
        %v1227 = vpack.c.b16 %v1224, %v1223
        %v1228 = vpack.c.b16 %v1226, %v1225
        %1231 = vmatprep.subr.bf16.mxu0 0
        %1232 = vmatpush1.bf16.msra.mxu0 %v1227
        %1233 = vmatprep.subr.bf16.mxu0 0
        %1234 = vmatpush1.bf16.msra.mxu0 %v1228
        %1235 = vmatprep.subr.bf16.mxu0 0
        %1236 = vmatpush1.bf16.msra.mxu0 0
        %1237 = vmatprep.subr.bf16.mxu0 0
        %1238 = vmatpush1.bf16.msra.mxu0 0
        %1239 = vmatprep.subr.bf16.mxu0 0
        %1240 = vmatpush1.bf16.msra.mxu0 0
        %1241 = vmatprep.subr.bf16.mxu0 0
        %1242 = vmatpush1.bf16.msra.mxu0 0
        %1243 = vmatprep.subr.bf16.mxu0 0
        %1244 = vmatpush1.bf16.msra.mxu0 0
        %1245 = vmatprep.subr.bf16.mxu0 0
        %1246 = vmatpush1.bf16.msra.mxu0 0
        %1247 = vmatprep.subr.bf16.mxu0 0
        %1248 = vmatpush1.bf16.msra.mxu0 0
        %1249 = vmatprep.subr.bf16.mxu0 0
        %1250 = vmatpush1.bf16.msra.mxu0 0
        %1251 = vmatprep.subr.bf16.mxu0 0
        %1252 = vmatpush1.bf16.msra.mxu0 0
        %1253 = vmatprep.subr.bf16.mxu0 0
        %1254 = vmatpush1.bf16.msra.mxu0 0
        %1255 = vmatprep.subr.bf16.mxu0 0
        %1256 = vmatpush1.bf16.msra.mxu0 0
        %1257 = vmatprep.subr.bf16.mxu0 0
        %1258 = vmatpush1.bf16.msra.mxu0 0
        %1259 = vmatprep.subr.bf16.mxu0 0
        %1260 = vmatpush1.bf16.msra.mxu0 0
        %1261 = vmatprep.subr.bf16.mxu0 0
        %1262 = vmatpush1.bf16.msra.mxu0 0
        %1263 = vmatprep.mubr.bf16.mxu0 0
        %1264 = vmatmul.mubr.bf16.gmra.mrb[0].mxu0 %v571
        %v1265 = vpop.f32.mrb[0].mxu0
        %v1266 = vadd.f32 %v1217, %v1265
        %v1267 = vpop.f32.mrb[0].mxu0
        %v1268 = vpop.f32.mrb[0].mxu0
        %v1269 = vadd.f32 %v1217, %v1268
        %v1270 = vpop.f32.mrb[0].mxu0
        %1271 = vmatprep.mubr.bf16.mxu0 0
        %1272 = vmatmul.mubr.bf16.gmra.mrb[0].mxu0 %v574
        %v1273 = vpop.f32.mrb[0].mxu0
        %v1274 = vadd.f32 %v1217, %v1273
        %v1275 = vpop.f32.mrb[0].mxu0
        %v1276 = vpop.f32.mrb[0].mxu0
        %v1277 = vadd.f32 %v1217, %v1276
        %v1278 = vpop.f32.mrb[0].mxu0
        %1279 = vdwg.mxu0
        %s1280 = sadd.s32 %s762, 1
        %s1281 = sld [smem:[#allocation2 + %s1280]]
        %v1282 = vmul.f32 %v1126, %v1126
        %v1283 = vmul.f32 %v1129, %v1129
        %v1284 = vmul.f32 %v1134, %v1134
        %v1285 = vmul.f32 %v1137, %v1137
        %v1286 = vsel %vm768, %v1282, 0.0
        %1287 = vadd.xlane.f32.xlu0 %v1286
        %v1288 = vpop.xlane.xlu0 %1287
        %v1289 = vsel %vm768, %v1283, 0.0
        %1290 = vadd.xlane.f32.xlu0 %v1289
        %v1291 = vpop.xlane.xlu0 %1290
        %v1292 = vsel %vm768, %v1284, 0.0
        %1293 = vadd.xlane.f32.xlu0 %v1292
        %v1294 = vpop.xlane.xlu0 %1293
        %v1295 = vsel %vm768, %v1285, 0.0
        %1296 = vadd.xlane.f32.xlu0 %v1295
        %v1297 = vpop.xlane.xlu0 %1296
        %v1298 = vmax.f32 %v1288, 1e-24
        %v1299 = vmax.f32 %v1291, 1e-24
        %v1300 = vmax.f32 %v1294, 1e-24
        %v1301 = vmax.f32 %v1297, 1e-24
        %v1302 = vrsqrt.pop %v1298
        %v1303 = vrsqrt.pop %v1299
        %v1304 = vrsqrt.pop %v1300
        %v1305 = vrsqrt.pop %v1301
        %v1306 = vstv %s1281
        %v1307 = vmul.f32 %v1302, %v1306
        %v1308 = vmul.f32 %v1303, %v1306
        %v1309 = vmul.f32 %v1304, %v1306
        %v1310 = vmul.f32 %v1305, %v1306
        %v1311 = vmul.f32 %v1126, %v1307
        %v1312 = vmul.f32 %v1129, %v1308
        %v1313 = vmul.f32 %v1134, %v1309
        %v1314 = vmul.f32 %v1137, %v1310
        %v1315 = vmul.f32 %v1192, %v1192
        %v1316 = vmul.f32 %v1195, %v1195
        %v1317 = vmul.f32 %v1200, %v1200
        %v1318 = vmul.f32 %v1203, %v1203
        %v1319 = vsel %vm768, %v1315, 0.0
        %1320 = vadd.xlane.f32.xlu0 %v1319
        %v1321 = vpop.xlane.xlu0 %1320
        %v1322 = vsel %vm768, %v1316, 0.0
        %1323 = vadd.xlane.f32.xlu0 %v1322
        %v1324 = vpop.xlane.xlu0 %1323
        %v1325 = vsel %vm768, %v1317, 0.0
        %1326 = vadd.xlane.f32.xlu0 %v1325
        %v1327 = vpop.xlane.xlu0 %1326
        %v1328 = vsel %vm768, %v1318, 0.0
        %1329 = vadd.xlane.f32.xlu0 %v1328
        %v1330 = vpop.xlane.xlu0 %1329
        %v1331 = vmax.f32 %v1321, 1e-24
        %v1332 = vmax.f32 %v1324, 1e-24
        %v1333 = vmax.f32 %v1327, 1e-24
        %v1334 = vmax.f32 %v1330, 1e-24
        %v1335 = vrsqrt.pop %v1331
        %v1336 = vrsqrt.pop %v1332
        %v1337 = vrsqrt.pop %v1333
        %v1338 = vrsqrt.pop %v1334
        %v1339 = vmul.f32 %v1192, %v1335
        %v1340 = vmul.f32 %v1195, %v1336
        %v1341 = vmul.f32 %v1200, %v1337
        %v1342 = vmul.f32 %v1203, %v1338
        %v1343 = vpack.c.bf16 %v1312, %v1311
        %v1344 = vpack.c.bf16 %v1314, %v1313
        %v1345 = vpack.c.bf16 %v1340, %v1339
        %v1346 = vpack.c.bf16 %v1342, %v1341
        %v1347 = vpack.c.bf16 %v1269, %v1266
        %v1348 = vpack.c.bf16 %v1277, %v1274
        %s1349 = scalar_lea.vmem %s7, 16
        %v1350 = vld [vmem:[%s1349] sm:$0xff]
        %v1351 = vld [vmem:[%s1349 + $0x8] sm:$0xff]
        %v1353 = vsel %vm768, %v1343, 0
        %v1356 = vsel %vm768, %v1345, 0
        %1358 = vmatprep.subr.bf16.mxu0 0
        %1359 = vmatpush1.bf16.xpose.msra.mxu0 %v1356
        %1360 = vmatprep.subr.bf16.mxu0 0
        %1361 = vmatpush1.bf16.xpose.msra.mxu0 0
        %1362 = vmatprep.subr.bf16.mxu0 0
        %1363 = vmatpush1.bf16.xpose.msra.mxu0 0
        %1364 = vmatprep.subr.bf16.mxu0 0
        %1365 = vmatpush1.bf16.xpose.msra.mxu0 0
        %1366 = vmatprep.subr.bf16.mxu0 0
        %1367 = vmatpush1.bf16.xpose.msra.mxu0 0
        %1368 = vmatprep.subr.bf16.mxu0 0
        %1369 = vmatpush1.bf16.xpose.msra.mxu0 0
        %1370 = vmatprep.subr.bf16.mxu0 0
        %1371 = vmatpush1.bf16.xpose.msra.mxu0 0
        %1372 = vmatprep.subr.bf16.mxu0 0
        %1373 = vmatpush1.bf16.xpose.msra.mxu0 0
        %1374 = vmatprep.subr.bf16.mxu0 0
        %1375 = vmatpush1.bf16.xpose.msra.mxu0 0
        %1376 = vmatprep.subr.bf16.mxu0 0
        %1377 = vmatpush1.bf16.xpose.msra.mxu0 0
        %1378 = vmatprep.subr.bf16.mxu0 0
        %1379 = vmatpush1.bf16.xpose.msra.mxu0 0
        %1380 = vmatprep.subr.bf16.mxu0 0
        %1381 = vmatpush1.bf16.xpose.msra.mxu0 0
        %1382 = vmatprep.subr.bf16.mxu0 0
        %1383 = vmatpush1.bf16.xpose.msra.mxu0 0
        %1384 = vmatprep.subr.bf16.mxu0 0
        %1385 = vmatpush1.bf16.xpose.msra.mxu0 0
        %1386 = vmatprep.subr.bf16.mxu0 0
        %1387 = vmatpush1.bf16.xpose.msra.mxu0 0
        %1388 = vmatprep.subr.bf16.mxu0 0
        %1389 = vmatpush1.bf16.xpose.msra.mxu0 0
        %1390 = vmatprep.mubr.bf16.mxu0 0
        %1391 = vmatmul.mubr.bf16.gmra.mrb[0].mxu0 %v1353
        %v1392 = vpop.f32.mrb[0].mxu0
        %v1393 = vadd.f32 %v1350, %v1392
        %v1394 = vpop.f32.mrb[0].mxu0
        %v1395 = vpop.f32.mrb[0].mxu0
        %v1396 = vadd.f32 %v1351, %v1395
        %v1397 = vpop.f32.mrb[0].mxu0
        %1398 = vdwg.mxu0
        %v1400 = vsel %vm768, %v1344, 0
        %v1403 = vsel %vm768, %v1346, 0
        %1405 = vmatprep.subr.bf16.mxu0 0
        %1406 = vmatpush1.bf16.xpose.msra.mxu0 %v1403
        %1407 = vmatprep.subr.bf16.mxu0 0
        %1408 = vmatpush1.bf16.xpose.msra.mxu0 0
        %1409 = vmatprep.subr.bf16.mxu0 0
        %1410 = vmatpush1.bf16.xpose.msra.mxu0 0
        %1411 = vmatprep.subr.bf16.mxu0 0
        %1412 = vmatpush1.bf16.xpose.msra.mxu0 0
        %1413 = vmatprep.subr.bf16.mxu0 0
        %1414 = vmatpush1.bf16.xpose.msra.mxu0 0
        %1415 = vmatprep.subr.bf16.mxu0 0
        %1416 = vmatpush1.bf16.xpose.msra.mxu0 0
        %1417 = vmatprep.subr.bf16.mxu0 0
        %1418 = vmatpush1.bf16.xpose.msra.mxu0 0
        %1419 = vmatprep.subr.bf16.mxu0 0
        %1420 = vmatpush1.bf16.xpose.msra.mxu0 0
        %1421 = vmatprep.subr.bf16.mxu0 0
        %1422 = vmatpush1.bf16.xpose.msra.mxu0 0
        %1423 = vmatprep.subr.bf16.mxu0 0
        %1424 = vmatpush1.bf16.xpose.msra.mxu0 0
        %1425 = vmatprep.subr.bf16.mxu0 0
        %1426 = vmatpush1.bf16.xpose.msra.mxu0 0
        %1427 = vmatprep.subr.bf16.mxu0 0
        %1428 = vmatpush1.bf16.xpose.msra.mxu0 0
        %1429 = vmatprep.subr.bf16.mxu0 0
        %1430 = vmatpush1.bf16.xpose.msra.mxu0 0
        %1431 = vmatprep.subr.bf16.mxu0 0
        %1432 = vmatpush1.bf16.xpose.msra.mxu0 0
        %1433 = vmatprep.subr.bf16.mxu0 0
        %1434 = vmatpush1.bf16.xpose.msra.mxu0 0
        %1435 = vmatprep.subr.bf16.mxu0 0
        %1436 = vmatpush1.bf16.xpose.msra.mxu0 0
        %1437 = vmatprep.mubr.bf16.mxu0 0
        %1438 = vmatmul.mubr.bf16.gmra.mrb[0].mxu0 %v1400
        %v1439 = vpop.f32.mrb[0].mxu0
        %v1440 = vadd.f32 %v1350, %v1439
        %v1441 = vpop.f32.mrb[0].mxu0
        %v1442 = vpop.f32.mrb[0].mxu0
        %v1443 = vadd.f32 %v1351, %v1442
        %v1444 = vpop.f32.mrb[0].mxu0
        %1445 = vdwg.mxu0
        %v1446 = vsel %vm928, %v1393, -inf
        %1447 = vmax.xlane.f32.xlu0 %v1446
        %v1448 = vpop.xlane.xlu0 %1447
        %v1449 = vsel %vm928, %v1396, -inf
        %1450 = vmax.xlane.f32.xlu0 %v1449
        %v1451 = vpop.xlane.xlu0 %1450
        %v1452 = vsel %vm928, %v1440, -inf
        %1453 = vmax.xlane.f32.xlu0 %v1452
        %v1454 = vpop.xlane.xlu0 %1453
        %v1455 = vsel %vm928, %v1443, -inf
        %1456 = vmax.xlane.f32.xlu0 %v1455
        %v1457 = vpop.xlane.xlu0 %1456
        %v1458 = vsub.f32 %v1393, %v1448
        %v1459 = vsub.f32 %v1396, %v1451
        %v1460 = vsub.f32 %v1440, %v1454
        %v1461 = vsub.f32 %v1443, %v1457
        %v1462 = vmul.f32 %v1458, 1.442695
        %v1463 = vpow.pop %v1462
        %v1464 = vmul.f32 %v1459, 1.442695
        %v1465 = vpow.pop %v1464
        %v1466 = vmul.f32 %v1460, 1.442695
        %v1467 = vpow.pop %v1466
        %v1468 = vmul.f32 %v1461, 1.442695
        %v1469 = vpow.pop %v1468
        %v1470 = vsel %vm928, %v1463, 0.0
        %1471 = vadd.xlane.f32.xlu0 %v1470
        %v1472 = vpop.xlane.xlu0 %1471
        %v1473 = vsel %vm928, %v1465, 0.0
        %1474 = vadd.xlane.f32.xlu0 %v1473
        %v1475 = vpop.xlane.xlu0 %1474
        %v1476 = vsel %vm928, %v1467, 0.0
        %1477 = vadd.xlane.f32.xlu0 %v1476
        %v1478 = vpop.xlane.xlu0 %1477
        %v1479 = vsel %vm928, %v1469, 0.0
        %1480 = vadd.xlane.f32.xlu0 %v1479
        %v1481 = vpop.xlane.xlu0 %1480
        %v1482 = vpack.c.bf16 %v1465, %v1463
        %v1483 = vpack.c.bf16 %v1469, %v1467
        %v1485 = vsel %vm928, %v1482, 0
        %1487 = vmatprep.subr.bf16.mxu0 0
        %1488 = vmatpush1.bf16.msra.mxu0 %v1347
        %1489 = vmatprep.subr.bf16.mxu0 0
        %1490 = vmatpush1.bf16.msra.mxu0 0
        %1491 = vmatprep.subr.bf16.mxu0 0
        %1492 = vmatpush1.bf16.msra.mxu0 0
        %1493 = vmatprep.subr.bf16.mxu0 0
        %1494 = vmatpush1.bf16.msra.mxu0 0
        %1495 = vmatprep.subr.bf16.mxu0 0
        %1496 = vmatpush1.bf16.msra.mxu0 0
        %1497 = vmatprep.subr.bf16.mxu0 0
        %1498 = vmatpush1.bf16.msra.mxu0 0
        %1499 = vmatprep.subr.bf16.mxu0 0
        %1500 = vmatpush1.bf16.msra.mxu0 0
        %1501 = vmatprep.subr.bf16.mxu0 0
        %1502 = vmatpush1.bf16.msra.mxu0 0
        %1503 = vmatprep.subr.bf16.mxu0 0
        %1504 = vmatpush1.bf16.msra.mxu0 0
        %1505 = vmatprep.subr.bf16.mxu0 0
        %1506 = vmatpush1.bf16.msra.mxu0 0
        %1507 = vmatprep.subr.bf16.mxu0 0
        %1508 = vmatpush1.bf16.msra.mxu0 0
        %1509 = vmatprep.subr.bf16.mxu0 0
        %1510 = vmatpush1.bf16.msra.mxu0 0
        %1511 = vmatprep.subr.bf16.mxu0 0
        %1512 = vmatpush1.bf16.msra.mxu0 0
        %1513 = vmatprep.subr.bf16.mxu0 0
        %1514 = vmatpush1.bf16.msra.mxu0 0
        %1515 = vmatprep.subr.bf16.mxu0 0
        %1516 = vmatpush1.bf16.msra.mxu0 0
        %1517 = vmatprep.subr.bf16.mxu0 0
        %1518 = vmatpush1.bf16.msra.mxu0 0
        %1519 = vmatprep.mubr.bf16.mxu0 0
        %1520 = vmatmul.mubr.bf16.gmra.mrb[0].mxu0 %v1485
        %v1521 = vpop.f32.mrb[0].mxu0
        %v1522 = vadd.f32 0.0, %v1521
        %v1523 = vpop.f32.mrb[0].mxu0
        %v1524 = vpop.f32.mrb[0].mxu0
        %v1525 = vadd.f32 0.0, %v1524
        %v1526 = vpop.f32.mrb[0].mxu0
        %1527 = vdwg.mxu0
        %v1529 = vsel %vm928, %v1483, 0
        %1531 = vmatprep.subr.bf16.mxu0 0
        %1532 = vmatpush1.bf16.msra.mxu0 %v1348
        %1533 = vmatprep.subr.bf16.mxu0 0
        %1534 = vmatpush1.bf16.msra.mxu0 0
        %1535 = vmatprep.subr.bf16.mxu0 0
        %1536 = vmatpush1.bf16.msra.mxu0 0
        %1537 = vmatprep.subr.bf16.mxu0 0
        %1538 = vmatpush1.bf16.msra.mxu0 0
        %1539 = vmatprep.subr.bf16.mxu0 0
        %1540 = vmatpush1.bf16.msra.mxu0 0
        %1541 = vmatprep.subr.bf16.mxu0 0
        %1542 = vmatpush1.bf16.msra.mxu0 0
        %1543 = vmatprep.subr.bf16.mxu0 0
        %1544 = vmatpush1.bf16.msra.mxu0 0
        %1545 = vmatprep.subr.bf16.mxu0 0
        %1546 = vmatpush1.bf16.msra.mxu0 0
        %1547 = vmatprep.subr.bf16.mxu0 0
        %1548 = vmatpush1.bf16.msra.mxu0 0
        %1549 = vmatprep.subr.bf16.mxu0 0
        %1550 = vmatpush1.bf16.msra.mxu0 0
        %1551 = vmatprep.subr.bf16.mxu0 0
        %1552 = vmatpush1.bf16.msra.mxu0 0
        %1553 = vmatprep.subr.bf16.mxu0 0
        %1554 = vmatpush1.bf16.msra.mxu0 0
        %1555 = vmatprep.subr.bf16.mxu0 0
        %1556 = vmatpush1.bf16.msra.mxu0 0
        %1557 = vmatprep.subr.bf16.mxu0 0
        %1558 = vmatpush1.bf16.msra.mxu0 0
        %1559 = vmatprep.subr.bf16.mxu0 0
        %1560 = vmatpush1.bf16.msra.mxu0 0
        %1561 = vmatprep.subr.bf16.mxu0 0
        %1562 = vmatpush1.bf16.msra.mxu0 0
        %1563 = vmatprep.mubr.bf16.mxu0 0
        %1564 = vmatmul.mubr.bf16.gmra.mrb[0].mxu0 %v1529
        %v1565 = vpop.f32.mrb[0].mxu0
        %v1566 = vadd.f32 0.0, %v1565
        %v1567 = vpop.f32.mrb[0].mxu0
        %v1568 = vpop.f32.mrb[0].mxu0
        %v1569 = vadd.f32 0.0, %v1568
        %v1570 = vpop.f32.mrb[0].mxu0
        %1571 = vdwg.mxu0
        %v1572 = vrcp.pop %v1472
        %v1573 = vrcp.pop %v1475
        %v1574 = vrcp.pop %v1478
        %v1575 = vrcp.pop %v1481
        %v1576 = vmul.f32 %v1522, %v1572
        %v1577 = vmul.f32 %v1525, %v1573
        %v1578 = vmul.f32 %v1566, %v1574
        %v1579 = vmul.f32 %v1569, %v1575
        %v1580 = vpack.c.bf16 %v1577, %v1576
        %v1581 = vpack.c.bf16 %v1579, %v1578
        %s1582 = scalar_lea.vmem %s526, 4
        %v1583 = vld [vmem:[%s1582] sm:$0xf]
        %v1585 = vsel %vm768, %v1580, 0
        %v1588 = vsel %vm768, %v1581, 0
        %vm1590 = vcmask 1043456
        %v1592 = vsel %vm1590, %v1583, 0
        %1594 = vmatprep.subr.bf16.mxu0 0
        %1595 = vmatpush1.bf16.msra.mxu0 %v1592
        %1596 = vmatprep.subr.bf16.mxu0 0
        %1597 = vmatpush1.bf16.msra.mxu0 0
        %1598 = vmatprep.subr.bf16.mxu0 0
        %1599 = vmatpush1.bf16.msra.mxu0 0
        %1600 = vmatprep.subr.bf16.mxu0 0
        %1601 = vmatpush1.bf16.msra.mxu0 0
        %1602 = vmatprep.subr.bf16.mxu0 0
        %1603 = vmatpush1.bf16.msra.mxu0 0
        %1604 = vmatprep.subr.bf16.mxu0 0
        %1605 = vmatpush1.bf16.msra.mxu0 0
        %1606 = vmatprep.subr.bf16.mxu0 0
        %1607 = vmatpush1.bf16.msra.mxu0 0
        %1608 = vmatprep.subr.bf16.mxu0 0
        %1609 = vmatpush1.bf16.msra.mxu0 0
        %1610 = vmatprep.subr.bf16.mxu0 0
        %1611 = vmatpush1.bf16.msra.mxu0 0
        %1612 = vmatprep.subr.bf16.mxu0 0
        %1613 = vmatpush1.bf16.msra.mxu0 0
        %1614 = vmatprep.subr.bf16.mxu0 0
        %1615 = vmatpush1.bf16.msra.mxu0 0
        %1616 = vmatprep.subr.bf16.mxu0 0
        %1617 = vmatpush1.bf16.msra.mxu0 0
        %1618 = vmatprep.subr.bf16.mxu0 0
        %1619 = vmatpush1.bf16.msra.mxu0 0
        %1620 = vmatprep.subr.bf16.mxu0 0
        %1621 = vmatpush1.bf16.msra.mxu0 0
        %1622 = vmatprep.subr.bf16.mxu0 0
        %1623 = vmatpush1.bf16.msra.mxu0 0
        %1624 = vmatprep.subr.bf16.mxu0 0
        %1625 = vmatpush1.bf16.msra.mxu0 0
        %1626 = vmatprep.mubr.bf16.mxu0 0
        %1627 = vmatmul.mubr.bf16.gmra.mrb[0].mxu0 %v1585
        %v1628 = vpop.f32.mrb[0].mxu0
        %v1629 = vadd.f32 0.0, %v1628
        %v1630 = vpop.f32.mrb[0].mxu0
        %v1631 = vpop.f32.mrb[0].mxu0
        %v1632 = vadd.f32 0.0, %v1631
        %v1633 = vpop.f32.mrb[0].mxu0
        %1634 = vmatprep.mubr.bf16.mxu0 0
        %1635 = vmatmul.mubr.bf16.gmra.mrb[0].mxu0 %v1588
        %v1636 = vpop.f32.mrb[0].mxu0
        %v1637 = vadd.f32 0.0, %v1636
        %v1638 = vpop.f32.mrb[0].mxu0
        %v1639 = vpop.f32.mrb[0].mxu0
        %v1640 = vadd.f32 0.0, %v1639
        %v1641 = vpop.f32.mrb[0].mxu0
        %1642 = vdwg.mxu0
        %v1644 = vsel %vm768, %v1063, 0
        %v1647 = vsel %vm768, %v1064, 0
        %v1650 = vsel %vm1590, %v1065, 0
        %1652 = vmatprep.subr.bf16.mxu0 0
        %1653 = vmatpush1.bf16.msra.mxu0 %v1650
        %1654 = vmatprep.subr.bf16.mxu0 0
        %1655 = vmatpush1.bf16.msra.mxu0 0
        %1656 = vmatprep.subr.bf16.mxu0 0
        %1657 = vmatpush1.bf16.msra.mxu0 0
        %1658 = vmatprep.subr.bf16.mxu0 0
        %1659 = vmatpush1.bf16.msra.mxu0 0
        %1660 = vmatprep.subr.bf16.mxu0 0
        %1661 = vmatpush1.bf16.msra.mxu0 0
        %1662 = vmatprep.subr.bf16.mxu0 0
        %1663 = vmatpush1.bf16.msra.mxu0 0
        %1664 = vmatprep.subr.bf16.mxu0 0
        %1665 = vmatpush1.bf16.msra.mxu0 0
        %1666 = vmatprep.subr.bf16.mxu0 0
        %1667 = vmatpush1.bf16.msra.mxu0 0
        %1668 = vmatprep.subr.bf16.mxu0 0
        %1669 = vmatpush1.bf16.msra.mxu0 0
        %1670 = vmatprep.subr.bf16.mxu0 0
        %1671 = vmatpush1.bf16.msra.mxu0 0
        %1672 = vmatprep.subr.bf16.mxu0 0
        %1673 = vmatpush1.bf16.msra.mxu0 0
        %1674 = vmatprep.subr.bf16.mxu0 0
        %1675 = vmatpush1.bf16.msra.mxu0 0
        %1676 = vmatprep.subr.bf16.mxu0 0
        %1677 = vmatpush1.bf16.msra.mxu0 0
        %1678 = vmatprep.subr.bf16.mxu0 0
        %1679 = vmatpush1.bf16.msra.mxu0 0
        %1680 = vmatprep.subr.bf16.mxu0 0
        %1681 = vmatpush1.bf16.msra.mxu0 0
        %1682 = vmatprep.subr.bf16.mxu0 0
        %1683 = vmatpush1.bf16.msra.mxu0 0
        %1684 = vmatprep.mubr.bf16.mxu0 0
        %1685 = vmatmul.mubr.bf16.gmra.mrb[0].mxu0 %v1644
        %v1686 = vpop.f32.mrb[0].mxu0
        %v1687 = vadd.f32 %v1629, %v1686
        %v1688 = vpop.f32.mrb[0].mxu0
        %v1689 = vpop.f32.mrb[0].mxu0
        %v1690 = vadd.f32 %v1632, %v1689
        %v1691 = vpop.f32.mrb[0].mxu0
        %1692 = vmatprep.mubr.bf16.mxu0 0
        %1693 = vmatmul.mubr.bf16.gmra.mrb[0].mxu0 %v1647
        %v1694 = vpop.f32.mrb[0].mxu0
        %v1695 = vadd.f32 %v1637, %v1694
        %v1696 = vpop.f32.mrb[0].mxu0
        %v1697 = vpop.f32.mrb[0].mxu0
        %v1698 = vadd.f32 %v1640, %v1697
        %v1699 = vpop.f32.mrb[0].mxu0
        %1700 = vdwg.mxu0
        %s1701 = scalar_lea.vmem %s503, 32
        %v1702 = vld [vmem:[%s1701] sm:$0xf]
        %v1703 = vld [vmem:[%s1701 + $0x4] sm:$0xf]
        %v1704 = vld [vmem:[%s1701 + $0x8] sm:$0xf]
        %v1705 = vld [vmem:[%s1701 + $0xc] sm:$0xf]
        %s1706 = scalar_lea.vmem %s517, 2
        %v1707 = vld [vmem:[%s1706] sm:$0x1]
        %v1709 = vlaneseq
        %v1710 = vshrl.u32 %v1709, 7
        %v1711 = vsub.s32 0, %v1710
        %v1712 = vrot.slane %v1707, %v1711
        %v1718 = vunpack.c.l.b16 %v1702
        %v1719 = vunpack.c.l.b16 %v1703
        %v1720 = vunpack.c.l.b16 %v1704
        %v1721 = vunpack.c.l.b16 %v1705
        %v1722 = vpack.c.b16 %v1719, %v1718
        %v1723 = vpack.c.b16 %v1721, %v1720
        %1726 = vmatprep.subr.bf16.mxu0 0
        %1727 = vmatpush1.bf16.msra.mxu0 %v1722
        %1728 = vmatprep.subr.bf16.mxu0 0
        %1729 = vmatpush1.bf16.msra.mxu0 %v1723
        %1730 = vmatprep.subr.bf16.mxu0 0
        %1731 = vmatpush1.bf16.msra.mxu0 0
        %1732 = vmatprep.subr.bf16.mxu0 0
        %1733 = vmatpush1.bf16.msra.mxu0 0
        %1734 = vmatprep.subr.bf16.mxu0 0
        %1735 = vmatpush1.bf16.msra.mxu0 0
        %1736 = vmatprep.subr.bf16.mxu0 0
        %1737 = vmatpush1.bf16.msra.mxu0 0
        %1738 = vmatprep.subr.bf16.mxu0 0
        %1739 = vmatpush1.bf16.msra.mxu0 0
        %1740 = vmatprep.subr.bf16.mxu0 0
        %1741 = vmatpush1.bf16.msra.mxu0 0
        %1742 = vmatprep.subr.bf16.mxu0 0
        %1743 = vmatpush1.bf16.msra.mxu0 0
        %1744 = vmatprep.subr.bf16.mxu0 0
        %1745 = vmatpush1.bf16.msra.mxu0 0
        %1746 = vmatprep.subr.bf16.mxu0 0
        %1747 = vmatpush1.bf16.msra.mxu0 0
        %1748 = vmatprep.subr.bf16.mxu0 0
        %1749 = vmatpush1.bf16.msra.mxu0 0
        %1750 = vmatprep.subr.bf16.mxu0 0
        %1751 = vmatpush1.bf16.msra.mxu0 0
        %1752 = vmatprep.subr.bf16.mxu0 0
        %1753 = vmatpush1.bf16.msra.mxu0 0
        %1754 = vmatprep.subr.bf16.mxu0 0
        %1755 = vmatpush1.bf16.msra.mxu0 0
        %1756 = vmatprep.subr.bf16.mxu0 0
        %1757 = vmatpush1.bf16.msra.mxu0 0
        %1758 = vmatprep.mubr.bf16.mxu0 0
        %1759 = vmatmul.mubr.bf16.gmra.mrb[0].mxu0 %v571
        %v1760 = vpop.f32.mrb[0].mxu0
        %v1761 = vadd.f32 %v1712, %v1760
        %v1762 = vpop.f32.mrb[0].mxu0
        %v1763 = vpop.f32.mrb[0].mxu0
        %v1764 = vadd.f32 %v1712, %v1763
        %v1765 = vpop.f32.mrb[0].mxu0
        %1766 = vmatprep.mubr.bf16.mxu0 0
        %1767 = vmatmul.mubr.bf16.gmra.mrb[0].mxu0 %v574
        %v1768 = vpop.f32.mrb[0].mxu0
        %v1769 = vadd.f32 %v1712, %v1768
        %v1770 = vpop.f32.mrb[0].mxu0
        %v1771 = vpop.f32.mrb[0].mxu0
        %v1772 = vadd.f32 %v1712, %v1771
        %v1773 = vpop.f32.mrb[0].mxu0
        %1774 = vdwg.mxu0
        %s1775 = scalar_lea.vmem %s508, 32
        %v1776 = vld [vmem:[%s1775] sm:$0xf]
        %v1777 = vld [vmem:[%s1775 + $0x4] sm:$0xf]
        %v1778 = vld [vmem:[%s1775 + $0x8] sm:$0xf]
        %v1779 = vld [vmem:[%s1775 + $0xc] sm:$0xf]
        %v1784 = vunpack.c.l.b16 %v1776
        %v1785 = vunpack.c.l.b16 %v1777
        %v1786 = vunpack.c.l.b16 %v1778
        %v1787 = vunpack.c.l.b16 %v1779
        %v1788 = vpack.c.b16 %v1785, %v1784
        %v1789 = vpack.c.b16 %v1787, %v1786
        %1792 = vmatprep.subr.bf16.mxu0 0
        %1793 = vmatpush1.bf16.msra.mxu0 %v1788
        %1794 = vmatprep.subr.bf16.mxu0 0
        %1795 = vmatpush1.bf16.msra.mxu0 %v1789
        %1796 = vmatprep.subr.bf16.mxu0 0
        %1797 = vmatpush1.bf16.msra.mxu0 0
        %1798 = vmatprep.subr.bf16.mxu0 0
        %1799 = vmatpush1.bf16.msra.mxu0 0
        %1800 = vmatprep.subr.bf16.mxu0 0
        %1801 = vmatpush1.bf16.msra.mxu0 0
        %1802 = vmatprep.subr.bf16.mxu0 0
        %1803 = vmatpush1.bf16.msra.mxu0 0
        %1804 = vmatprep.subr.bf16.mxu0 0
        %1805 = vmatpush1.bf16.msra.mxu0 0
        %1806 = vmatprep.subr.bf16.mxu0 0
        %1807 = vmatpush1.bf16.msra.mxu0 0
        %1808 = vmatprep.subr.bf16.mxu0 0
        %1809 = vmatpush1.bf16.msra.mxu0 0
        %1810 = vmatprep.subr.bf16.mxu0 0
        %1811 = vmatpush1.bf16.msra.mxu0 0
        %1812 = vmatprep.subr.bf16.mxu0 0
        %1813 = vmatpush1.bf16.msra.mxu0 0
        %1814 = vmatprep.subr.bf16.mxu0 0
        %1815 = vmatpush1.bf16.msra.mxu0 0
        %1816 = vmatprep.subr.bf16.mxu0 0
        %1817 = vmatpush1.bf16.msra.mxu0 0
        %1818 = vmatprep.subr.bf16.mxu0 0
        %1819 = vmatpush1.bf16.msra.mxu0 0
        %1820 = vmatprep.subr.bf16.mxu0 0
        %1821 = vmatpush1.bf16.msra.mxu0 0
        %1822 = vmatprep.subr.bf16.mxu0 0
        %1823 = vmatpush1.bf16.msra.mxu0 0
        %1824 = vmatprep.mubr.bf16.mxu0 0
        %1825 = vmatmul.mubr.bf16.gmra.mrb[0].mxu0 %v571
        %v1826 = vpop.f32.mrb[0].mxu0
        %v1827 = vadd.f32 0.0, %v1826
        %v1828 = vpop.f32.mrb[0].mxu0
        %v1829 = vpop.f32.mrb[0].mxu0
        %v1830 = vadd.f32 0.0, %v1829
        %v1831 = vpop.f32.mrb[0].mxu0
        %1832 = vmatprep.mubr.bf16.mxu0 0
        %1833 = vmatmul.mubr.bf16.gmra.mrb[0].mxu0 %v574
        %v1834 = vpop.f32.mrb[0].mxu0
        %v1835 = vadd.f32 0.0, %v1834
        %v1836 = vpop.f32.mrb[0].mxu0
        %v1837 = vpop.f32.mrb[0].mxu0
        %v1838 = vadd.f32 0.0, %v1837
        %v1839 = vpop.f32.mrb[0].mxu0
        %1840 = vdwg.mxu0
        %s1841 = scalar_lea.vmem %s513, 32
        %v1842 = vld [vmem:[%s1841] sm:$0xf]
        %v1843 = vld [vmem:[%s1841 + $0x4] sm:$0xf]
        %v1844 = vld [vmem:[%s1841 + $0x8] sm:$0xf]
        %v1845 = vld [vmem:[%s1841 + $0xc] sm:$0xf]
        %s1846 = scalar_lea.vmem %s521, 2
        %v1847 = vld [vmem:[%s1846] sm:$0x1]
        %v1849 = vlaneseq
        %v1850 = vshrl.u32 %v1849, 7
        %v1851 = vsub.s32 0, %v1850
        %v1852 = vrot.slane %v1847, %v1851
        %v1858 = vunpack.c.l.b16 %v1842
        %v1859 = vunpack.c.l.b16 %v1843
        %v1860 = vunpack.c.l.b16 %v1844
        %v1861 = vunpack.c.l.b16 %v1845
        %v1862 = vpack.c.b16 %v1859, %v1858
        %v1863 = vpack.c.b16 %v1861, %v1860
        %1866 = vmatprep.subr.bf16.mxu0 0
        %1867 = vmatpush1.bf16.msra.mxu0 %v1862
        %1868 = vmatprep.subr.bf16.mxu0 0
        %1869 = vmatpush1.bf16.msra.mxu0 %v1863
        %1870 = vmatprep.subr.bf16.mxu0 0
        %1871 = vmatpush1.bf16.msra.mxu0 0
        %1872 = vmatprep.subr.bf16.mxu0 0
        %1873 = vmatpush1.bf16.msra.mxu0 0
        %1874 = vmatprep.subr.bf16.mxu0 0
        %1875 = vmatpush1.bf16.msra.mxu0 0
        %1876 = vmatprep.subr.bf16.mxu0 0
        %1877 = vmatpush1.bf16.msra.mxu0 0
        %1878 = vmatprep.subr.bf16.mxu0 0
        %1879 = vmatpush1.bf16.msra.mxu0 0
        %1880 = vmatprep.subr.bf16.mxu0 0
        %1881 = vmatpush1.bf16.msra.mxu0 0
        %1882 = vmatprep.subr.bf16.mxu0 0
        %1883 = vmatpush1.bf16.msra.mxu0 0
        %1884 = vmatprep.subr.bf16.mxu0 0
        %1885 = vmatpush1.bf16.msra.mxu0 0
        %1886 = vmatprep.subr.bf16.mxu0 0
        %1887 = vmatpush1.bf16.msra.mxu0 0
        %1888 = vmatprep.subr.bf16.mxu0 0
        %1889 = vmatpush1.bf16.msra.mxu0 0
        %1890 = vmatprep.subr.bf16.mxu0 0
        %1891 = vmatpush1.bf16.msra.mxu0 0
        %1892 = vmatprep.subr.bf16.mxu0 0
        %1893 = vmatpush1.bf16.msra.mxu0 0
        %1894 = vmatprep.subr.bf16.mxu0 0
        %1895 = vmatpush1.bf16.msra.mxu0 0
        %1896 = vmatprep.subr.bf16.mxu0 0
        %1897 = vmatpush1.bf16.msra.mxu0 0
        %1898 = vmatprep.mubr.bf16.mxu0 0
        %1899 = vmatmul.mubr.bf16.gmra.mrb[0].mxu0 %v571
        %v1900 = vpop.f32.mrb[0].mxu0
        %v1901 = vadd.f32 %v1852, %v1900
        %v1902 = vpop.f32.mrb[0].mxu0
        %v1903 = vpop.f32.mrb[0].mxu0
        %v1904 = vadd.f32 %v1852, %v1903
        %v1905 = vpop.f32.mrb[0].mxu0
        %1906 = vmatprep.mubr.bf16.mxu0 0
        %1907 = vmatmul.mubr.bf16.gmra.mrb[0].mxu0 %v574
        %v1908 = vpop.f32.mrb[0].mxu0
        %v1909 = vadd.f32 %v1852, %v1908
        %v1910 = vpop.f32.mrb[0].mxu0
        %v1911 = vpop.f32.mrb[0].mxu0
        %v1912 = vadd.f32 %v1852, %v1911
        %v1913 = vpop.f32.mrb[0].mxu0
        %1914 = vdwg.mxu0
        %s1915 = sadd.s32 %s762, 2
        %s1916 = sld [smem:[#allocation2 + %s1915]]
        %v1917 = vmul.f32 %v1761, %v1761
        %v1918 = vmul.f32 %v1764, %v1764
        %v1919 = vmul.f32 %v1769, %v1769
        %v1920 = vmul.f32 %v1772, %v1772
        %v1921 = vsel %vm768, %v1917, 0.0
        %1922 = vadd.xlane.f32.xlu0 %v1921
        %v1923 = vpop.xlane.xlu0 %1922
        %v1924 = vsel %vm768, %v1918, 0.0
        %1925 = vadd.xlane.f32.xlu0 %v1924
        %v1926 = vpop.xlane.xlu0 %1925
        %v1927 = vsel %vm768, %v1919, 0.0
        %1928 = vadd.xlane.f32.xlu0 %v1927
        %v1929 = vpop.xlane.xlu0 %1928
        %v1930 = vsel %vm768, %v1920, 0.0
        %1931 = vadd.xlane.f32.xlu0 %v1930
        %v1932 = vpop.xlane.xlu0 %1931
        %v1933 = vmax.f32 %v1923, 1e-24
        %v1934 = vmax.f32 %v1926, 1e-24
        %v1935 = vmax.f32 %v1929, 1e-24
        %v1936 = vmax.f32 %v1932, 1e-24
        %v1937 = vrsqrt.pop %v1933
        %v1938 = vrsqrt.pop %v1934
        %v1939 = vrsqrt.pop %v1935
        %v1940 = vrsqrt.pop %v1936
        %v1941 = vstv %s1916
        %v1942 = vmul.f32 %v1937, %v1941
        %v1943 = vmul.f32 %v1938, %v1941
        %v1944 = vmul.f32 %v1939, %v1941
        %v1945 = vmul.f32 %v1940, %v1941
        %v1946 = vmul.f32 %v1761, %v1942
        %v1947 = vmul.f32 %v1764, %v1943
        %v1948 = vmul.f32 %v1769, %v1944
        %v1949 = vmul.f32 %v1772, %v1945
        %v1950 = vmul.f32 %v1827, %v1827
        %v1951 = vmul.f32 %v1830, %v1830
        %v1952 = vmul.f32 %v1835, %v1835
        %v1953 = vmul.f32 %v1838, %v1838
        %v1954 = vsel %vm768, %v1950, 0.0
        %1955 = vadd.xlane.f32.xlu0 %v1954
        %v1956 = vpop.xlane.xlu0 %1955
        %v1957 = vsel %vm768, %v1951, 0.0
        %1958 = vadd.xlane.f32.xlu0 %v1957
        %v1959 = vpop.xlane.xlu0 %1958
        %v1960 = vsel %vm768, %v1952, 0.0
        %1961 = vadd.xlane.f32.xlu0 %v1960
        %v1962 = vpop.xlane.xlu0 %1961
        %v1963 = vsel %vm768, %v1953, 0.0
        %1964 = vadd.xlane.f32.xlu0 %v1963
        %v1965 = vpop.xlane.xlu0 %1964
        %v1966 = vmax.f32 %v1956, 1e-24
        %v1967 = vmax.f32 %v1959, 1e-24
        %v1968 = vmax.f32 %v1962, 1e-24
        %v1969 = vmax.f32 %v1965, 1e-24
        %v1970 = vrsqrt.pop %v1966
        %v1971 = vrsqrt.pop %v1967
        %v1972 = vrsqrt.pop %v1968
        %v1973 = vrsqrt.pop %v1969
        %v1974 = vmul.f32 %v1827, %v1970
        %v1975 = vmul.f32 %v1830, %v1971
        %v1976 = vmul.f32 %v1835, %v1972
        %v1977 = vmul.f32 %v1838, %v1973
        %v1978 = vpack.c.bf16 %v1947, %v1946
        %v1979 = vpack.c.bf16 %v1949, %v1948
        %v1980 = vpack.c.bf16 %v1975, %v1974
        %v1981 = vpack.c.bf16 %v1977, %v1976
        %v1982 = vpack.c.bf16 %v1904, %v1901
        %v1983 = vpack.c.bf16 %v1912, %v1909
        %s1984 = scalar_lea.vmem %s7, 32
        %v1985 = vld [vmem:[%s1984] sm:$0xff]
        %v1986 = vld [vmem:[%s1984 + $0x8] sm:$0xff]
        %v1988 = vsel %vm768, %v1978, 0
        %v1991 = vsel %vm768, %v1980, 0
        %1993 = vmatprep.subr.bf16.mxu0 0
        %1994 = vmatpush1.bf16.xpose.msra.mxu0 %v1991
        %1995 = vmatprep.subr.bf16.mxu0 0
        %1996 = vmatpush1.bf16.xpose.msra.mxu0 0
        %1997 = vmatprep.subr.bf16.mxu0 0
        %1998 = vmatpush1.bf16.xpose.msra.mxu0 0
        %1999 = vmatprep.subr.bf16.mxu0 0
        %2000 = vmatpush1.bf16.xpose.msra.mxu0 0
        %2001 = vmatprep.subr.bf16.mxu0 0
        %2002 = vmatpush1.bf16.xpose.msra.mxu0 0
        %2003 = vmatprep.subr.bf16.mxu0 0
        %2004 = vmatpush1.bf16.xpose.msra.mxu0 0
        %2005 = vmatprep.subr.bf16.mxu0 0
        %2006 = vmatpush1.bf16.xpose.msra.mxu0 0
        %2007 = vmatprep.subr.bf16.mxu0 0
        %2008 = vmatpush1.bf16.xpose.msra.mxu0 0
        %2009 = vmatprep.subr.bf16.mxu0 0
        %2010 = vmatpush1.bf16.xpose.msra.mxu0 0
        %2011 = vmatprep.subr.bf16.mxu0 0
        %2012 = vmatpush1.bf16.xpose.msra.mxu0 0
        %2013 = vmatprep.subr.bf16.mxu0 0
        %2014 = vmatpush1.bf16.xpose.msra.mxu0 0
        %2015 = vmatprep.subr.bf16.mxu0 0
        %2016 = vmatpush1.bf16.xpose.msra.mxu0 0
        %2017 = vmatprep.subr.bf16.mxu0 0
        %2018 = vmatpush1.bf16.xpose.msra.mxu0 0
        %2019 = vmatprep.subr.bf16.mxu0 0
        %2020 = vmatpush1.bf16.xpose.msra.mxu0 0
        %2021 = vmatprep.subr.bf16.mxu0 0
        %2022 = vmatpush1.bf16.xpose.msra.mxu0 0
        %2023 = vmatprep.subr.bf16.mxu0 0
        %2024 = vmatpush1.bf16.xpose.msra.mxu0 0
        %2025 = vmatprep.mubr.bf16.mxu0 0
        %2026 = vmatmul.mubr.bf16.gmra.mrb[0].mxu0 %v1988
        %v2027 = vpop.f32.mrb[0].mxu0
        %v2028 = vadd.f32 %v1985, %v2027
        %v2029 = vpop.f32.mrb[0].mxu0
        %v2030 = vpop.f32.mrb[0].mxu0
        %v2031 = vadd.f32 %v1986, %v2030
        %v2032 = vpop.f32.mrb[0].mxu0
        %2033 = vdwg.mxu0
        %v2035 = vsel %vm768, %v1979, 0
        %v2038 = vsel %vm768, %v1981, 0
        %2040 = vmatprep.subr.bf16.mxu0 0
        %2041 = vmatpush1.bf16.xpose.msra.mxu0 %v2038
        %2042 = vmatprep.subr.bf16.mxu0 0
        %2043 = vmatpush1.bf16.xpose.msra.mxu0 0
        %2044 = vmatprep.subr.bf16.mxu0 0
        %2045 = vmatpush1.bf16.xpose.msra.mxu0 0
        %2046 = vmatprep.subr.bf16.mxu0 0
        %2047 = vmatpush1.bf16.xpose.msra.mxu0 0
        %2048 = vmatprep.subr.bf16.mxu0 0
        %2049 = vmatpush1.bf16.xpose.msra.mxu0 0
        %2050 = vmatprep.subr.bf16.mxu0 0
        %2051 = vmatpush1.bf16.xpose.msra.mxu0 0
        %2052 = vmatprep.subr.bf16.mxu0 0
        %2053 = vmatpush1.bf16.xpose.msra.mxu0 0
        %2054 = vmatprep.subr.bf16.mxu0 0
        %2055 = vmatpush1.bf16.xpose.msra.mxu0 0
        %2056 = vmatprep.subr.bf16.mxu0 0
        %2057 = vmatpush1.bf16.xpose.msra.mxu0 0
        %2058 = vmatprep.subr.bf16.mxu0 0
        %2059 = vmatpush1.bf16.xpose.msra.mxu0 0
        %2060 = vmatprep.subr.bf16.mxu0 0
        %2061 = vmatpush1.bf16.xpose.msra.mxu0 0
        %2062 = vmatprep.subr.bf16.mxu0 0
        %2063 = vmatpush1.bf16.xpose.msra.mxu0 0
        %2064 = vmatprep.subr.bf16.mxu0 0
        %2065 = vmatpush1.bf16.xpose.msra.mxu0 0
        %2066 = vmatprep.subr.bf16.mxu0 0
        %2067 = vmatpush1.bf16.xpose.msra.mxu0 0
        %2068 = vmatprep.subr.bf16.mxu0 0
        %2069 = vmatpush1.bf16.xpose.msra.mxu0 0
        %2070 = vmatprep.subr.bf16.mxu0 0
        %2071 = vmatpush1.bf16.xpose.msra.mxu0 0
        %2072 = vmatprep.mubr.bf16.mxu0 0
        %2073 = vmatmul.mubr.bf16.gmra.mrb[0].mxu0 %v2035
        %v2074 = vpop.f32.mrb[0].mxu0
        %v2075 = vadd.f32 %v1985, %v2074
        %v2076 = vpop.f32.mrb[0].mxu0
        %v2077 = vpop.f32.mrb[0].mxu0
        %v2078 = vadd.f32 %v1986, %v2077
        %v2079 = vpop.f32.mrb[0].mxu0
        %2080 = vdwg.mxu0
        %v2081 = vsel %vm928, %v2028, -inf
        %2082 = vmax.xlane.f32.xlu0 %v2081
        %v2083 = vpop.xlane.xlu0 %2082
        %v2084 = vsel %vm928, %v2031, -inf
        %2085 = vmax.xlane.f32.xlu0 %v2084
        %v2086 = vpop.xlane.xlu0 %2085
        %v2087 = vsel %vm928, %v2075, -inf
        %2088 = vmax.xlane.f32.xlu0 %v2087
        %v2089 = vpop.xlane.xlu0 %2088
        %v2090 = vsel %vm928, %v2078, -inf
        %2091 = vmax.xlane.f32.xlu0 %v2090
        %v2092 = vpop.xlane.xlu0 %2091
        %v2093 = vsub.f32 %v2028, %v2083
        %v2094 = vsub.f32 %v2031, %v2086
        %v2095 = vsub.f32 %v2075, %v2089
        %v2096 = vsub.f32 %v2078, %v2092
        %v2097 = vmul.f32 %v2093, 1.442695
        %v2098 = vpow.pop %v2097
        %v2099 = vmul.f32 %v2094, 1.442695
        %v2100 = vpow.pop %v2099
        %v2101 = vmul.f32 %v2095, 1.442695
        %v2102 = vpow.pop %v2101
        %v2103 = vmul.f32 %v2096, 1.442695
        %v2104 = vpow.pop %v2103
        %v2105 = vsel %vm928, %v2098, 0.0
        %2106 = vadd.xlane.f32.xlu0 %v2105
        %v2107 = vpop.xlane.xlu0 %2106
        %v2108 = vsel %vm928, %v2100, 0.0
        %2109 = vadd.xlane.f32.xlu0 %v2108
        %v2110 = vpop.xlane.xlu0 %2109
        %v2111 = vsel %vm928, %v2102, 0.0
        %2112 = vadd.xlane.f32.xlu0 %v2111
        %v2113 = vpop.xlane.xlu0 %2112
        %v2114 = vsel %vm928, %v2104, 0.0
        %2115 = vadd.xlane.f32.xlu0 %v2114
        %v2116 = vpop.xlane.xlu0 %2115
        %v2117 = vpack.c.bf16 %v2100, %v2098
        %v2118 = vpack.c.bf16 %v2104, %v2102
        %v2120 = vsel %vm928, %v2117, 0
        %2122 = vmatprep.subr.bf16.mxu0 0
        %2123 = vmatpush1.bf16.msra.mxu0 %v1982
        %2124 = vmatprep.subr.bf16.mxu0 0
        %2125 = vmatpush1.bf16.msra.mxu0 0
        %2126 = vmatprep.subr.bf16.mxu0 0
        %2127 = vmatpush1.bf16.msra.mxu0 0
        %2128 = vmatprep.subr.bf16.mxu0 0
        %2129 = vmatpush1.bf16.msra.mxu0 0
        %2130 = vmatprep.subr.bf16.mxu0 0
        %2131 = vmatpush1.bf16.msra.mxu0 0
        %2132 = vmatprep.subr.bf16.mxu0 0
        %2133 = vmatpush1.bf16.msra.mxu0 0
        %2134 = vmatprep.subr.bf16.mxu0 0
        %2135 = vmatpush1.bf16.msra.mxu0 0
        %2136 = vmatprep.subr.bf16.mxu0 0
        %2137 = vmatpush1.bf16.msra.mxu0 0
        %2138 = vmatprep.subr.bf16.mxu0 0
        %2139 = vmatpush1.bf16.msra.mxu0 0
        %2140 = vmatprep.subr.bf16.mxu0 0
        %2141 = vmatpush1.bf16.msra.mxu0 0
        %2142 = vmatprep.subr.bf16.mxu0 0
        %2143 = vmatpush1.bf16.msra.mxu0 0
        %2144 = vmatprep.subr.bf16.mxu0 0
        %2145 = vmatpush1.bf16.msra.mxu0 0
        %2146 = vmatprep.subr.bf16.mxu0 0
        %2147 = vmatpush1.bf16.msra.mxu0 0
        %2148 = vmatprep.subr.bf16.mxu0 0
        %2149 = vmatpush1.bf16.msra.mxu0 0
        %2150 = vmatprep.subr.bf16.mxu0 0
        %2151 = vmatpush1.bf16.msra.mxu0 0
        %2152 = vmatprep.subr.bf16.mxu0 0
        %2153 = vmatpush1.bf16.msra.mxu0 0
        %2154 = vmatprep.mubr.bf16.mxu0 0
        %2155 = vmatmul.mubr.bf16.gmra.mrb[0].mxu0 %v2120
        %v2156 = vpop.f32.mrb[0].mxu0
        %v2157 = vadd.f32 0.0, %v2156
        %v2158 = vpop.f32.mrb[0].mxu0
        %v2159 = vpop.f32.mrb[0].mxu0
        %v2160 = vadd.f32 0.0, %v2159
        %v2161 = vpop.f32.mrb[0].mxu0
        %2162 = vdwg.mxu0
        %v2164 = vsel %vm928, %v2118, 0
        %2166 = vmatprep.subr.bf16.mxu0 0
        %2167 = vmatpush1.bf16.msra.mxu0 %v1983
        %2168 = vmatprep.subr.bf16.mxu0 0
        %2169 = vmatpush1.bf16.msra.mxu0 0
        %2170 = vmatprep.subr.bf16.mxu0 0
        %2171 = vmatpush1.bf16.msra.mxu0 0
        %2172 = vmatprep.subr.bf16.mxu0 0
        %2173 = vmatpush1.bf16.msra.mxu0 0
        %2174 = vmatprep.subr.bf16.mxu0 0
        %2175 = vmatpush1.bf16.msra.mxu0 0
        %2176 = vmatprep.subr.bf16.mxu0 0
        %2177 = vmatpush1.bf16.msra.mxu0 0
        %2178 = vmatprep.subr.bf16.mxu0 0
        %2179 = vmatpush1.bf16.msra.mxu0 0
        %2180 = vmatprep.subr.bf16.mxu0 0
        %2181 = vmatpush1.bf16.msra.mxu0 0
        %2182 = vmatprep.subr.bf16.mxu0 0
        %2183 = vmatpush1.bf16.msra.mxu0 0
        %2184 = vmatprep.subr.bf16.mxu0 0
        %2185 = vmatpush1.bf16.msra.mxu0 0
        %2186 = vmatprep.subr.bf16.mxu0 0
        %2187 = vmatpush1.bf16.msra.mxu0 0
        %2188 = vmatprep.subr.bf16.mxu0 0
        %2189 = vmatpush1.bf16.msra.mxu0 0
        %2190 = vmatprep.subr.bf16.mxu0 0
        %2191 = vmatpush1.bf16.msra.mxu0 0
        %2192 = vmatprep.subr.bf16.mxu0 0
        %2193 = vmatpush1.bf16.msra.mxu0 0
        %2194 = vmatprep.subr.bf16.mxu0 0
        %2195 = vmatpush1.bf16.msra.mxu0 0
        %2196 = vmatprep.subr.bf16.mxu0 0
        %2197 = vmatpush1.bf16.msra.mxu0 0
        %2198 = vmatprep.mubr.bf16.mxu0 0
        %2199 = vmatmul.mubr.bf16.gmra.mrb[0].mxu0 %v2164
        %v2200 = vpop.f32.mrb[0].mxu0
        %v2201 = vadd.f32 0.0, %v2200
        %v2202 = vpop.f32.mrb[0].mxu0
        %v2203 = vpop.f32.mrb[0].mxu0
        %v2204 = vadd.f32 0.0, %v2203
        %v2205 = vpop.f32.mrb[0].mxu0
        %2206 = vdwg.mxu0
        %v2207 = vrcp.pop %v2107
        %v2208 = vrcp.pop %v2110
        %v2209 = vrcp.pop %v2113
        %v2210 = vrcp.pop %v2116
        %v2211 = vmul.f32 %v2157, %v2207
        %v2212 = vmul.f32 %v2160, %v2208
        %v2213 = vmul.f32 %v2201, %v2209
        %v2214 = vmul.f32 %v2204, %v2210
        %v2215 = vpack.c.bf16 %v2212, %v2211
        %v2216 = vpack.c.bf16 %v2214, %v2213
        %s2217 = scalar_lea.vmem %s526, 8
        %v2218 = vld [vmem:[%s2217] sm:$0xf]
        %v2220 = vsel %vm768, %v2215, 0
        %v2223 = vsel %vm768, %v2216, 0
        %v2226 = vsel %vm1590, %v2218, 0
        %2228 = vmatprep.subr.bf16.mxu0 0
        %2229 = vmatpush1.bf16.msra.mxu0 %v2226
        %2230 = vmatprep.subr.bf16.mxu0 0
        %2231 = vmatpush1.bf16.msra.mxu0 0
        %2232 = vmatprep.subr.bf16.mxu0 0
        %2233 = vmatpush1.bf16.msra.mxu0 0
        %2234 = vmatprep.subr.bf16.mxu0 0
        %2235 = vmatpush1.bf16.msra.mxu0 0
        %2236 = vmatprep.subr.bf16.mxu0 0
        %2237 = vmatpush1.bf16.msra.mxu0 0
        %2238 = vmatprep.subr.bf16.mxu0 0
        %2239 = vmatpush1.bf16.msra.mxu0 0
        %2240 = vmatprep.subr.bf16.mxu0 0
        %2241 = vmatpush1.bf16.msra.mxu0 0
        %2242 = vmatprep.subr.bf16.mxu0 0
        %2243 = vmatpush1.bf16.msra.mxu0 0
        %2244 = vmatprep.subr.bf16.mxu0 0
        %2245 = vmatpush1.bf16.msra.mxu0 0
        %2246 = vmatprep.subr.bf16.mxu0 0
        %2247 = vmatpush1.bf16.msra.mxu0 0
        %2248 = vmatprep.subr.bf16.mxu0 0
        %2249 = vmatpush1.bf16.msra.mxu0 0
        %2250 = vmatprep.subr.bf16.mxu0 0
        %2251 = vmatpush1.bf16.msra.mxu0 0
        %2252 = vmatprep.subr.bf16.mxu0 0
        %2253 = vmatpush1.bf16.msra.mxu0 0
        %2254 = vmatprep.subr.bf16.mxu0 0
        %2255 = vmatpush1.bf16.msra.mxu0 0
        %2256 = vmatprep.subr.bf16.mxu0 0
        %2257 = vmatpush1.bf16.msra.mxu0 0
        %2258 = vmatprep.subr.bf16.mxu0 0
        %2259 = vmatpush1.bf16.msra.mxu0 0
        %2260 = vmatprep.mubr.bf16.mxu0 0
        %2261 = vmatmul.mubr.bf16.gmra.mrb[0].mxu0 %v2220
        %v2262 = vpop.f32.mrb[0].mxu0
        %v2263 = vadd.f32 0.0, %v2262
        %v2264 = vpop.f32.mrb[0].mxu0
        %v2265 = vpop.f32.mrb[0].mxu0
        %v2266 = vadd.f32 0.0, %v2265
        %v2267 = vpop.f32.mrb[0].mxu0
        %2268 = vmatprep.mubr.bf16.mxu0 0
        %2269 = vmatmul.mubr.bf16.gmra.mrb[0].mxu0 %v2223
        %v2270 = vpop.f32.mrb[0].mxu0
        %v2271 = vadd.f32 0.0, %v2270
        %v2272 = vpop.f32.mrb[0].mxu0
        %v2273 = vpop.f32.mrb[0].mxu0
        %v2274 = vadd.f32 0.0, %v2273
        %v2275 = vpop.f32.mrb[0].mxu0
        %2276 = vdwg.mxu0
        %v2277 = vadd.f32 %v1687, %v2263
        %v2278 = vadd.f32 %v1690, %v2266
        %v2279 = vadd.f32 %v1695, %v2271
        %v2280 = vadd.f32 %v1698, %v2274
        %s2281 = scalar_lea.vmem %s503, 48
        %v2282 = vld [vmem:[%s2281] sm:$0xf]
        %v2283 = vld [vmem:[%s2281 + $0x4] sm:$0xf]
        %v2284 = vld [vmem:[%s2281 + $0x8] sm:$0xf]
        %v2285 = vld [vmem:[%s2281 + $0xc] sm:$0xf]
        %s2286 = scalar_lea.vmem %s517, 3
        %v2287 = vld [vmem:[%s2286] sm:$0x1]
        %v2289 = vlaneseq
        %v2290 = vshrl.u32 %v2289, 7
        %v2291 = vsub.s32 0, %v2290
        %v2292 = vrot.slane %v2287, %v2291
        %v2298 = vunpack.c.l.b16 %v2282
        %v2299 = vunpack.c.l.b16 %v2283
        %v2300 = vunpack.c.l.b16 %v2284
        %v2301 = vunpack.c.l.b16 %v2285
        %v2302 = vpack.c.b16 %v2299, %v2298
        %v2303 = vpack.c.b16 %v2301, %v2300
        %2306 = vmatprep.subr.bf16.mxu0 0
        %2307 = vmatpush1.bf16.msra.mxu0 %v2302
        %2308 = vmatprep.subr.bf16.mxu0 0
        %2309 = vmatpush1.bf16.msra.mxu0 %v2303
        %2310 = vmatprep.subr.bf16.mxu0 0
        %2311 = vmatpush1.bf16.msra.mxu0 0
        %2312 = vmatprep.subr.bf16.mxu0 0
        %2313 = vmatpush1.bf16.msra.mxu0 0
        %2314 = vmatprep.subr.bf16.mxu0 0
        %2315 = vmatpush1.bf16.msra.mxu0 0
        %2316 = vmatprep.subr.bf16.mxu0 0
        %2317 = vmatpush1.bf16.msra.mxu0 0
        %2318 = vmatprep.subr.bf16.mxu0 0
        %2319 = vmatpush1.bf16.msra.mxu0 0
        %2320 = vmatprep.subr.bf16.mxu0 0
        %2321 = vmatpush1.bf16.msra.mxu0 0
        %2322 = vmatprep.subr.bf16.mxu0 0
        %2323 = vmatpush1.bf16.msra.mxu0 0
        %2324 = vmatprep.subr.bf16.mxu0 0
        %2325 = vmatpush1.bf16.msra.mxu0 0
        %2326 = vmatprep.subr.bf16.mxu0 0
        %2327 = vmatpush1.bf16.msra.mxu0 0
        %2328 = vmatprep.subr.bf16.mxu0 0
        %2329 = vmatpush1.bf16.msra.mxu0 0
        %2330 = vmatprep.subr.bf16.mxu0 0
        %2331 = vmatpush1.bf16.msra.mxu0 0
        %2332 = vmatprep.subr.bf16.mxu0 0
        %2333 = vmatpush1.bf16.msra.mxu0 0
        %2334 = vmatprep.subr.bf16.mxu0 0
        %2335 = vmatpush1.bf16.msra.mxu0 0
        %2336 = vmatprep.subr.bf16.mxu0 0
        %2337 = vmatpush1.bf16.msra.mxu0 0
        %2338 = vmatprep.mubr.bf16.mxu0 0
        %2339 = vmatmul.mubr.bf16.gmra.mrb[0].mxu0 %v571
        %v2340 = vpop.f32.mrb[0].mxu0
        %v2341 = vadd.f32 %v2292, %v2340
        %v2342 = vpop.f32.mrb[0].mxu0
        %v2343 = vpop.f32.mrb[0].mxu0
        %v2344 = vadd.f32 %v2292, %v2343
        %v2345 = vpop.f32.mrb[0].mxu0
        %2346 = vmatprep.mubr.bf16.mxu0 0
        %2347 = vmatmul.mubr.bf16.gmra.mrb[0].mxu0 %v574
        %v2348 = vpop.f32.mrb[0].mxu0
        %v2349 = vadd.f32 %v2292, %v2348
        %v2350 = vpop.f32.mrb[0].mxu0
        %v2351 = vpop.f32.mrb[0].mxu0
        %v2352 = vadd.f32 %v2292, %v2351
        %v2353 = vpop.f32.mrb[0].mxu0
        %2354 = vdwg.mxu0
        %s2355 = scalar_lea.vmem %s508, 48
        %v2356 = vld [vmem:[%s2355] sm:$0xf]
        %v2357 = vld [vmem:[%s2355 + $0x4] sm:$0xf]
        %v2358 = vld [vmem:[%s2355 + $0x8] sm:$0xf]
        %v2359 = vld [vmem:[%s2355 + $0xc] sm:$0xf]
        %v2364 = vunpack.c.l.b16 %v2356
        %v2365 = vunpack.c.l.b16 %v2357
        %v2366 = vunpack.c.l.b16 %v2358
        %v2367 = vunpack.c.l.b16 %v2359
        %v2368 = vpack.c.b16 %v2365, %v2364
        %v2369 = vpack.c.b16 %v2367, %v2366
        %2372 = vmatprep.subr.bf16.mxu0 0
        %2373 = vmatpush1.bf16.msra.mxu0 %v2368
        %2374 = vmatprep.subr.bf16.mxu0 0
        %2375 = vmatpush1.bf16.msra.mxu0 %v2369
        %2376 = vmatprep.subr.bf16.mxu0 0
        %2377 = vmatpush1.bf16.msra.mxu0 0
        %2378 = vmatprep.subr.bf16.mxu0 0
        %2379 = vmatpush1.bf16.msra.mxu0 0
        %2380 = vmatprep.subr.bf16.mxu0 0
        %2381 = vmatpush1.bf16.msra.mxu0 0
        %2382 = vmatprep.subr.bf16.mxu0 0
        %2383 = vmatpush1.bf16.msra.mxu0 0
        %2384 = vmatprep.subr.bf16.mxu0 0
        %2385 = vmatpush1.bf16.msra.mxu0 0
        %2386 = vmatprep.subr.bf16.mxu0 0
        %2387 = vmatpush1.bf16.msra.mxu0 0
        %2388 = vmatprep.subr.bf16.mxu0 0
        %2389 = vmatpush1.bf16.msra.mxu0 0
        %2390 = vmatprep.subr.bf16.mxu0 0
        %2391 = vmatpush1.bf16.msra.mxu0 0
        %2392 = vmatprep.subr.bf16.mxu0 0
        %2393 = vmatpush1.bf16.msra.mxu0 0
        %2394 = vmatprep.subr.bf16.mxu0 0
        %2395 = vmatpush1.bf16.msra.mxu0 0
        %2396 = vmatprep.subr.bf16.mxu0 0
        %2397 = vmatpush1.bf16.msra.mxu0 0
        %2398 = vmatprep.subr.bf16.mxu0 0
        %2399 = vmatpush1.bf16.msra.mxu0 0
        %2400 = vmatprep.subr.bf16.mxu0 0
        %2401 = vmatpush1.bf16.msra.mxu0 0
        %2402 = vmatprep.subr.bf16.mxu0 0
        %2403 = vmatpush1.bf16.msra.mxu0 0
        %2404 = vmatprep.mubr.bf16.mxu0 0
        %2405 = vmatmul.mubr.bf16.gmra.mrb[0].mxu0 %v571
        %v2406 = vpop.f32.mrb[0].mxu0
        %v2407 = vadd.f32 0.0, %v2406
        %v2408 = vpop.f32.mrb[0].mxu0
        %v2409 = vpop.f32.mrb[0].mxu0
        %v2410 = vadd.f32 0.0, %v2409
        %v2411 = vpop.f32.mrb[0].mxu0
        %2412 = vmatprep.mubr.bf16.mxu0 0
        %2413 = vmatmul.mubr.bf16.gmra.mrb[0].mxu0 %v574
        %v2414 = vpop.f32.mrb[0].mxu0
        %v2415 = vadd.f32 0.0, %v2414
        %v2416 = vpop.f32.mrb[0].mxu0
        %v2417 = vpop.f32.mrb[0].mxu0
        %v2418 = vadd.f32 0.0, %v2417
        %v2419 = vpop.f32.mrb[0].mxu0
        %2420 = vdwg.mxu0
        %s2421 = scalar_lea.vmem %s513, 48
        %v2422 = vld [vmem:[%s2421] sm:$0xf]
        %v2423 = vld [vmem:[%s2421 + $0x4] sm:$0xf]
        %v2424 = vld [vmem:[%s2421 + $0x8] sm:$0xf]
        %v2425 = vld [vmem:[%s2421 + $0xc] sm:$0xf]
        %s2426 = scalar_lea.vmem %s521, 3
        %v2427 = vld [vmem:[%s2426] sm:$0x1]
        %v2429 = vlaneseq
        %v2430 = vshrl.u32 %v2429, 7
        %v2431 = vsub.s32 0, %v2430
        %v2432 = vrot.slane %v2427, %v2431
        %v2438 = vunpack.c.l.b16 %v2422
        %v2439 = vunpack.c.l.b16 %v2423
        %v2440 = vunpack.c.l.b16 %v2424
        %v2441 = vunpack.c.l.b16 %v2425
        %v2442 = vpack.c.b16 %v2439, %v2438
        %v2443 = vpack.c.b16 %v2441, %v2440
        %2446 = vmatprep.subr.bf16.mxu0 0
        %2447 = vmatpush1.bf16.msra.mxu0 %v2442
        %2448 = vmatprep.subr.bf16.mxu0 0
        %2449 = vmatpush1.bf16.msra.mxu0 %v2443
        %2450 = vmatprep.subr.bf16.mxu0 0
        %2451 = vmatpush1.bf16.msra.mxu0 0
        %2452 = vmatprep.subr.bf16.mxu0 0
        %2453 = vmatpush1.bf16.msra.mxu0 0
        %2454 = vmatprep.subr.bf16.mxu0 0
        %2455 = vmatpush1.bf16.msra.mxu0 0
        %2456 = vmatprep.subr.bf16.mxu0 0
        %2457 = vmatpush1.bf16.msra.mxu0 0
        %2458 = vmatprep.subr.bf16.mxu0 0
        %2459 = vmatpush1.bf16.msra.mxu0 0
        %2460 = vmatprep.subr.bf16.mxu0 0
        %2461 = vmatpush1.bf16.msra.mxu0 0
        %2462 = vmatprep.subr.bf16.mxu0 0
        %2463 = vmatpush1.bf16.msra.mxu0 0
        %2464 = vmatprep.subr.bf16.mxu0 0
        %2465 = vmatpush1.bf16.msra.mxu0 0
        %2466 = vmatprep.subr.bf16.mxu0 0
        %2467 = vmatpush1.bf16.msra.mxu0 0
        %2468 = vmatprep.subr.bf16.mxu0 0
        %2469 = vmatpush1.bf16.msra.mxu0 0
        %2470 = vmatprep.subr.bf16.mxu0 0
        %2471 = vmatpush1.bf16.msra.mxu0 0
        %2472 = vmatprep.subr.bf16.mxu0 0
        %2473 = vmatpush1.bf16.msra.mxu0 0
        %2474 = vmatprep.subr.bf16.mxu0 0
        %2475 = vmatpush1.bf16.msra.mxu0 0
        %2476 = vmatprep.subr.bf16.mxu0 0
        %2477 = vmatpush1.bf16.msra.mxu0 0
        %2478 = vmatprep.mubr.bf16.mxu0 0
        %2479 = vmatmul.mubr.bf16.gmra.mrb[0].mxu0 %v571
        %v2480 = vpop.f32.mrb[0].mxu0
        %v2481 = vadd.f32 %v2432, %v2480
        %v2482 = vpop.f32.mrb[0].mxu0
        %v2483 = vpop.f32.mrb[0].mxu0
        %v2484 = vadd.f32 %v2432, %v2483
        %v2485 = vpop.f32.mrb[0].mxu0
        %2486 = vmatprep.mubr.bf16.mxu0 0
        %2487 = vmatmul.mubr.bf16.gmra.mrb[0].mxu0 %v574
        %v2488 = vpop.f32.mrb[0].mxu0
        %v2489 = vadd.f32 %v2432, %v2488
        %v2490 = vpop.f32.mrb[0].mxu0
        %v2491 = vpop.f32.mrb[0].mxu0
        %v2492 = vadd.f32 %v2432, %v2491
        %v2493 = vpop.f32.mrb[0].mxu0
        %2494 = vdwg.mxu0
        %s2495 = sadd.s32 %s762, 3
        %s2496 = sld [smem:[#allocation2 + %s2495]]
        %v2497 = vmul.f32 %v2341, %v2341
        %v2498 = vmul.f32 %v2344, %v2344
        %v2499 = vmul.f32 %v2349, %v2349
        %v2500 = vmul.f32 %v2352, %v2352
        %v2501 = vsel %vm768, %v2497, 0.0
        %2502 = vadd.xlane.f32.xlu0 %v2501
        %v2503 = vpop.xlane.xlu0 %2502
        %v2504 = vsel %vm768, %v2498, 0.0
        %2505 = vadd.xlane.f32.xlu0 %v2504
        %v2506 = vpop.xlane.xlu0 %2505
        %v2507 = vsel %vm768, %v2499, 0.0
        %2508 = vadd.xlane.f32.xlu0 %v2507
        %v2509 = vpop.xlane.xlu0 %2508
        %v2510 = vsel %vm768, %v2500, 0.0
        %2511 = vadd.xlane.f32.xlu0 %v2510
        %v2512 = vpop.xlane.xlu0 %2511
        %v2513 = vmax.f32 %v2503, 1e-24
        %v2514 = vmax.f32 %v2506, 1e-24
        %v2515 = vmax.f32 %v2509, 1e-24
        %v2516 = vmax.f32 %v2512, 1e-24
        %v2517 = vrsqrt.pop %v2513
        %v2518 = vrsqrt.pop %v2514
        %v2519 = vrsqrt.pop %v2515
        %v2520 = vrsqrt.pop %v2516
        %v2521 = vstv %s2496
        %v2522 = vmul.f32 %v2517, %v2521
        %v2523 = vmul.f32 %v2518, %v2521
        %v2524 = vmul.f32 %v2519, %v2521
        %v2525 = vmul.f32 %v2520, %v2521
        %v2526 = vmul.f32 %v2341, %v2522
        %v2527 = vmul.f32 %v2344, %v2523
        %v2528 = vmul.f32 %v2349, %v2524
        %v2529 = vmul.f32 %v2352, %v2525
        %v2530 = vmul.f32 %v2407, %v2407
        %v2531 = vmul.f32 %v2410, %v2410
        %v2532 = vmul.f32 %v2415, %v2415
        %v2533 = vmul.f32 %v2418, %v2418
        %v2534 = vsel %vm768, %v2530, 0.0
        %2535 = vadd.xlane.f32.xlu0 %v2534
        %v2536 = vpop.xlane.xlu0 %2535
        %v2537 = vsel %vm768, %v2531, 0.0
        %2538 = vadd.xlane.f32.xlu0 %v2537
        %v2539 = vpop.xlane.xlu0 %2538
        %v2540 = vsel %vm768, %v2532, 0.0
        %2541 = vadd.xlane.f32.xlu0 %v2540
        %v2542 = vpop.xlane.xlu0 %2541
        %v2543 = vsel %vm768, %v2533, 0.0
        %2544 = vadd.xlane.f32.xlu0 %v2543
        %v2545 = vpop.xlane.xlu0 %2544
        %v2546 = vmax.f32 %v2536, 1e-24
        %v2547 = vmax.f32 %v2539, 1e-24
        %v2548 = vmax.f32 %v2542, 1e-24
        %v2549 = vmax.f32 %v2545, 1e-24
        %v2550 = vrsqrt.pop %v2546
        %v2551 = vrsqrt.pop %v2547
        %v2552 = vrsqrt.pop %v2548
        %v2553 = vrsqrt.pop %v2549
        %v2554 = vmul.f32 %v2407, %v2550
        %v2555 = vmul.f32 %v2410, %v2551
        %v2556 = vmul.f32 %v2415, %v2552
        %v2557 = vmul.f32 %v2418, %v2553
        %v2558 = vpack.c.bf16 %v2527, %v2526
        %v2559 = vpack.c.bf16 %v2529, %v2528
        %v2560 = vpack.c.bf16 %v2555, %v2554
        %v2561 = vpack.c.bf16 %v2557, %v2556
        %v2562 = vpack.c.bf16 %v2484, %v2481
        %v2563 = vpack.c.bf16 %v2492, %v2489
        %s2564 = scalar_lea.vmem %s7, 48
        %v2565 = vld [vmem:[%s2564] sm:$0xff]
        %v2566 = vld [vmem:[%s2564 + $0x8] sm:$0xff]
        %v2568 = vsel %vm768, %v2558, 0
        %v2571 = vsel %vm768, %v2560, 0
        %2573 = vmatprep.subr.bf16.mxu0 0
        %2574 = vmatpush1.bf16.xpose.msra.mxu0 %v2571
        %2575 = vmatprep.subr.bf16.mxu0 0
        %2576 = vmatpush1.bf16.xpose.msra.mxu0 0
        %2577 = vmatprep.subr.bf16.mxu0 0
        %2578 = vmatpush1.bf16.xpose.msra.mxu0 0
        %2579 = vmatprep.subr.bf16.mxu0 0
        %2580 = vmatpush1.bf16.xpose.msra.mxu0 0
        %2581 = vmatprep.subr.bf16.mxu0 0
        %2582 = vmatpush1.bf16.xpose.msra.mxu0 0
        %2583 = vmatprep.subr.bf16.mxu0 0
        %2584 = vmatpush1.bf16.xpose.msra.mxu0 0
        %2585 = vmatprep.subr.bf16.mxu0 0
        %2586 = vmatpush1.bf16.xpose.msra.mxu0 0
        %2587 = vmatprep.subr.bf16.mxu0 0
        %2588 = vmatpush1.bf16.xpose.msra.mxu0 0
        %2589 = vmatprep.subr.bf16.mxu0 0
        %2590 = vmatpush1.bf16.xpose.msra.mxu0 0
        %2591 = vmatprep.subr.bf16.mxu0 0
        %2592 = vmatpush1.bf16.xpose.msra.mxu0 0
        %2593 = vmatprep.subr.bf16.mxu0 0
        %2594 = vmatpush1.bf16.xpose.msra.mxu0 0
        %2595 = vmatprep.subr.bf16.mxu0 0
        %2596 = vmatpush1.bf16.xpose.msra.mxu0 0
        %2597 = vmatprep.subr.bf16.mxu0 0
        %2598 = vmatpush1.bf16.xpose.msra.mxu0 0
        %2599 = vmatprep.subr.bf16.mxu0 0
        %2600 = vmatpush1.bf16.xpose.msra.mxu0 0
        %2601 = vmatprep.subr.bf16.mxu0 0
        %2602 = vmatpush1.bf16.xpose.msra.mxu0 0
        %2603 = vmatprep.subr.bf16.mxu0 0
        %2604 = vmatpush1.bf16.xpose.msra.mxu0 0
        %2605 = vmatprep.mubr.bf16.mxu0 0
        %2606 = vmatmul.mubr.bf16.gmra.mrb[0].mxu0 %v2568
        %v2607 = vpop.f32.mrb[0].mxu0
        %v2608 = vadd.f32 %v2565, %v2607
        %v2609 = vpop.f32.mrb[0].mxu0
        %v2610 = vpop.f32.mrb[0].mxu0
        %v2611 = vadd.f32 %v2566, %v2610
        %v2612 = vpop.f32.mrb[0].mxu0
        %2613 = vdwg.mxu0
        %v2615 = vsel %vm768, %v2559, 0
        %v2618 = vsel %vm768, %v2561, 0
        %2620 = vmatprep.subr.bf16.mxu0 0
        %2621 = vmatpush1.bf16.xpose.msra.mxu0 %v2618
        %2622 = vmatprep.subr.bf16.mxu0 0
        %2623 = vmatpush1.bf16.xpose.msra.mxu0 0
        %2624 = vmatprep.subr.bf16.mxu0 0
        %2625 = vmatpush1.bf16.xpose.msra.mxu0 0
        %2626 = vmatprep.subr.bf16.mxu0 0
        %2627 = vmatpush1.bf16.xpose.msra.mxu0 0
        %2628 = vmatprep.subr.bf16.mxu0 0
        %2629 = vmatpush1.bf16.xpose.msra.mxu0 0
        %2630 = vmatprep.subr.bf16.mxu0 0
        %2631 = vmatpush1.bf16.xpose.msra.mxu0 0
        %2632 = vmatprep.subr.bf16.mxu0 0
        %2633 = vmatpush1.bf16.xpose.msra.mxu0 0
        %2634 = vmatprep.subr.bf16.mxu0 0
        %2635 = vmatpush1.bf16.xpose.msra.mxu0 0
        %2636 = vmatprep.subr.bf16.mxu0 0
        %2637 = vmatpush1.bf16.xpose.msra.mxu0 0
        %2638 = vmatprep.subr.bf16.mxu0 0
        %2639 = vmatpush1.bf16.xpose.msra.mxu0 0
        %2640 = vmatprep.subr.bf16.mxu0 0
        %2641 = vmatpush1.bf16.xpose.msra.mxu0 0
        %2642 = vmatprep.subr.bf16.mxu0 0
        %2643 = vmatpush1.bf16.xpose.msra.mxu0 0
        %2644 = vmatprep.subr.bf16.mxu0 0
        %2645 = vmatpush1.bf16.xpose.msra.mxu0 0
        %2646 = vmatprep.subr.bf16.mxu0 0
        %2647 = vmatpush1.bf16.xpose.msra.mxu0 0
        %2648 = vmatprep.subr.bf16.mxu0 0
        %2649 = vmatpush1.bf16.xpose.msra.mxu0 0
        %2650 = vmatprep.subr.bf16.mxu0 0
        %2651 = vmatpush1.bf16.xpose.msra.mxu0 0
        %2652 = vmatprep.mubr.bf16.mxu0 0
        %2653 = vmatmul.mubr.bf16.gmra.mrb[0].mxu0 %v2615
        %v2654 = vpop.f32.mrb[0].mxu0
        %v2655 = vadd.f32 %v2565, %v2654
        %v2656 = vpop.f32.mrb[0].mxu0
        %v2657 = vpop.f32.mrb[0].mxu0
        %v2658 = vadd.f32 %v2566, %v2657
        %v2659 = vpop.f32.mrb[0].mxu0
        %2660 = vdwg.mxu0
        %v2661 = vsel %vm928, %v2608, -inf
        %2662 = vmax.xlane.f32.xlu0 %v2661
        %v2663 = vpop.xlane.xlu0 %2662
        %v2664 = vsel %vm928, %v2611, -inf
        %2665 = vmax.xlane.f32.xlu0 %v2664
        %v2666 = vpop.xlane.xlu0 %2665
        %v2667 = vsel %vm928, %v2655, -inf
        %2668 = vmax.xlane.f32.xlu0 %v2667
        %v2669 = vpop.xlane.xlu0 %2668
        %v2670 = vsel %vm928, %v2658, -inf
        %2671 = vmax.xlane.f32.xlu0 %v2670
        %v2672 = vpop.xlane.xlu0 %2671
        %v2673 = vsub.f32 %v2608, %v2663
        %v2674 = vsub.f32 %v2611, %v2666
        %v2675 = vsub.f32 %v2655, %v2669
        %v2676 = vsub.f32 %v2658, %v2672
        %v2677 = vmul.f32 %v2673, 1.442695
        %v2678 = vpow.pop %v2677
        %v2679 = vmul.f32 %v2674, 1.442695
        %v2680 = vpow.pop %v2679
        %v2681 = vmul.f32 %v2675, 1.442695
        %v2682 = vpow.pop %v2681
        %v2683 = vmul.f32 %v2676, 1.442695
        %v2684 = vpow.pop %v2683
        %v2685 = vsel %vm928, %v2678, 0.0
        %2686 = vadd.xlane.f32.xlu0 %v2685
        %v2687 = vpop.xlane.xlu0 %2686
        %v2688 = vsel %vm928, %v2680, 0.0
        %2689 = vadd.xlane.f32.xlu0 %v2688
        %v2690 = vpop.xlane.xlu0 %2689
        %v2691 = vsel %vm928, %v2682, 0.0
        %2692 = vadd.xlane.f32.xlu0 %v2691
        %v2693 = vpop.xlane.xlu0 %2692
        %v2694 = vsel %vm928, %v2684, 0.0
        %2695 = vadd.xlane.f32.xlu0 %v2694
        %v2696 = vpop.xlane.xlu0 %2695
        %v2697 = vpack.c.bf16 %v2680, %v2678
        %v2698 = vpack.c.bf16 %v2684, %v2682
        %v2700 = vsel %vm928, %v2697, 0
        %2702 = vmatprep.subr.bf16.mxu0 0
        %2703 = vmatpush1.bf16.msra.mxu0 %v2562
        %2704 = vmatprep.subr.bf16.mxu0 0
        %2705 = vmatpush1.bf16.msra.mxu0 0
        %2706 = vmatprep.subr.bf16.mxu0 0
        %2707 = vmatpush1.bf16.msra.mxu0 0
        %2708 = vmatprep.subr.bf16.mxu0 0
        %2709 = vmatpush1.bf16.msra.mxu0 0
        %2710 = vmatprep.subr.bf16.mxu0 0
        %2711 = vmatpush1.bf16.msra.mxu0 0
        %2712 = vmatprep.subr.bf16.mxu0 0
        %2713 = vmatpush1.bf16.msra.mxu0 0
        %2714 = vmatprep.subr.bf16.mxu0 0
        %2715 = vmatpush1.bf16.msra.mxu0 0
        %2716 = vmatprep.subr.bf16.mxu0 0
        %2717 = vmatpush1.bf16.msra.mxu0 0
        %2718 = vmatprep.subr.bf16.mxu0 0
        %2719 = vmatpush1.bf16.msra.mxu0 0
        %2720 = vmatprep.subr.bf16.mxu0 0
        %2721 = vmatpush1.bf16.msra.mxu0 0
        %2722 = vmatprep.subr.bf16.mxu0 0
        %2723 = vmatpush1.bf16.msra.mxu0 0
        %2724 = vmatprep.subr.bf16.mxu0 0
        %2725 = vmatpush1.bf16.msra.mxu0 0
        %2726 = vmatprep.subr.bf16.mxu0 0
        %2727 = vmatpush1.bf16.msra.mxu0 0
        %2728 = vmatprep.subr.bf16.mxu0 0
        %2729 = vmatpush1.bf16.msra.mxu0 0
        %2730 = vmatprep.subr.bf16.mxu0 0
        %2731 = vmatpush1.bf16.msra.mxu0 0
        %2732 = vmatprep.subr.bf16.mxu0 0
        %2733 = vmatpush1.bf16.msra.mxu0 0
        %2734 = vmatprep.mubr.bf16.mxu0 0
        %2735 = vmatmul.mubr.bf16.gmra.mrb[0].mxu0 %v2700
        %v2736 = vpop.f32.mrb[0].mxu0
        %v2737 = vadd.f32 0.0, %v2736
        %v2738 = vpop.f32.mrb[0].mxu0
        %v2739 = vpop.f32.mrb[0].mxu0
        %v2740 = vadd.f32 0.0, %v2739
        %v2741 = vpop.f32.mrb[0].mxu0
        %2742 = vdwg.mxu0
        %v2744 = vsel %vm928, %v2698, 0
        %2746 = vmatprep.subr.bf16.mxu0 0
        %2747 = vmatpush1.bf16.msra.mxu0 %v2563
        %2748 = vmatprep.subr.bf16.mxu0 0
        %2749 = vmatpush1.bf16.msra.mxu0 0
        %2750 = vmatprep.subr.bf16.mxu0 0
        %2751 = vmatpush1.bf16.msra.mxu0 0
        %2752 = vmatprep.subr.bf16.mxu0 0
        %2753 = vmatpush1.bf16.msra.mxu0 0
        %2754 = vmatprep.subr.bf16.mxu0 0
        %2755 = vmatpush1.bf16.msra.mxu0 0
        %2756 = vmatprep.subr.bf16.mxu0 0
        %2757 = vmatpush1.bf16.msra.mxu0 0
        %2758 = vmatprep.subr.bf16.mxu0 0
        %2759 = vmatpush1.bf16.msra.mxu0 0
        %2760 = vmatprep.subr.bf16.mxu0 0
        %2761 = vmatpush1.bf16.msra.mxu0 0
        %2762 = vmatprep.subr.bf16.mxu0 0
        %2763 = vmatpush1.bf16.msra.mxu0 0
        %2764 = vmatprep.subr.bf16.mxu0 0
        %2765 = vmatpush1.bf16.msra.mxu0 0
        %2766 = vmatprep.subr.bf16.mxu0 0
        %2767 = vmatpush1.bf16.msra.mxu0 0
        %2768 = vmatprep.subr.bf16.mxu0 0
        %2769 = vmatpush1.bf16.msra.mxu0 0
        %2770 = vmatprep.subr.bf16.mxu0 0
        %2771 = vmatpush1.bf16.msra.mxu0 0
        %2772 = vmatprep.subr.bf16.mxu0 0
        %2773 = vmatpush1.bf16.msra.mxu0 0
        %2774 = vmatprep.subr.bf16.mxu0 0
        %2775 = vmatpush1.bf16.msra.mxu0 0
        %2776 = vmatprep.subr.bf16.mxu0 0
        %2777 = vmatpush1.bf16.msra.mxu0 0
        %2778 = vmatprep.mubr.bf16.mxu0 0
        %2779 = vmatmul.mubr.bf16.gmra.mrb[0].mxu0 %v2744
        %v2780 = vpop.f32.mrb[0].mxu0
        %v2781 = vadd.f32 0.0, %v2780
        %v2782 = vpop.f32.mrb[0].mxu0
        %v2783 = vpop.f32.mrb[0].mxu0
        %v2784 = vadd.f32 0.0, %v2783
        %v2785 = vpop.f32.mrb[0].mxu0
        %2786 = vdwg.mxu0
        %v2787 = vrcp.pop %v2687
        %v2788 = vrcp.pop %v2690
        %v2789 = vrcp.pop %v2693
        %v2790 = vrcp.pop %v2696
        %v2791 = vmul.f32 %v2737, %v2787
        %v2792 = vmul.f32 %v2740, %v2788
        %v2793 = vmul.f32 %v2781, %v2789
        %v2794 = vmul.f32 %v2784, %v2790
        %v2795 = vpack.c.bf16 %v2792, %v2791
        %v2796 = vpack.c.bf16 %v2794, %v2793
        %s2797 = scalar_lea.vmem %s526, 12
        %v2798 = vld [vmem:[%s2797] sm:$0xf]
        %v2800 = vsel %vm768, %v2795, 0
        %v2803 = vsel %vm768, %v2796, 0
        %v2806 = vsel %vm1590, %v2798, 0
        %2808 = vmatprep.subr.bf16.mxu0 0
        %2809 = vmatpush1.bf16.msra.mxu0 %v2806
        %2810 = vmatprep.subr.bf16.mxu0 0
        %2811 = vmatpush1.bf16.msra.mxu0 0
        %2812 = vmatprep.subr.bf16.mxu0 0
        %2813 = vmatpush1.bf16.msra.mxu0 0
        %2814 = vmatprep.subr.bf16.mxu0 0
        %2815 = vmatpush1.bf16.msra.mxu0 0
        %2816 = vmatprep.subr.bf16.mxu0 0
        %2817 = vmatpush1.bf16.msra.mxu0 0
        %2818 = vmatprep.subr.bf16.mxu0 0
        %2819 = vmatpush1.bf16.msra.mxu0 0
        %2820 = vmatprep.subr.bf16.mxu0 0
        %2821 = vmatpush1.bf16.msra.mxu0 0
        %2822 = vmatprep.subr.bf16.mxu0 0
        %2823 = vmatpush1.bf16.msra.mxu0 0
        %2824 = vmatprep.subr.bf16.mxu0 0
        %2825 = vmatpush1.bf16.msra.mxu0 0
        %2826 = vmatprep.subr.bf16.mxu0 0
        %2827 = vmatpush1.bf16.msra.mxu0 0
        %2828 = vmatprep.subr.bf16.mxu0 0
        %2829 = vmatpush1.bf16.msra.mxu0 0
        %2830 = vmatprep.subr.bf16.mxu0 0
        %2831 = vmatpush1.bf16.msra.mxu0 0
        %2832 = vmatprep.subr.bf16.mxu0 0
        %2833 = vmatpush1.bf16.msra.mxu0 0
        %2834 = vmatprep.subr.bf16.mxu0 0
        %2835 = vmatpush1.bf16.msra.mxu0 0
        %2836 = vmatprep.subr.bf16.mxu0 0
        %2837 = vmatpush1.bf16.msra.mxu0 0
        %2838 = vmatprep.subr.bf16.mxu0 0
        %2839 = vmatpush1.bf16.msra.mxu0 0
        %2840 = vmatprep.mubr.bf16.mxu0 0
        %2841 = vmatmul.mubr.bf16.gmra.mrb[0].mxu0 %v2800
        %v2842 = vpop.f32.mrb[0].mxu0
        %v2843 = vadd.f32 0.0, %v2842
        %v2844 = vpop.f32.mrb[0].mxu0
        %v2845 = vpop.f32.mrb[0].mxu0
        %v2846 = vadd.f32 0.0, %v2845
        %v2847 = vpop.f32.mrb[0].mxu0
        %2848 = vmatprep.mubr.bf16.mxu0 0
        %2849 = vmatmul.mubr.bf16.gmra.mrb[0].mxu0 %v2803
        %v2850 = vpop.f32.mrb[0].mxu0
        %v2851 = vadd.f32 0.0, %v2850
        %v2852 = vpop.f32.mrb[0].mxu0
        %v2853 = vpop.f32.mrb[0].mxu0
        %v2854 = vadd.f32 0.0, %v2853
        %v2855 = vpop.f32.mrb[0].mxu0
        %2856 = vdwg.mxu0
        %v2857 = vadd.f32 %v2277, %v2843
        %v2858 = vadd.f32 %v2278, %v2846
        %v2859 = vadd.f32 %v2279, %v2851
        %v2860 = vadd.f32 %v2280, %v2854
        %v2861 = vld [vmem:[%s529] sm:$0x1]
        %v2863 = vlaneseq
        %v2864 = vshrl.u32 %v2863, 7
        %v2865 = vsub.s32 0, %v2864
        %v2866 = vrot.slane %v2861, %v2865
        %v2868 = vadd.f32 %v2857, %v2866
        %v2869 = vadd.f32 %v2858, %v2866
        %v2870 = vadd.f32 %v2859, %v2866
        %v2871 = vadd.f32 %v2860, %v2866
        %2872 = vst [vmem:[%s488] sm:$0xff] %v2868
        %2873 = vst [vmem:[%s488 + $0x8] sm:$0xff] %v2869
        %2874 = vst [vmem:[%s488 + $0x10] sm:$0xff] %v2870
        %2875 = vst [vmem:[%s488 + $0x18] sm:$0xff] %v2871
        %s2876 = sand.u32 %s299, 1
        %s2877 = scalar_lea.sflag [#allocation3], %s2876
        %s2878 = sand.u32 %s299, 1
        %s2879 = smul.addr %s2878, 32
        %s2880 = scalar_lea.vmem [#allocation5], %s2879
        // Predicated region
        $region65: #{tpu_custom_call.1} parent=59 // pred_check
          %p2881 = pneg %p309
        $region66: #{tpu_custom_call.1} parent=59 // pred_check_branch
          %2883 = sbr.rel (%p2881) target = $region68
        $region67: #{tpu_custom_call.1} parent=59 // pred_region
          %s2884 = smul.u32 4, %s30
          %s2886 = ssub.s32 512, 512
          %2887 = vsyncadd %s2877, %s2886
          %s2888 = smul.addr %s29, 4
          %s2889 = sadd.s32 %s2884, %s2888
          %s2890 = smul.addr %s2889, 128
          %s2891 = scalar_lea.hbm %s10, %s2890
          %s2892 = sshll.u32 %s2880, 4
          %s2893 = int_to_ptr.vmem [resolvable:$true] %s2892
          %2898 = dma.vmem_to_hbm [thread:$0]  %s2893, 512, %s2891, %s2877, 128, 128, 8
        $region68: #{tpu_custom_call.1} parent=59 // pred_fallthru
          _
      $region60: #{tpu_custom_call.1} parent=5 // pred_fallthru
        _
      %p2899 = scmp.le.s32.totalorder 2, %s20
      // Predicated region
      $region69: #{tpu_custom_call.1} parent=5 // pred_check
        %p2900 = pneg %p2899
      $region70: #{tpu_custom_call.1} parent=5 // pred_check_branch
        %2902 = sbr.rel (%p2900) target = $region72
      $region71: #{tpu_custom_call.1} parent=5 // pred_region
        %s2903 = ssub.s32 %s20, 2
        // Predicated region
        $region73: #{tpu_custom_call.1} parent=71 // pred_check
          %p2904 = pneg %p315
        $region74: #{tpu_custom_call.1} parent=71 // pred_check_branch
          %2906 = sbr.rel (%p2904) target = $region76
        $region75: #{tpu_custom_call.1} parent=71 // pred_region
          %s2907 = sand.u32 %s300, 1
          %s2908 = scalar_lea.sflag [#allocation3], %s2907
          %s2909 = sand.u32 %s300, 1
          %s2910 = smul.addr %s2909, 32
          %s2911 = scalar_lea.vmem [#allocation5], %s2910
          %2912 = dma.done %s2908, 512
        $region76: #{tpu_custom_call.1} parent=71 // pred_fallthru
          _
      $region72: #{tpu_custom_call.1} parent=5 // pred_fallthru
        _
    $region6: #{tpu_custom_call.1} parent=1 // loop_footer
      %s24 = sadd.s32 1, %s20
    $region7: #{tpu_custom_call.1} parent=1 // loop_footer_branch
      %19 = sbr.rel target = $region3
    $region8: #{tpu_custom_call.1} parent=1 // loop_exit
      _
    %2913 = vsyncpa [#allocation3], 1
    %s2914 = scalar_lea.sflag [#allocation3], 1
    %2915 = vsyncpa %s2914, 1
    %2916 = vsyncpa [#allocation4], 1
    %s2917 = scalar_lea.sflag [#allocation4], 1
    %2918 = vsyncpa %s2917, 1

</llo_original>
